<compile_context>
chip_gen: v7x
topology: tpu7x:2x2x1
jax: 0.10.0
libtpu: 0.0.40
codegen_flags: <defaults>
</compile_context>

<pallas_src>
import functools

import jax
import jax.numpy as jnp
from jax.experimental import pallas as pl
from jax.experimental.pallas import tpu as pltpu

INPUT_DIM = 1
OUTPUT_DIM = 9
HIDDEN_DIM = 64
NUM_RES_BLOCKS = 4
OUT_PAD = 16                  # output rows padded 9 -> 16 for aligned stores
DEFAULT_MAX_TILE = 8192


def rpinn_kernel(t_ref, w_in_ref, b_in_ref, w1_ref, b1_ref, w2_ref, b2_ref,
                 w_out_ref, b_out_ref, o_ref, *, act_dtype):
    """Transposed (feature-major) fused forward pass.

    t_ref:     (1, TN) f32                      lane-dense time samples
    w_in_ref:  (64, 1) f32, b_in_ref (64, 1) f32
    w1/w2:     (4, 64, 64) matmul dtype, b1/b2 (4, 64, 1) f32
    w_out_ref: (16, 64) matmul dtype (zero-padded from (9, 64)), b_out (16,1) f32
    o_ref:     (16, TN) f32  (rows 9..15 are zero; sliced off in the wrapper)
    """
    wdt = w1_ref.dtype                                       # matmul dtype
    t = t_ref[...]                                           # (1, TN) f32

    # Input layer: K=1 matmul replaced by a VPU broadcast (outer product).
    pre = w_in_ref[...] * t + b_in_ref[...]                  # (64, TN) f32
    x = jnp.tanh(pre.astype(act_dtype))                      # (64, TN) act

    # Residual blocks (statically unrolled). Matmuls accumulate in f32 on the
    # MXU; bias adds in f32; tanh / residual adds on `act_dtype` activations.
    for i in range(NUM_RES_BLOCKS):
        h = jnp.dot(w1_ref[i], x.astype(wdt),
                    preferred_element_type=jnp.float32) + b1_ref[i]
        h = jnp.tanh(h.astype(act_dtype))                    # (64, TN) act
        h = jnp.dot(w2_ref[i], h.astype(wdt),
                    preferred_element_type=jnp.float32) + b2_ref[i]
        x = jnp.tanh((x + h).astype(act_dtype))              # (64, TN) act

    # Output layer (padded to 16 rows -> aligned, lane-dense, unmasked store).
    out = (jnp.dot(w_out_ref[...], x.astype(wdt),
                   preferred_element_type=jnp.float32) + b_out_ref[...])
    o_ref[...] = out.astype(o_ref.dtype)


def _round_up(x, m):
    return (x + m - 1) // m * m


def _full_spec(arr):
    """Full-array (untiled) block, constant across the grid."""
    shape = arr.shape
    return pl.BlockSpec(shape, lambda i: (0,) * len(shape))


def _default_num_cores():
    """Best-effort TensorCore count per chip (2 on v7x, else 1)."""
    try:
        kind = jax.devices()[0].device_kind.lower()
        if "v7" in kind:
            return 2
    except Exception:
        pass
    return 1


def _pick_tile(n, max_tile, num_cores):
    """Largest useful tile: one tile per core when the batch fits, otherwise
    max_tile. Always a multiple of 128 lanes."""
    per_core = pl.cdiv(n, max(1, num_cores))
    return max(128, min(max_tile, _round_up(per_core, 128)))


def rpinn_forward(t, params, *, tile_n=None, max_tile=DEFAULT_MAX_TILE,
                  matmul_dtype=jnp.bfloat16, act_dtype=jnp.bfloat16,
                  num_cores=None, feature_major=False):
    """t: (N, 1) float32 -> (N, 9) float32 (or (9, N) if feature_major)."""
    (w_in, b_in, w1s, b1s, w2s, b2s, w_out, b_out) = params
    n = t.shape[0]
    if num_cores is None:
        num_cores = _default_num_cores()
    if tile_n is None:
        tile_n = _pick_tile(n, max_tile, num_cores)
    assert tile_n % 128 == 0, "tile_n must be a multiple of 128 lanes"

    # Grid-step count: >= num_cores and a multiple of it (balanced megacore).
    steps = max(num_cores, pl.cdiv(n, tile_n))
    steps = _round_up(steps, max(1, num_cores))
    n_pad = steps * tile_n
    grid = (steps,)

    # Lane-dense time input: (1, n_pad), zero-padded (padding sliced off below).
    t_row = jnp.pad(t.reshape(-1).astype(jnp.float32),
                    (0, n_pad - n)).reshape(1, n_pad)

    # Pre-cast MXU weights once in the wrapper (no per-step casts in-kernel),
    # and pad the output layer from 9 -> 16 rows for an aligned output block.
    w1s_c = w1s.astype(matmul_dtype)
    w2s_c = w2s.astype(matmul_dtype)
    w_out_p = (jnp.zeros((OUT_PAD, HIDDEN_DIM), jnp.float32)
               .at[:OUTPUT_DIM].set(w_out)).astype(matmul_dtype)
    b_out_p = jnp.zeros((OUT_PAD, 1), jnp.float32).at[:OUTPUT_DIM].set(b_out)

    kernel = functools.partial(rpinn_kernel, act_dtype=act_dtype)

    # Transcendental-heavy cost estimate for XLA's scheduler.
    flops = n_pad * (NUM_RES_BLOCKS * 2 * 2 * HIDDEN_DIM * HIDDEN_DIM
                     + 2 * HIDDEN_DIM * OUT_PAD + 2 * HIDDEN_DIM)
    transcendentals = n_pad * (2 * NUM_RES_BLOCKS + 1) * HIDDEN_DIM
    weight_bytes = sum(int(a.size) * a.dtype.itemsize
                       for a in (w_in, b_in, w1s_c, b1s, w2s_c, b2s,
                                 w_out_p, b_out_p))
    bytes_accessed = int(n_pad * 4 + n_pad * OUT_PAD * 4 + weight_bytes)

    out_t = pl.pallas_call(
        kernel,
        out_shape=jax.ShapeDtypeStruct((OUT_PAD, n_pad), jnp.float32),
        grid_spec=pltpu.PrefetchScalarGridSpec(
            num_scalar_prefetch=0,
            grid=grid,
            in_specs=[
                pl.BlockSpec((1, tile_n), lambda i: (0, i)),   # t (lane-dense)
                _full_spec(w_in),      # (64, 1)   f32
                _full_spec(b_in),      # (64, 1)   f32
                _full_spec(w1s_c),     # (4,64,64) matmul dtype
                _full_spec(b1s),       # (4,64,1)  f32
                _full_spec(w2s_c),     # (4,64,64) matmul dtype
                _full_spec(b2s),       # (4,64,1)  f32
                _full_spec(w_out_p),   # (16,64)   matmul dtype
                _full_spec(b_out_p),   # (16,1)    f32
            ],
            out_specs=pl.BlockSpec((OUT_PAD, tile_n), lambda i: (0, i)),
        ),
        compiler_params=pltpu.CompilerParams(
            dimension_semantics=("parallel",)),
        cost_estimate=pl.CostEstimate(flops=int(flops),
                                      transcendentals=int(transcendentals),
                                      bytes_accessed=bytes_accessed),
    )(t_row, w_in, b_in, w1s_c, b1s, w2s_c, b2s, w_out_p, b_out_p)

    out = out_t[:OUTPUT_DIM, :n]     # drop row / lane padding
    if feature_major:
        return out                   # (9, N): skips the HBM-bound transpose
    return out.T                     # (N, 9): matches the PyTorch module


def init_params(key):
    """PyTorch nn.Linear-style init: W is (out, in), b is (out, 1),
    U(-1/sqrt(fan_in), +1/sqrt(fan_in))."""
    ks = jax.random.split(key, 2 + 4 * NUM_RES_BLOCKS + 2)
    ki = iter(range(len(ks)))

    def linear(fan_in, fan_out):
        bound = 1.0 / (fan_in ** 0.5)
        w = jax.random.uniform(ks[next(ki)], (fan_out, fan_in), jnp.float32,
                               -bound, bound)
        b = jax.random.uniform(ks[next(ki)], (fan_out, 1), jnp.float32,
                               -bound, bound)
        return w, b

    w_in, b_in = linear(INPUT_DIM, HIDDEN_DIM)

    w1_list, b1_list, w2_list, b2_list = [], [], [], []
    for _ in range(NUM_RES_BLOCKS):
        w1, b1 = linear(HIDDEN_DIM, HIDDEN_DIM)
        w2, b2 = linear(HIDDEN_DIM, HIDDEN_DIM)
        w1_list.append(w1); b1_list.append(b1)
        w2_list.append(w2); b2_list.append(b2)

    w1s = jnp.stack(w1_list)   # (4, 64, 64)
    b1s = jnp.stack(b1_list)   # (4, 64, 1)
    w2s = jnp.stack(w2_list)   # (4, 64, 64)
    b2s = jnp.stack(b2_list)   # (4, 64, 1)

    w_out, b_out = linear(HIDDEN_DIM, OUTPUT_DIM)
    return (w_in, b_in, w1s, b1s, w2s, b2s, w_out, b_out)


def rpinn_reference(t, params):
    """Pure-JAX f32 reference (PyTorch convention: y = x @ W^T + b)."""
    (w_in, b_in, w1s, b1s, w2s, b2s, w_out, b_out) = params
    x = jnp.tanh(t @ w_in.T + b_in.T)
    for i in range(NUM_RES_BLOCKS):
        h = jnp.tanh(x @ w1s[i].T + b1s[i].T)
        h = h @ w2s[i].T + b2s[i].T
        x = jnp.tanh(x + h)
    return x @ w_out.T + b_out.T


def rpinn_reference_bf16(t, params):
    """Pure-JAX emulation of the kernel's default bf16-activation path
    (bf16 weights/activations, f32 accumulation + bias adds)."""
    (w_in, b_in, w1s, b1s, w2s, b2s, w_out, b_out) = params
    bf = jnp.bfloat16
    x = jnp.tanh((t @ w_in.T + b_in.T).astype(bf))
    for i in range(NUM_RES_BLOCKS):
        h = jnp.dot(x, w1s[i].astype(bf).T,
                    preferred_element_type=jnp.float32) + b1s[i].T
        h = jnp.tanh(h.astype(bf))
        h = jnp.dot(h, w2s[i].astype(bf).T,
                    preferred_element_type=jnp.float32) + b2s[i].T
        x = jnp.tanh((x + h).astype(bf))
    return jnp.dot(x, w_out.astype(bf).T,
                   preferred_element_type=jnp.float32) + b_out.T


if __name__ == "__main__":
    key = jax.random.PRNGKey(0)
    k_params, k_t = jax.random.split(key)

    params = init_params(k_params)

    N = 512   # batch of time points
    t = jax.random.uniform(k_t, (N, INPUT_DIM), jnp.float32, 0.0, 1.0)

    ref = rpinn_reference(t, params)

    # Full-f32 path: tight check vs reference.
    out_f32 = jax.block_until_ready(
        rpinn_forward(t, params, matmul_dtype=jnp.float32,
                      act_dtype=jnp.float32))
    assert out_f32.shape == (N, OUTPUT_DIM)
    assert jnp.allclose(out_f32, ref, atol=1e-5, rtol=1e-5), "f32 mismatch"

    # Default bf16-activation path: check vs a bf16-emulated reference
    # (tighter than the f32 comparison) and loosely vs the f32 reference.
    out_bf16 = jax.block_until_ready(rpinn_forward(t, params))
    ref_bf16 = rpinn_reference_bf16(t, params)
    assert out_bf16.shape == (N, OUTPUT_DIM)
    assert jnp.allclose(out_bf16, ref_bf16, atol=5e-2, rtol=5e-2), \
        "bf16 path deviates from bf16-emulated reference"
    assert jnp.allclose(out_bf16, ref, atol=2e-1), "bf16 path diverged"

    print("KERNEL_OK")
</pallas_src>

<mosaic_0001>
module attributes {stable_mosaic.version = 11 : i64} {
  func.func @rpinn_kernel(%arg0: i32, %arg1: memref<1x512xf32, #tpu.memory_space<vmem>>, %arg2: memref<64x1xf32, #tpu.memory_space<vmem>>, %arg3: memref<64x1xf32, #tpu.memory_space<vmem>>, %arg4: memref<4x64x64xf32, #tpu.memory_space<vmem>>, %arg5: memref<4x64x1xf32, #tpu.memory_space<vmem>>, %arg6: memref<4x64x64xf32, #tpu.memory_space<vmem>>, %arg7: memref<4x64x1xf32, #tpu.memory_space<vmem>>, %arg8: memref<16x64xf32, #tpu.memory_space<vmem>>, %arg9: memref<16x1xf32, #tpu.memory_space<vmem>>, %arg10: memref<16x512xf32, #tpu.memory_space<vmem>>) attributes {dimension_semantics = [#tpu.dimension_semantics<parallel>], iteration_bounds = array<i64: 1>, scalar_prefetch = 0 : i64, scratch_operands = 0 : i64, tpu.core_type = #tpu.core_type<tc>, window_params = [{transform_indices = @transform_0, window_bounds = array<i64: 1, 512>}, {pipeline_mode = #tpu.pipeline_mode<synchronous>, transform_indices = @transform_1, window_bounds = array<i64: 64, 1>}, {pipeline_mode = #tpu.pipeline_mode<synchronous>, transform_indices = @transform_2, window_bounds = array<i64: 64, 1>}, {pipeline_mode = #tpu.pipeline_mode<synchronous>, transform_indices = @transform_3, window_bounds = array<i64: 4, 64, 64>}, {pipeline_mode = #tpu.pipeline_mode<synchronous>, transform_indices = @transform_4, window_bounds = array<i64: 4, 64, 1>}, {pipeline_mode = #tpu.pipeline_mode<synchronous>, transform_indices = @transform_5, window_bounds = array<i64: 4, 64, 64>}, {pipeline_mode = #tpu.pipeline_mode<synchronous>, transform_indices = @transform_6, window_bounds = array<i64: 4, 64, 1>}, {pipeline_mode = #tpu.pipeline_mode<synchronous>, transform_indices = @transform_7, window_bounds = array<i64: 16, 64>}, {pipeline_mode = #tpu.pipeline_mode<synchronous>, transform_indices = @transform_8, window_bounds = array<i64: 16, 1>}, {transform_indices = @transform_9, window_bounds = array<i64: 16, 512>}]} {
    %c0 = arith.constant 0 : index
    %c0_0 = arith.constant 0 : index
    %0 = vector.load %arg1[%c0, %c0_0] : memref<1x512xf32, #tpu.memory_space<vmem>>, vector<1x512xf32>
    %c0_1 = arith.constant 0 : index
    %c0_2 = arith.constant 0 : index
    %1 = vector.load %arg2[%c0_1, %c0_2] : memref<64x1xf32, #tpu.memory_space<vmem>>, vector<64x1xf32>
    %2 = vector.broadcast %1 : vector<64x1xf32> to vector<64x512xf32>
    %3 = vector.broadcast %0 : vector<1x512xf32> to vector<64x512xf32>
    %4 = arith.mulf %2, %3 : vector<64x512xf32>
    %c0_3 = arith.constant 0 : index
    %c0_4 = arith.constant 0 : index
    %5 = vector.load %arg3[%c0_3, %c0_4] : memref<64x1xf32, #tpu.memory_space<vmem>>, vector<64x1xf32>
    %6 = vector.broadcast %5 : vector<64x1xf32> to vector<64x512xf32>
    %7 = arith.addf %4, %6 : vector<64x512xf32>
    %8 = math.tanh %7 : vector<64x512xf32>
    %c0_5 = arith.constant 0 : index
    %c0_6 = arith.constant 0 : index
    %c0_7 = arith.constant 0 : index
    %9 = vector.load %arg4[%c0_5, %c0_6, %c0_7] : memref<4x64x64xf32, #tpu.memory_space<vmem>>, vector<1x64x64xf32>
    %10 = vector.shape_cast %9 : vector<1x64x64xf32> to vector<64x64xf32>
    %cst = arith.constant dense<0.000000e+00> : vector<64x512xf32>
    %11 = tpu.matmul %10, %8, %cst {dimension_numbers = #tpu.dot_dimension_numbers<[1], [0], [0], [1], [0, 0, 1, 1], [], []>} : vector<64x64xf32>, vector<64x512xf32>, vector<64x512xf32> -> vector<64x512xf32>
    %c0_8 = arith.constant 0 : index
    %c0_9 = arith.constant 0 : index
    %c0_10 = arith.constant 0 : index
    %12 = vector.load %arg5[%c0_8, %c0_9, %c0_10] : memref<4x64x1xf32, #tpu.memory_space<vmem>>, vector<1x64x1xf32>
    %13 = vector.shape_cast %12 : vector<1x64x1xf32> to vector<64x1xf32>
    %14 = vector.broadcast %13 : vector<64x1xf32> to vector<64x512xf32>
    %15 = arith.addf %11, %14 : vector<64x512xf32>
    %16 = math.tanh %15 : vector<64x512xf32>
    %c0_11 = arith.constant 0 : index
    %c0_12 = arith.constant 0 : index
    %c0_13 = arith.constant 0 : index
    %17 = vector.load %arg6[%c0_11, %c0_12, %c0_13] : memref<4x64x64xf32, #tpu.memory_space<vmem>>, vector<1x64x64xf32>
    %18 = vector.shape_cast %17 : vector<1x64x64xf32> to vector<64x64xf32>
    %cst_14 = arith.constant dense<0.000000e+00> : vector<64x512xf32>
    %19 = tpu.matmul %18, %16, %cst_14 {dimension_numbers = #tpu.dot_dimension_numbers<[1], [0], [0], [1], [0, 0, 1, 1], [], []>} : vector<64x64xf32>, vector<64x512xf32>, vector<64x512xf32> -> vector<64x512xf32>
    %c0_15 = arith.constant 0 : index
    %c0_16 = arith.constant 0 : index
    %c0_17 = arith.constant 0 : index
    %20 = vector.load %arg7[%c0_15, %c0_16, %c0_17] : memref<4x64x1xf32, #tpu.memory_space<vmem>>, vector<1x64x1xf32>
    %21 = vector.shape_cast %20 : vector<1x64x1xf32> to vector<64x1xf32>
    %22 = vector.broadcast %21 : vector<64x1xf32> to vector<64x512xf32>
    %23 = arith.addf %19, %22 : vector<64x512xf32>
    %24 = arith.addf %8, %23 : vector<64x512xf32>
    %25 = math.tanh %24 : vector<64x512xf32>
    %c1 = arith.constant 1 : index
    %c0_18 = arith.constant 0 : index
    %c0_19 = arith.constant 0 : index
    %26 = vector.load %arg4[%c1, %c0_18, %c0_19] : memref<4x64x64xf32, #tpu.memory_space<vmem>>, vector<1x64x64xf32>
    %27 = vector.shape_cast %26 : vector<1x64x64xf32> to vector<64x64xf32>
    %cst_20 = arith.constant dense<0.000000e+00> : vector<64x512xf32>
    %28 = tpu.matmul %27, %25, %cst_20 {dimension_numbers = #tpu.dot_dimension_numbers<[1], [0], [0], [1], [0, 0, 1, 1], [], []>} : vector<64x64xf32>, vector<64x512xf32>, vector<64x512xf32> -> vector<64x512xf32>
    %c1_21 = arith.constant 1 : index
    %c0_22 = arith.constant 0 : index
    %c0_23 = arith.constant 0 : index
    %29 = vector.load %arg5[%c1_21, %c0_22, %c0_23] : memref<4x64x1xf32, #tpu.memory_space<vmem>>, vector<1x64x1xf32>
    %30 = vector.shape_cast %29 : vector<1x64x1xf32> to vector<64x1xf32>
    %31 = vector.broadcast %30 : vector<64x1xf32> to vector<64x512xf32>
    %32 = arith.addf %28, %31 : vector<64x512xf32>
    %33 = math.tanh %32 : vector<64x512xf32>
    %c1_24 = arith.constant 1 : index
    %c0_25 = arith.constant 0 : index
    %c0_26 = arith.constant 0 : index
    %34 = vector.load %arg6[%c1_24, %c0_25, %c0_26] : memref<4x64x64xf32, #tpu.memory_space<vmem>>, vector<1x64x64xf32>
    %35 = vector.shape_cast %34 : vector<1x64x64xf32> to vector<64x64xf32>
    %cst_27 = arith.constant dense<0.000000e+00> : vector<64x512xf32>
    %36 = tpu.matmul %35, %33, %cst_27 {dimension_numbers = #tpu.dot_dimension_numbers<[1], [0], [0], [1], [0, 0, 1, 1], [], []>} : vector<64x64xf32>, vector<64x512xf32>, vector<64x512xf32> -> vector<64x512xf32>
    %c1_28 = arith.constant 1 : index
    %c0_29 = arith.constant 0 : index
    %c0_30 = arith.constant 0 : index
    %37 = vector.load %arg7[%c1_28, %c0_29, %c0_30] : memref<4x64x1xf32, #tpu.memory_space<vmem>>, vector<1x64x1xf32>
    %38 = vector.shape_cast %37 : vector<1x64x1xf32> to vector<64x1xf32>
    %39 = vector.broadcast %38 : vector<64x1xf32> to vector<64x512xf32>
    %40 = arith.addf %36, %39 : vector<64x512xf32>
    %41 = arith.addf %25, %40 : vector<64x512xf32>
    %42 = math.tanh %41 : vector<64x512xf32>
    %c2 = arith.constant 2 : index
    %c0_31 = arith.constant 0 : index
    %c0_32 = arith.constant 0 : index
    %43 = vector.load %arg4[%c2, %c0_31, %c0_32] : memref<4x64x64xf32, #tpu.memory_space<vmem>>, vector<1x64x64xf32>
    %44 = vector.shape_cast %43 : vector<1x64x64xf32> to vector<64x64xf32>
    %cst_33 = arith.constant dense<0.000000e+00> : vector<64x512xf32>
    %45 = tpu.matmul %44, %42, %cst_33 {dimension_numbers = #tpu.dot_dimension_numbers<[1], [0], [0], [1], [0, 0, 1, 1], [], []>} : vector<64x64xf32>, vector<64x512xf32>, vector<64x512xf32> -> vector<64x512xf32>
    %c2_34 = arith.constant 2 : index
    %c0_35 = arith.constant 0 : index
    %c0_36 = arith.constant 0 : index
    %46 = vector.load %arg5[%c2_34, %c0_35, %c0_36] : memref<4x64x1xf32, #tpu.memory_space<vmem>>, vector<1x64x1xf32>
    %47 = vector.shape_cast %46 : vector<1x64x1xf32> to vector<64x1xf32>
    %48 = vector.broadcast %47 : vector<64x1xf32> to vector<64x512xf32>
    %49 = arith.addf %45, %48 : vector<64x512xf32>
    %50 = math.tanh %49 : vector<64x512xf32>
    %c2_37 = arith.constant 2 : index
    %c0_38 = arith.constant 0 : index
    %c0_39 = arith.constant 0 : index
    %51 = vector.load %arg6[%c2_37, %c0_38, %c0_39] : memref<4x64x64xf32, #tpu.memory_space<vmem>>, vector<1x64x64xf32>
    %52 = vector.shape_cast %51 : vector<1x64x64xf32> to vector<64x64xf32>
    %cst_40 = arith.constant dense<0.000000e+00> : vector<64x512xf32>
    %53 = tpu.matmul %52, %50, %cst_40 {dimension_numbers = #tpu.dot_dimension_numbers<[1], [0], [0], [1], [0, 0, 1, 1], [], []>} : vector<64x64xf32>, vector<64x512xf32>, vector<64x512xf32> -> vector<64x512xf32>
    %c2_41 = arith.constant 2 : index
    %c0_42 = arith.constant 0 : index
    %c0_43 = arith.constant 0 : index
    %54 = vector.load %arg7[%c2_41, %c0_42, %c0_43] : memref<4x64x1xf32, #tpu.memory_space<vmem>>, vector<1x64x1xf32>
    %55 = vector.shape_cast %54 : vector<1x64x1xf32> to vector<64x1xf32>
    %56 = vector.broadcast %55 : vector<64x1xf32> to vector<64x512xf32>
    %57 = arith.addf %53, %56 : vector<64x512xf32>
    %58 = arith.addf %42, %57 : vector<64x512xf32>
    %59 = math.tanh %58 : vector<64x512xf32>
    %c3 = arith.constant 3 : index
    %c0_44 = arith.constant 0 : index
    %c0_45 = arith.constant 0 : index
    %60 = vector.load %arg4[%c3, %c0_44, %c0_45] : memref<4x64x64xf32, #tpu.memory_space<vmem>>, vector<1x64x64xf32>
    %61 = vector.shape_cast %60 : vector<1x64x64xf32> to vector<64x64xf32>
    %cst_46 = arith.constant dense<0.000000e+00> : vector<64x512xf32>
    %62 = tpu.matmul %61, %59, %cst_46 {dimension_numbers = #tpu.dot_dimension_numbers<[1], [0], [0], [1], [0, 0, 1, 1], [], []>} : vector<64x64xf32>, vector<64x512xf32>, vector<64x512xf32> -> vector<64x512xf32>
    %c3_47 = arith.constant 3 : index
    %c0_48 = arith.constant 0 : index
    %c0_49 = arith.constant 0 : index
    %63 = vector.load %arg5[%c3_47, %c0_48, %c0_49] : memref<4x64x1xf32, #tpu.memory_space<vmem>>, vector<1x64x1xf32>
    %64 = vector.shape_cast %63 : vector<1x64x1xf32> to vector<64x1xf32>
    %65 = vector.broadcast %64 : vector<64x1xf32> to vector<64x512xf32>
    %66 = arith.addf %62, %65 : vector<64x512xf32>
    %67 = math.tanh %66 : vector<64x512xf32>
    %c3_50 = arith.constant 3 : index
    %c0_51 = arith.constant 0 : index
    %c0_52 = arith.constant 0 : index
    %68 = vector.load %arg6[%c3_50, %c0_51, %c0_52] : memref<4x64x64xf32, #tpu.memory_space<vmem>>, vector<1x64x64xf32>
    %69 = vector.shape_cast %68 : vector<1x64x64xf32> to vector<64x64xf32>
    %cst_53 = arith.constant dense<0.000000e+00> : vector<64x512xf32>
    %70 = tpu.matmul %69, %67, %cst_53 {dimension_numbers = #tpu.dot_dimension_numbers<[1], [0], [0], [1], [0, 0, 1, 1], [], []>} : vector<64x64xf32>, vector<64x512xf32>, vector<64x512xf32> -> vector<64x512xf32>
    %c3_54 = arith.constant 3 : index
    %c0_55 = arith.constant 0 : index
    %c0_56 = arith.constant 0 : index
    %71 = vector.load %arg7[%c3_54, %c0_55, %c0_56] : memref<4x64x1xf32, #tpu.memory_space<vmem>>, vector<1x64x1xf32>
    %72 = vector.shape_cast %71 : vector<1x64x1xf32> to vector<64x1xf32>
    %73 = vector.broadcast %72 : vector<64x1xf32> to vector<64x512xf32>
    %74 = arith.addf %70, %73 : vector<64x512xf32>
    %75 = arith.addf %59, %74 : vector<64x512xf32>
    %76 = math.tanh %75 : vector<64x512xf32>
    %c0_57 = arith.constant 0 : index
    %c0_58 = arith.constant 0 : index
    %77 = vector.load %arg8[%c0_57, %c0_58] : memref<16x64xf32, #tpu.memory_space<vmem>>, vector<16x64xf32>
    %cst_59 = arith.constant dense<0.000000e+00> : vector<16x512xf32>
    %78 = tpu.matmul %77, %76, %cst_59 {dimension_numbers = #tpu.dot_dimension_numbers<[1], [0], [0], [1], [0, 0, 1, 1], [], []>} : vector<16x64xf32>, vector<64x512xf32>, vector<16x512xf32> -> vector<16x512xf32>
    %c0_60 = arith.constant 0 : index
    %c0_61 = arith.constant 0 : index
    %79 = vector.load %arg9[%c0_60, %c0_61] : memref<16x1xf32, #tpu.memory_space<vmem>>, vector<16x1xf32>
    %80 = vector.broadcast %79 : vector<16x1xf32> to vector<16x512xf32>
    %81 = arith.addf %78, %80 : vector<16x512xf32>
    %c0_62 = arith.constant 0 : index
    %c0_63 = arith.constant 0 : index
    %82 = vector.load %arg10[%c0_62, %c0_63] : memref<16x512xf32, #tpu.memory_space<vmem>>, vector<16x512xf32>
    tpu.vector_store %arg10[%c0_62, %c0_63], %81 {strides = array<i32>} : memref<16x512xf32, #tpu.memory_space<vmem>>, vector<16x512xf32>,
    return
  }
  func.func @transform_0(%arg0: i32) -> (i32, i32) {
    %c0_i32 = arith.constant 0 : i32
    %c0_i32_0 = arith.constant 0 : i32
    return %c0_i32, %arg0 : i32, i32
  }
  func.func @transform_1(%arg0: i32) -> (i32, i32) {
    %c0_i32 = arith.constant 0 : i32
    %c0_i32_0 = arith.constant 0 : i32
    %c0_i32_1 = arith.constant 0 : i32
    return %c0_i32, %c0_i32_0 : i32, i32
  }
  func.func @transform_2(%arg0: i32) -> (i32, i32) {
    %c0_i32 = arith.constant 0 : i32
    %c0_i32_0 = arith.constant 0 : i32
    %c0_i32_1 = arith.constant 0 : i32
    return %c0_i32, %c0_i32_0 : i32, i32
  }
  func.func @transform_3(%arg0: i32) -> (i32, i32, i32) {
    %c0_i32 = arith.constant 0 : i32
    %c0_i32_0 = arith.constant 0 : i32
    %c0_i32_1 = arith.constant 0 : i32
    %c0_i32_2 = arith.constant 0 : i32
    return %c0_i32, %c0_i32_0, %c0_i32_1 : i32, i32, i32
  }
  func.func @transform_4(%arg0: i32) -> (i32, i32, i32) {
    %c0_i32 = arith.constant 0 : i32
    %c0_i32_0 = arith.constant 0 : i32
    %c0_i32_1 = arith.constant 0 : i32
    %c0_i32_2 = arith.constant 0 : i32
    return %c0_i32, %c0_i32_0, %c0_i32_1 : i32, i32, i32
  }
  func.func @transform_5(%arg0: i32) -> (i32, i32, i32) {
    %c0_i32 = arith.constant 0 : i32
    %c0_i32_0 = arith.constant 0 : i32
    %c0_i32_1 = arith.constant 0 : i32
    %c0_i32_2 = arith.constant 0 : i32
    return %c0_i32, %c0_i32_0, %c0_i32_1 : i32, i32, i32
  }
  func.func @transform_6(%arg0: i32) -> (i32, i32, i32) {
    %c0_i32 = arith.constant 0 : i32
    %c0_i32_0 = arith.constant 0 : i32
    %c0_i32_1 = arith.constant 0 : i32
    %c0_i32_2 = arith.constant 0 : i32
    return %c0_i32, %c0_i32_0, %c0_i32_1 : i32, i32, i32
  }
  func.func @transform_7(%arg0: i32) -> (i32, i32) {
    %c0_i32 = arith.constant 0 : i32
    %c0_i32_0 = arith.constant 0 : i32
    %c0_i32_1 = arith.constant 0 : i32
    return %c0_i32, %c0_i32_0 : i32, i32
  }
  func.func @transform_8(%arg0: i32) -> (i32, i32) {
    %c0_i32 = arith.constant 0 : i32
    %c0_i32_0 = arith.constant 0 : i32
    %c0_i32_1 = arith.constant 0 : i32
    return %c0_i32, %c0_i32_0 : i32, i32
  }
  func.func @transform_9(%arg0: i32) -> (i32, i32) {
    %c0_i32 = arith.constant 0 : i32
    %c0_i32_0 = arith.constant 0 : i32
    return %c0_i32, %arg0 : i32, i32
  }
}

</mosaic_0001>

<llo_original>
// kernel: tpu_custom_call.1
$region0: #{tpu_custom_call.1}
  #allocation0 [shape = 'u32[]', space=smem, size = 0x4, offset = 0x4, fixed_abs, tag = 'smem constant byte address 0x4 - core index']
  #allocation1 [shape = 'u32[144,128]{1,0:T(1,128)}', space=vmem, size = 0x12000, scoped, tag = 'internal scratch']
  %s0 = inlined_call_operand.vmem [shape: f32[1,512], index: 0, kind: input, shape index: {}]
  %s1 = inlined_call_operand.vmem [shape: f32[64,1], index: 1, kind: input, shape index: {}]
  %s2 = inlined_call_operand.vmem [shape: f32[64,1], index: 2, kind: input, shape index: {}]
  %s3 = inlined_call_operand.vmem [shape: f32[4,64,64], index: 3, kind: input, shape index: {}]
  %s4 = inlined_call_operand.vmem [shape: f32[4,64,1], index: 4, kind: input, shape index: {}]
  %s5 = inlined_call_operand.vmem [shape: f32[4,64,64], index: 5, kind: input, shape index: {}]
  %s6 = inlined_call_operand.vmem [shape: f32[4,64,1], index: 6, kind: input, shape index: {}]
  %s7 = inlined_call_operand.vmem [shape: f32[16,64], index: 7, kind: input, shape index: {}]
  %s8 = inlined_call_operand.vmem [shape: f32[16,1], index: 8, kind: input, shape index: {}]
  %s9 = inlined_call_operand.hbm [shape: f32[16,512], index: 9, kind: output, shape index: {}]
  %s10 = sld [smem:[#allocation0]]
  $region46: #{tpu_custom_call.1} parent=0
    _
  %s12 = ssub.s32 1, %s10
  %s13 = scalar_select 0, %s12, %s10
  $region1: #{tpu_custom_call.1} parent=0
    #allocation2 [shape = 'u8[32768]{0}', space=vmem, size = 0x8000, scoped, tag = 'output window, operand 0, single buffered']
    #allocation3 [shape = 's32[1]{0}', space=sflag, size = 0x4, scoped, tag = 'scoped memory for tpu_custom_call.1']
    %14 = vsyncpa [#allocation3], 0
    // Predicated region
    $region2: #{tpu_custom_call.1} parent=1 // pred_check
      _
    $region3: #{tpu_custom_call.1} parent=1 // pred_check_branch
      %16 = sbr.rel (0) target = $region5
    $region4: #{tpu_custom_call.1} parent=1 // pred_region
      _
    $region5: #{tpu_custom_call.1} parent=1 // pred_fallthru
      _
    // Predicated region
    $region6: #{tpu_custom_call.1} parent=1 // pred_check
      _
    $region7: #{tpu_custom_call.1} parent=1 // pred_check_branch
      %18 = sbr.rel (0) target = $region9
    $region8: #{tpu_custom_call.1} parent=1 // pred_region
      _
    $region9: #{tpu_custom_call.1} parent=1 // pred_fallthru
      _
    // Predicated region
    $region10: #{tpu_custom_call.1} parent=1 // pred_check
      _
    $region11: #{tpu_custom_call.1} parent=1 // pred_check_branch
      %20 = sbr.rel (0) target = $region13
    $region12: #{tpu_custom_call.1} parent=1 // pred_region
      _
    $region13: #{tpu_custom_call.1} parent=1 // pred_fallthru
      _
    // Predicated region
    $region14: #{tpu_custom_call.1} parent=1 // pred_check
      _
    $region15: #{tpu_custom_call.1} parent=1 // pred_check_branch
      %22 = sbr.rel (0) target = $region17
    $region16: #{tpu_custom_call.1} parent=1 // pred_region
      _
    $region17: #{tpu_custom_call.1} parent=1 // pred_fallthru
      _
    // Predicated region
    $region18: #{tpu_custom_call.1} parent=1 // pred_check
      _
    $region19: #{tpu_custom_call.1} parent=1 // pred_check_branch
      %24 = sbr.rel (0) target = $region21
    $region20: #{tpu_custom_call.1} parent=1 // pred_region
      _
    $region21: #{tpu_custom_call.1} parent=1 // pred_fallthru
      _
    // Predicated region
    $region22: #{tpu_custom_call.1} parent=1 // pred_check
      _
    $region23: #{tpu_custom_call.1} parent=1 // pred_check_branch
      %26 = sbr.rel (0) target = $region25
    $region24: #{tpu_custom_call.1} parent=1 // pred_region
      _
    $region25: #{tpu_custom_call.1} parent=1 // pred_fallthru
      _
    // Predicated region
    $region26: #{tpu_custom_call.1} parent=1 // pred_check
      _
    $region27: #{tpu_custom_call.1} parent=1 // pred_check_branch
      %28 = sbr.rel (0) target = $region29
    $region28: #{tpu_custom_call.1} parent=1 // pred_region
      _
    $region29: #{tpu_custom_call.1} parent=1 // pred_fallthru
      _
    // Predicated region
    $region30: #{tpu_custom_call.1} parent=1 // pred_check
      _
    $region31: #{tpu_custom_call.1} parent=1 // pred_check_branch
      %30 = sbr.rel (0) target = $region33
    $region32: #{tpu_custom_call.1} parent=1 // pred_region
      _
    $region33: #{tpu_custom_call.1} parent=1 // pred_fallthru
      _
    // Predicated region
    $region34: #{tpu_custom_call.1} parent=1 // pred_check
      _
    $region35: #{tpu_custom_call.1} parent=1 // pred_check_branch
      %32 = sbr.rel (0) target = $region37
    $region36: #{tpu_custom_call.1} parent=1 // pred_region
      _
    $region37: #{tpu_custom_call.1} parent=1 // pred_fallthru
      _
    %v33 = vld [vmem:[%s0] sm:$0xf]
    %v34 = vld [vmem:[%s1] sm:$0xff]
    %v35 = vld [vmem:[%s1 + $0x8] sm:$0xff]
    %v36 = vld [vmem:[%s1 + $0x10] sm:$0xff]
    %v37 = vld [vmem:[%s1 + $0x18] sm:$0xff]
    %v38 = vld [vmem:[%s1 + $0x20] sm:$0xff]
    %v39 = vld [vmem:[%s1 + $0x28] sm:$0xff]
    %v40 = vld [vmem:[%s1 + $0x30] sm:$0xff]
    %v41 = vld [vmem:[%s1 + $0x38] sm:$0xff]
    %43 = vset.pattern.permute.xlu0 0
    %44 = vperm.xlu0 %43, %v34
    %v45 = vpop.permute.xlu0 %44
    %48 = vset.pattern.permute.xlu0 0
    %49 = vperm.xlu0 %48, %v35
    %v50 = vpop.permute.xlu0 %49
    %53 = vset.pattern.permute.xlu0 0
    %54 = vperm.xlu0 %53, %v36
    %v55 = vpop.permute.xlu0 %54
    %58 = vset.pattern.permute.xlu0 0
    %59 = vperm.xlu0 %58, %v37
    %v60 = vpop.permute.xlu0 %59
    %63 = vset.pattern.permute.xlu0 0
    %64 = vperm.xlu0 %63, %v38
    %v65 = vpop.permute.xlu0 %64
    %68 = vset.pattern.permute.xlu0 0
    %69 = vperm.xlu0 %68, %v39
    %v70 = vpop.permute.xlu0 %69
    %73 = vset.pattern.permute.xlu0 0
    %74 = vperm.xlu0 %73, %v40
    %v75 = vpop.permute.xlu0 %74
    %78 = vset.pattern.permute.xlu0 0
    %79 = vperm.xlu0 %78, %v41
    %v80 = vpop.permute.xlu0 %79
    %v83 = vlaneseq
    %v84 = vshrl.u32 %v83, 7
    %v85 = vsub.s32 0, %v84
    %v86 = vrot.slane %v33, %v85
    %v87 = vlaneseq
    %v88 = vshrl.u32 %v87, 7
    %v89 = vsub.s32 1, %v88
    %v90 = vrot.slane %v33, %v89
    %v91 = vlaneseq
    %v92 = vshrl.u32 %v91, 7
    %v93 = vsub.s32 2, %v92
    %v94 = vrot.slane %v33, %v93
    %v95 = vlaneseq
    %v96 = vshrl.u32 %v95, 7
    %v97 = vsub.s32 3, %v96
    %v98 = vrot.slane %v33, %v97
    %v103 = vmul.f32 %v45, %v86
    %v104 = vmul.f32 %v45, %v90
    %v105 = vmul.f32 %v45, %v94
    %v106 = vmul.f32 %v45, %v98
    %v107 = vmul.f32 %v50, %v86
    %v108 = vmul.f32 %v50, %v90
    %v109 = vmul.f32 %v50, %v94
    %v110 = vmul.f32 %v50, %v98
    %v111 = vmul.f32 %v55, %v86
    %v112 = vmul.f32 %v55, %v90
    %v113 = vmul.f32 %v55, %v94
    %v114 = vmul.f32 %v55, %v98
    %v115 = vmul.f32 %v60, %v86
    %v116 = vmul.f32 %v60, %v90
    %v117 = vmul.f32 %v60, %v94
    %v118 = vmul.f32 %v60, %v98
    %v119 = vmul.f32 %v65, %v86
    %v120 = vmul.f32 %v65, %v90
    %v121 = vmul.f32 %v65, %v94
    %v122 = vmul.f32 %v65, %v98
    %v123 = vmul.f32 %v70, %v86
    %v124 = vmul.f32 %v70, %v90
    %v125 = vmul.f32 %v70, %v94
    %v126 = vmul.f32 %v70, %v98
    %v127 = vmul.f32 %v75, %v86
    %v128 = vmul.f32 %v75, %v90
    %v129 = vmul.f32 %v75, %v94
    %v130 = vmul.f32 %v75, %v98
    %v131 = vmul.f32 %v80, %v86
    %v132 = vmul.f32 %v80, %v90
    %v133 = vmul.f32 %v80, %v94
    %v134 = vmul.f32 %v80, %v98
    %v135 = vld [vmem:[%s2] sm:$0xff]
    %v136 = vld [vmem:[%s2 + $0x8] sm:$0xff]
    %v137 = vld [vmem:[%s2 + $0x10] sm:$0xff]
    %v138 = vld [vmem:[%s2 + $0x18] sm:$0xff]
    %v139 = vld [vmem:[%s2 + $0x20] sm:$0xff]
    %v140 = vld [vmem:[%s2 + $0x28] sm:$0xff]
    %v141 = vld [vmem:[%s2 + $0x30] sm:$0xff]
    %v142 = vld [vmem:[%s2 + $0x38] sm:$0xff]
    %144 = vset.pattern.permute.xlu0 0
    %145 = vperm.xlu0 %144, %v135
    %v146 = vpop.permute.xlu0 %145
    %149 = vset.pattern.permute.xlu0 0
    %150 = vperm.xlu0 %149, %v136
    %v151 = vpop.permute.xlu0 %150
    %154 = vset.pattern.permute.xlu0 0
    %155 = vperm.xlu0 %154, %v137
    %v156 = vpop.permute.xlu0 %155
    %159 = vset.pattern.permute.xlu0 0
    %160 = vperm.xlu0 %159, %v138
    %v161 = vpop.permute.xlu0 %160
    %164 = vset.pattern.permute.xlu0 0
    %165 = vperm.xlu0 %164, %v139
    %v166 = vpop.permute.xlu0 %165
    %169 = vset.pattern.permute.xlu0 0
    %170 = vperm.xlu0 %169, %v140
    %v171 = vpop.permute.xlu0 %170
    %174 = vset.pattern.permute.xlu0 0
    %175 = vperm.xlu0 %174, %v141
    %v176 = vpop.permute.xlu0 %175
    %179 = vset.pattern.permute.xlu0 0
    %180 = vperm.xlu0 %179, %v142
    %v181 = vpop.permute.xlu0 %180
    %v183 = vadd.f32 %v103, %v146
    %v184 = vadd.f32 %v104, %v146
    %v185 = vadd.f32 %v105, %v146
    %v186 = vadd.f32 %v106, %v146
    %v187 = vadd.f32 %v107, %v151
    %v188 = vadd.f32 %v108, %v151
    %v189 = vadd.f32 %v109, %v151
    %v190 = vadd.f32 %v110, %v151
    %v191 = vadd.f32 %v111, %v156
    %v192 = vadd.f32 %v112, %v156
    %v193 = vadd.f32 %v113, %v156
    %v194 = vadd.f32 %v114, %v156
    %v195 = vadd.f32 %v115, %v161
    %v196 = vadd.f32 %v116, %v161
    %v197 = vadd.f32 %v117, %v161
    %v198 = vadd.f32 %v118, %v161
    %v199 = vadd.f32 %v119, %v166
    %v200 = vadd.f32 %v120, %v166
    %v201 = vadd.f32 %v121, %v166
    %v202 = vadd.f32 %v122, %v166
    %v203 = vadd.f32 %v123, %v171
    %v204 = vadd.f32 %v124, %v171
    %v205 = vadd.f32 %v125, %v171
    %v206 = vadd.f32 %v126, %v171
    %v207 = vadd.f32 %v127, %v176
    %v208 = vadd.f32 %v128, %v176
    %v209 = vadd.f32 %v129, %v176
    %v210 = vadd.f32 %v130, %v176
    %v211 = vadd.f32 %v131, %v181
    %v212 = vadd.f32 %v132, %v181
    %v213 = vadd.f32 %v133, %v181
    %v214 = vadd.f32 %v134, %v181
    %v215 = vtanh.pop %v183
    %v216 = vtanh.pop %v184
    %v217 = vtanh.pop %v185
    %v218 = vtanh.pop %v186
    %v219 = vtanh.pop %v187
    %v220 = vtanh.pop %v188
    %v221 = vtanh.pop %v189
    %v222 = vtanh.pop %v190
    %v223 = vtanh.pop %v191
    %v224 = vtanh.pop %v192
    %v225 = vtanh.pop %v193
    %v226 = vtanh.pop %v194
    %v227 = vtanh.pop %v195
    %v228 = vtanh.pop %v196
    %v229 = vtanh.pop %v197
    %v230 = vtanh.pop %v198
    %v231 = vtanh.pop %v199
    %v232 = vtanh.pop %v200
    %v233 = vtanh.pop %v201
    %v234 = vtanh.pop %v202
    %v235 = vtanh.pop %v203
    %v236 = vtanh.pop %v204
    %v237 = vtanh.pop %v205
    %v238 = vtanh.pop %v206
    %v239 = vtanh.pop %v207
    %v240 = vtanh.pop %v208
    %v241 = vtanh.pop %v209
    %v242 = vtanh.pop %v210
    %v243 = vtanh.pop %v211
    %v244 = vtanh.pop %v212
    %v245 = vtanh.pop %v213
    %v246 = vtanh.pop %v214
    %v247 = vld [vmem:[%s3] sm:$0xff]
    %v248 = vld [vmem:[%s3 + $0x8] sm:$0xff]
    %v249 = vld [vmem:[%s3 + $0x10] sm:$0xff]
    %v250 = vld [vmem:[%s3 + $0x18] sm:$0xff]
    %v251 = vld [vmem:[%s3 + $0x20] sm:$0xff]
    %v252 = vld [vmem:[%s3 + $0x28] sm:$0xff]
    %v253 = vld [vmem:[%s3 + $0x30] sm:$0xff]
    %v254 = vld [vmem:[%s3 + $0x38] sm:$0xff]
    %v255 = vld [vmem:[%s4] sm:$0xff]
    %v256 = vld [vmem:[%s4 + $0x8] sm:$0xff]
    %v257 = vld [vmem:[%s4 + $0x10] sm:$0xff]
    %v258 = vld [vmem:[%s4 + $0x18] sm:$0xff]
    %v259 = vld [vmem:[%s4 + $0x20] sm:$0xff]
    %v260 = vld [vmem:[%s4 + $0x28] sm:$0xff]
    %v261 = vld [vmem:[%s4 + $0x30] sm:$0xff]
    %v262 = vld [vmem:[%s4 + $0x38] sm:$0xff]
    %264 = vset.pattern.permute.xlu0 0
    %265 = vperm.xlu0 %264, %v255
    %v266 = vpop.permute.xlu0 %265
    %269 = vset.pattern.permute.xlu0 0
    %270 = vperm.xlu0 %269, %v256
    %v271 = vpop.permute.xlu0 %270
    %274 = vset.pattern.permute.xlu0 0
    %275 = vperm.xlu0 %274, %v257
    %v276 = vpop.permute.xlu0 %275
    %279 = vset.pattern.permute.xlu0 0
    %280 = vperm.xlu0 %279, %v258
    %v281 = vpop.permute.xlu0 %280
    %284 = vset.pattern.permute.xlu0 0
    %285 = vperm.xlu0 %284, %v259
    %v286 = vpop.permute.xlu0 %285
    %289 = vset.pattern.permute.xlu0 0
    %290 = vperm.xlu0 %289, %v260
    %v291 = vpop.permute.xlu0 %290
    %294 = vset.pattern.permute.xlu0 0
    %295 = vperm.xlu0 %294, %v261
    %v296 = vpop.permute.xlu0 %295
    %299 = vset.pattern.permute.xlu0 0
    %300 = vperm.xlu0 %299, %v262
    %v301 = vpop.permute.xlu0 %300
    %vm303 = vcmask 523264
    %v305 = vsel %vm303, %v247, 0
    %v308 = vsel %vm303, %v248, 0
    %v311 = vsel %vm303, %v249, 0
    %v314 = vsel %vm303, %v250, 0
    %v317 = vsel %vm303, %v251, 0
    %v320 = vsel %vm303, %v252, 0
    %v323 = vsel %vm303, %v253, 0
    %v326 = vsel %vm303, %v254, 0
    %328 = vmatprep.subr.mxu0 %v216
    %329 = vmatpush1.msra.mxu0 %v215
    %330 = vmatprep.subr.mxu0 %v220
    %331 = vmatpush1.msra.mxu0 %v219
    %332 = vmatprep.subr.mxu0 %v224
    %333 = vmatpush1.msra.mxu0 %v223
    %334 = vmatprep.subr.mxu0 %v228
    %335 = vmatpush1.msra.mxu0 %v227
    %336 = vmatprep.subr.mxu0 %v232
    %337 = vmatpush1.msra.mxu0 %v231
    %338 = vmatprep.subr.mxu0 %v236
    %339 = vmatpush1.msra.mxu0 %v235
    %340 = vmatprep.subr.mxu0 %v240
    %341 = vmatpush1.msra.mxu0 %v239
    %342 = vmatprep.subr.mxu0 %v244
    %343 = vmatpush1.msra.mxu0 %v243
    %344 = vmatprep.subr.mxu0 0.0
    %345 = vmatpush1.msra.mxu0 0.0
    %346 = vmatprep.subr.mxu0 0.0
    %347 = vmatpush1.msra.mxu0 0.0
    %348 = vmatprep.subr.mxu0 0.0
    %349 = vmatpush1.msra.mxu0 0.0
    %350 = vmatprep.subr.mxu0 0.0
    %351 = vmatpush1.msra.mxu0 0.0
    %352 = vmatprep.subr.mxu0 0.0
    %353 = vmatpush1.msra.mxu0 0.0
    %354 = vmatprep.subr.mxu0 0.0
    %355 = vmatpush1.msra.mxu0 0.0
    %356 = vmatprep.subr.mxu0 0.0
    %357 = vmatpush1.msra.mxu0 0.0
    %358 = vmatprep.subr.mxu0 0.0
    %359 = vmatpush1.msra.mxu0 0.0
    %360 = vmatprep.subr.mxu0 0.0
    %361 = vmatpush1.msra.mxu0 0.0
    %362 = vmatprep.subr.mxu0 0.0
    %363 = vmatpush1.msra.mxu0 0.0
    %364 = vmatprep.subr.mxu0 0.0
    %365 = vmatpush1.msra.mxu0 0.0
    %366 = vmatprep.subr.mxu0 0.0
    %367 = vmatpush1.msra.mxu0 0.0
    %368 = vmatprep.subr.mxu0 0.0
    %369 = vmatpush1.msra.mxu0 0.0
    %370 = vmatprep.subr.mxu0 0.0
    %371 = vmatpush1.msra.mxu0 0.0
    %372 = vmatprep.subr.mxu0 0.0
    %373 = vmatpush1.msra.mxu0 0.0
    %374 = vmatprep.subr.mxu0 0.0
    %375 = vmatpush1.msra.mxu0 0.0
    %376 = vmatprep.subr.mxu0 0.0
    %377 = vmatpush1.msra.mxu0 0.0
    %378 = vmatprep.subr.mxu0 0.0
    %379 = vmatpush1.msra.mxu0 0.0
    %380 = vmatprep.subr.mxu0 0.0
    %381 = vmatpush1.msra.mxu0 0.0
    %382 = vmatprep.subr.mxu0 0.0
    %383 = vmatpush1.msra.mxu0 0.0
    %384 = vmatprep.subr.mxu0 0.0
    %385 = vmatpush1.msra.mxu0 0.0
    %386 = vmatprep.subr.mxu0 0.0
    %387 = vmatpush1.msra.mxu0 0.0
    %388 = vmatprep.subr.mxu0 0.0
    %389 = vmatpush1.msra.mxu0 0.0
    %390 = vmatprep.subr.mxu0 0.0
    %391 = vmatpush1.msra.mxu0 0.0
    %392 = vmatprep.mubr.f32.mxu0 0.0
    %393 = vmatmul.mubr.f32.gmra.mrb[0].mxu0 %v305
    %v394 = vpop.f32.mrb[0].mxu0
    %v395 = vadd.f32 %v266, %v394
    %v396 = vpop.f32.mrb[0].mxu0
    %v397 = vadd.f32 %v266, %v396
    %398 = vmatprep.mubr.f32.mxu0 0.0
    %399 = vmatmul.mubr.f32.gmra.mrb[0].mxu0 %v308
    %v400 = vpop.f32.mrb[0].mxu0
    %v401 = vadd.f32 %v271, %v400
    %v402 = vpop.f32.mrb[0].mxu0
    %v403 = vadd.f32 %v271, %v402
    %404 = vmatprep.mubr.f32.mxu0 0.0
    %405 = vmatmul.mubr.f32.gmra.mrb[0].mxu0 %v311
    %v406 = vpop.f32.mrb[0].mxu0
    %v407 = vadd.f32 %v276, %v406
    %v408 = vpop.f32.mrb[0].mxu0
    %v409 = vadd.f32 %v276, %v408
    %410 = vmatprep.mubr.f32.mxu0 0.0
    %411 = vmatmul.mubr.f32.gmra.mrb[0].mxu0 %v314
    %v412 = vpop.f32.mrb[0].mxu0
    %v413 = vadd.f32 %v281, %v412
    %v414 = vpop.f32.mrb[0].mxu0
    %v415 = vadd.f32 %v281, %v414
    %416 = vmatprep.mubr.f32.mxu0 0.0
    %417 = vmatmul.mubr.f32.gmra.mrb[0].mxu0 %v317
    %v418 = vpop.f32.mrb[0].mxu0
    %v419 = vadd.f32 %v286, %v418
    %v420 = vpop.f32.mrb[0].mxu0
    %v421 = vadd.f32 %v286, %v420
    %422 = vmatprep.mubr.f32.mxu0 0.0
    %423 = vmatmul.mubr.f32.gmra.mrb[0].mxu0 %v320
    %v424 = vpop.f32.mrb[0].mxu0
    %v425 = vadd.f32 %v291, %v424
    %v426 = vpop.f32.mrb[0].mxu0
    %v427 = vadd.f32 %v291, %v426
    %428 = vmatprep.mubr.f32.mxu0 0.0
    %429 = vmatmul.mubr.f32.gmra.mrb[0].mxu0 %v323
    %v430 = vpop.f32.mrb[0].mxu0
    %v431 = vadd.f32 %v296, %v430
    %v432 = vpop.f32.mrb[0].mxu0
    %v433 = vadd.f32 %v296, %v432
    %434 = vmatprep.mubr.f32.mxu0 0.0
    %435 = vmatmul.mubr.f32.gmra.mrb[0].mxu0 %v326
    %v436 = vpop.f32.mrb[0].mxu0
    %v437 = vadd.f32 %v301, %v436
    %v438 = vpop.f32.mrb[0].mxu0
    %v439 = vadd.f32 %v301, %v438
    %440 = vdwg.mxu0
    %441 = vmatprep.subr.mxu0 %v218
    %442 = vmatpush1.msra.mxu0 %v217
    %443 = vmatprep.subr.mxu0 %v222
    %444 = vmatpush1.msra.mxu0 %v221
    %445 = vmatprep.subr.mxu0 %v226
    %446 = vmatpush1.msra.mxu0 %v225
    %447 = vmatprep.subr.mxu0 %v230
    %448 = vmatpush1.msra.mxu0 %v229
    %449 = vmatprep.subr.mxu0 %v234
    %450 = vmatpush1.msra.mxu0 %v233
    %451 = vmatprep.subr.mxu0 %v238
    %452 = vmatpush1.msra.mxu0 %v237
    %453 = vmatprep.subr.mxu0 %v242
    %454 = vmatpush1.msra.mxu0 %v241
    %455 = vmatprep.subr.mxu0 %v246
    %456 = vmatpush1.msra.mxu0 %v245
    %457 = vmatprep.subr.mxu0 0.0
    %458 = vmatpush1.msra.mxu0 0.0
    %459 = vmatprep.subr.mxu0 0.0
    %460 = vmatpush1.msra.mxu0 0.0
    %461 = vmatprep.subr.mxu0 0.0
    %462 = vmatpush1.msra.mxu0 0.0
    %463 = vmatprep.subr.mxu0 0.0
    %464 = vmatpush1.msra.mxu0 0.0
    %465 = vmatprep.subr.mxu0 0.0
    %466 = vmatpush1.msra.mxu0 0.0
    %467 = vmatprep.subr.mxu0 0.0
    %468 = vmatpush1.msra.mxu0 0.0
    %469 = vmatprep.subr.mxu0 0.0
    %470 = vmatpush1.msra.mxu0 0.0
    %471 = vmatprep.subr.mxu0 0.0
    %472 = vmatpush1.msra.mxu0 0.0
    %473 = vmatprep.subr.mxu0 0.0
    %474 = vmatpush1.msra.mxu0 0.0
    %475 = vmatprep.subr.mxu0 0.0
    %476 = vmatpush1.msra.mxu0 0.0
    %477 = vmatprep.subr.mxu0 0.0
    %478 = vmatpush1.msra.mxu0 0.0
    %479 = vmatprep.subr.mxu0 0.0
    %480 = vmatpush1.msra.mxu0 0.0
    %481 = vmatprep.subr.mxu0 0.0
    %482 = vmatpush1.msra.mxu0 0.0
    %483 = vmatprep.subr.mxu0 0.0
    %484 = vmatpush1.msra.mxu0 0.0
    %485 = vmatprep.subr.mxu0 0.0
    %486 = vmatpush1.msra.mxu0 0.0
    %487 = vmatprep.subr.mxu0 0.0
    %488 = vmatpush1.msra.mxu0 0.0
    %489 = vmatprep.subr.mxu0 0.0
    %490 = vmatpush1.msra.mxu0 0.0
    %491 = vmatprep.subr.mxu0 0.0
    %492 = vmatpush1.msra.mxu0 0.0
    %493 = vmatprep.subr.mxu0 0.0
    %494 = vmatpush1.msra.mxu0 0.0
    %495 = vmatprep.subr.mxu0 0.0
    %496 = vmatpush1.msra.mxu0 0.0
    %497 = vmatprep.subr.mxu0 0.0
    %498 = vmatpush1.msra.mxu0 0.0
    %499 = vmatprep.subr.mxu0 0.0
    %500 = vmatpush1.msra.mxu0 0.0
    %501 = vmatprep.subr.mxu0 0.0
    %502 = vmatpush1.msra.mxu0 0.0
    %503 = vmatprep.subr.mxu0 0.0
    %504 = vmatpush1.msra.mxu0 0.0
    %505 = vmatprep.mubr.f32.mxu0 0.0
    %506 = vmatmul.mubr.f32.gmra.mrb[0].mxu0 %v305
    %v507 = vpop.f32.mrb[0].mxu0
    %v508 = vadd.f32 %v266, %v507
    %v509 = vpop.f32.mrb[0].mxu0
    %v510 = vadd.f32 %v266, %v509
    %511 = vmatprep.mubr.f32.mxu0 0.0
    %512 = vmatmul.mubr.f32.gmra.mrb[0].mxu0 %v308
    %v513 = vpop.f32.mrb[0].mxu0
    %v514 = vadd.f32 %v271, %v513
    %v515 = vpop.f32.mrb[0].mxu0
    %v516 = vadd.f32 %v271, %v515
    %517 = vmatprep.mubr.f32.mxu0 0.0
    %518 = vmatmul.mubr.f32.gmra.mrb[0].mxu0 %v311
    %v519 = vpop.f32.mrb[0].mxu0
    %v520 = vadd.f32 %v276, %v519
    %v521 = vpop.f32.mrb[0].mxu0
    %v522 = vadd.f32 %v276, %v521
    %523 = vmatprep.mubr.f32.mxu0 0.0
    %524 = vmatmul.mubr.f32.gmra.mrb[0].mxu0 %v314
    %v525 = vpop.f32.mrb[0].mxu0
    %v526 = vadd.f32 %v281, %v525
    %v527 = vpop.f32.mrb[0].mxu0
    %v528 = vadd.f32 %v281, %v527
    %529 = vmatprep.mubr.f32.mxu0 0.0
    %530 = vmatmul.mubr.f32.gmra.mrb[0].mxu0 %v317
    %v531 = vpop.f32.mrb[0].mxu0
    %v532 = vadd.f32 %v286, %v531
    %v533 = vpop.f32.mrb[0].mxu0
    %v534 = vadd.f32 %v286, %v533
    %535 = vmatprep.mubr.f32.mxu0 0.0
    %536 = vmatmul.mubr.f32.gmra.mrb[0].mxu0 %v320
    %v537 = vpop.f32.mrb[0].mxu0
    %v538 = vadd.f32 %v291, %v537
    %v539 = vpop.f32.mrb[0].mxu0
    %v540 = vadd.f32 %v291, %v539
    %541 = vmatprep.mubr.f32.mxu0 0.0
    %542 = vmatmul.mubr.f32.gmra.mrb[0].mxu0 %v323
    %v543 = vpop.f32.mrb[0].mxu0
    %v544 = vadd.f32 %v296, %v543
    %v545 = vpop.f32.mrb[0].mxu0
    %v546 = vadd.f32 %v296, %v545
    %547 = vmatprep.mubr.f32.mxu0 0.0
    %548 = vmatmul.mubr.f32.gmra.mrb[0].mxu0 %v326
    %v549 = vpop.f32.mrb[0].mxu0
    %v550 = vadd.f32 %v301, %v549
    %v551 = vpop.f32.mrb[0].mxu0
    %v552 = vadd.f32 %v301, %v551
    %553 = vdwg.mxu0
    %v554 = vtanh.pop %v395
    %v555 = vtanh.pop %v397
    %v556 = vtanh.pop %v508
    %v557 = vtanh.pop %v510
    %v558 = vtanh.pop %v401
    %v559 = vtanh.pop %v403
    %v560 = vtanh.pop %v514
    %v561 = vtanh.pop %v516
    %v562 = vtanh.pop %v407
    %v563 = vtanh.pop %v409
    %v564 = vtanh.pop %v520
    %v565 = vtanh.pop %v522
    %v566 = vtanh.pop %v413
    %v567 = vtanh.pop %v415
    %v568 = vtanh.pop %v526
    %v569 = vtanh.pop %v528
    %v570 = vtanh.pop %v419
    %v571 = vtanh.pop %v421
    %v572 = vtanh.pop %v532
    %v573 = vtanh.pop %v534
    %v574 = vtanh.pop %v425
    %v575 = vtanh.pop %v427
    %v576 = vtanh.pop %v538
    %v577 = vtanh.pop %v540
    %v578 = vtanh.pop %v431
    %v579 = vtanh.pop %v433
    %v580 = vtanh.pop %v544
    %v581 = vtanh.pop %v546
    %v582 = vtanh.pop %v437
    %v583 = vtanh.pop %v439
    %v584 = vtanh.pop %v550
    %v585 = vtanh.pop %v552
    %v586 = vld [vmem:[%s5] sm:$0xff]
    %v587 = vld [vmem:[%s5 + $0x8] sm:$0xff]
    %v588 = vld [vmem:[%s5 + $0x10] sm:$0xff]
    %v589 = vld [vmem:[%s5 + $0x18] sm:$0xff]
    %v590 = vld [vmem:[%s5 + $0x20] sm:$0xff]
    %v591 = vld [vmem:[%s5 + $0x28] sm:$0xff]
    %v592 = vld [vmem:[%s5 + $0x30] sm:$0xff]
    %v593 = vld [vmem:[%s5 + $0x38] sm:$0xff]
    %v594 = vld [vmem:[%s6] sm:$0xff]
    %v595 = vld [vmem:[%s6 + $0x8] sm:$0xff]
    %v596 = vld [vmem:[%s6 + $0x10] sm:$0xff]
    %v597 = vld [vmem:[%s6 + $0x18] sm:$0xff]
    %v598 = vld [vmem:[%s6 + $0x20] sm:$0xff]
    %v599 = vld [vmem:[%s6 + $0x28] sm:$0xff]
    %v600 = vld [vmem:[%s6 + $0x30] sm:$0xff]
    %v601 = vld [vmem:[%s6 + $0x38] sm:$0xff]
    %603 = vset.pattern.permute.xlu0 0
    %604 = vperm.xlu0 %603, %v594
    %v605 = vpop.permute.xlu0 %604
    %608 = vset.pattern.permute.xlu0 0
    %609 = vperm.xlu0 %608, %v595
    %v610 = vpop.permute.xlu0 %609
    %613 = vset.pattern.permute.xlu0 0
    %614 = vperm.xlu0 %613, %v596
    %v615 = vpop.permute.xlu0 %614
    %618 = vset.pattern.permute.xlu0 0
    %619 = vperm.xlu0 %618, %v597
    %v620 = vpop.permute.xlu0 %619
    %623 = vset.pattern.permute.xlu0 0
    %624 = vperm.xlu0 %623, %v598
    %v625 = vpop.permute.xlu0 %624
    %628 = vset.pattern.permute.xlu0 0
    %629 = vperm.xlu0 %628, %v599
    %v630 = vpop.permute.xlu0 %629
    %633 = vset.pattern.permute.xlu0 0
    %634 = vperm.xlu0 %633, %v600
    %v635 = vpop.permute.xlu0 %634
    %638 = vset.pattern.permute.xlu0 0
    %639 = vperm.xlu0 %638, %v601
    %v640 = vpop.permute.xlu0 %639
    %v643 = vsel %vm303, %v586, 0
    %v646 = vsel %vm303, %v587, 0
    %v649 = vsel %vm303, %v588, 0
    %v652 = vsel %vm303, %v589, 0
    %v655 = vsel %vm303, %v590, 0
    %v658 = vsel %vm303, %v591, 0
    %v661 = vsel %vm303, %v592, 0
    %v664 = vsel %vm303, %v593, 0
    %666 = vmatprep.subr.mxu0 %v555
    %667 = vmatpush1.msra.mxu0 %v554
    %668 = vmatprep.subr.mxu0 %v559
    %669 = vmatpush1.msra.mxu0 %v558
    %670 = vmatprep.subr.mxu0 %v563
    %671 = vmatpush1.msra.mxu0 %v562
    %672 = vmatprep.subr.mxu0 %v567
    %673 = vmatpush1.msra.mxu0 %v566
    %674 = vmatprep.subr.mxu0 %v571
    %675 = vmatpush1.msra.mxu0 %v570
    %676 = vmatprep.subr.mxu0 %v575
    %677 = vmatpush1.msra.mxu0 %v574
    %678 = vmatprep.subr.mxu0 %v579
    %679 = vmatpush1.msra.mxu0 %v578
    %680 = vmatprep.subr.mxu0 %v583
    %681 = vmatpush1.msra.mxu0 %v582
    %682 = vmatprep.subr.mxu0 0.0
    %683 = vmatpush1.msra.mxu0 0.0
    %684 = vmatprep.subr.mxu0 0.0
    %685 = vmatpush1.msra.mxu0 0.0
    %686 = vmatprep.subr.mxu0 0.0
    %687 = vmatpush1.msra.mxu0 0.0
    %688 = vmatprep.subr.mxu0 0.0
    %689 = vmatpush1.msra.mxu0 0.0
    %690 = vmatprep.subr.mxu0 0.0
    %691 = vmatpush1.msra.mxu0 0.0
    %692 = vmatprep.subr.mxu0 0.0
    %693 = vmatpush1.msra.mxu0 0.0
    %694 = vmatprep.subr.mxu0 0.0
    %695 = vmatpush1.msra.mxu0 0.0
    %696 = vmatprep.subr.mxu0 0.0
    %697 = vmatpush1.msra.mxu0 0.0
    %698 = vmatprep.subr.mxu0 0.0
    %699 = vmatpush1.msra.mxu0 0.0
    %700 = vmatprep.subr.mxu0 0.0
    %701 = vmatpush1.msra.mxu0 0.0
    %702 = vmatprep.subr.mxu0 0.0
    %703 = vmatpush1.msra.mxu0 0.0
    %704 = vmatprep.subr.mxu0 0.0
    %705 = vmatpush1.msra.mxu0 0.0
    %706 = vmatprep.subr.mxu0 0.0
    %707 = vmatpush1.msra.mxu0 0.0
    %708 = vmatprep.subr.mxu0 0.0
    %709 = vmatpush1.msra.mxu0 0.0
    %710 = vmatprep.subr.mxu0 0.0
    %711 = vmatpush1.msra.mxu0 0.0
    %712 = vmatprep.subr.mxu0 0.0
    %713 = vmatpush1.msra.mxu0 0.0
    %714 = vmatprep.subr.mxu0 0.0
    %715 = vmatpush1.msra.mxu0 0.0
    %716 = vmatprep.subr.mxu0 0.0
    %717 = vmatpush1.msra.mxu0 0.0
    %718 = vmatprep.subr.mxu0 0.0
    %719 = vmatpush1.msra.mxu0 0.0
    %720 = vmatprep.subr.mxu0 0.0
    %721 = vmatpush1.msra.mxu0 0.0
    %722 = vmatprep.subr.mxu0 0.0
    %723 = vmatpush1.msra.mxu0 0.0
    %724 = vmatprep.subr.mxu0 0.0
    %725 = vmatpush1.msra.mxu0 0.0
    %726 = vmatprep.subr.mxu0 0.0
    %727 = vmatpush1.msra.mxu0 0.0
    %728 = vmatprep.subr.mxu0 0.0
    %729 = vmatpush1.msra.mxu0 0.0
    %730 = vmatprep.mubr.f32.mxu0 0.0
    %731 = vmatmul.mubr.f32.gmra.mrb[0].mxu0 %v643
    %v732 = vpop.f32.mrb[0].mxu0
    %v733 = vadd.f32 %v605, %v732
    %v734 = vpop.f32.mrb[0].mxu0
    %v735 = vadd.f32 %v605, %v734
    %736 = vmatprep.mubr.f32.mxu0 0.0
    %737 = vmatmul.mubr.f32.gmra.mrb[0].mxu0 %v646
    %v738 = vpop.f32.mrb[0].mxu0
    %v739 = vadd.f32 %v610, %v738
    %v740 = vpop.f32.mrb[0].mxu0
    %v741 = vadd.f32 %v610, %v740
    %742 = vmatprep.mubr.f32.mxu0 0.0
    %743 = vmatmul.mubr.f32.gmra.mrb[0].mxu0 %v649
    %v744 = vpop.f32.mrb[0].mxu0
    %v745 = vadd.f32 %v615, %v744
    %v746 = vpop.f32.mrb[0].mxu0
    %v747 = vadd.f32 %v615, %v746
    %748 = vmatprep.mubr.f32.mxu0 0.0
    %749 = vmatmul.mubr.f32.gmra.mrb[0].mxu0 %v652
    %v750 = vpop.f32.mrb[0].mxu0
    %v751 = vadd.f32 %v620, %v750
    %v752 = vpop.f32.mrb[0].mxu0
    %v753 = vadd.f32 %v620, %v752
    %754 = vmatprep.mubr.f32.mxu0 0.0
    %755 = vmatmul.mubr.f32.gmra.mrb[0].mxu0 %v655
    %v756 = vpop.f32.mrb[0].mxu0
    %v757 = vadd.f32 %v625, %v756
    %v758 = vpop.f32.mrb[0].mxu0
    %v759 = vadd.f32 %v625, %v758
    %760 = vmatprep.mubr.f32.mxu0 0.0
    %761 = vmatmul.mubr.f32.gmra.mrb[0].mxu0 %v658
    %v762 = vpop.f32.mrb[0].mxu0
    %v763 = vadd.f32 %v630, %v762
    %v764 = vpop.f32.mrb[0].mxu0
    %v765 = vadd.f32 %v630, %v764
    %766 = vmatprep.mubr.f32.mxu0 0.0
    %767 = vmatmul.mubr.f32.gmra.mrb[0].mxu0 %v661
    %v768 = vpop.f32.mrb[0].mxu0
    %v769 = vadd.f32 %v635, %v768
    %v770 = vpop.f32.mrb[0].mxu0
    %v771 = vadd.f32 %v635, %v770
    %772 = vmatprep.mubr.f32.mxu0 0.0
    %773 = vmatmul.mubr.f32.gmra.mrb[0].mxu0 %v664
    %v774 = vpop.f32.mrb[0].mxu0
    %v775 = vadd.f32 %v640, %v774
    %v776 = vpop.f32.mrb[0].mxu0
    %v777 = vadd.f32 %v640, %v776
    %778 = vdwg.mxu0
    %779 = vmatprep.subr.mxu0 %v557
    %780 = vmatpush1.msra.mxu0 %v556
    %781 = vmatprep.subr.mxu0 %v561
    %782 = vmatpush1.msra.mxu0 %v560
    %783 = vmatprep.subr.mxu0 %v565
    %784 = vmatpush1.msra.mxu0 %v564
    %785 = vmatprep.subr.mxu0 %v569
    %786 = vmatpush1.msra.mxu0 %v568
    %787 = vmatprep.subr.mxu0 %v573
    %788 = vmatpush1.msra.mxu0 %v572
    %789 = vmatprep.subr.mxu0 %v577
    %790 = vmatpush1.msra.mxu0 %v576
    %791 = vmatprep.subr.mxu0 %v581
    %792 = vmatpush1.msra.mxu0 %v580
    %793 = vmatprep.subr.mxu0 %v585
    %794 = vmatpush1.msra.mxu0 %v584
    %795 = vmatprep.subr.mxu0 0.0
    %796 = vmatpush1.msra.mxu0 0.0
    %797 = vmatprep.subr.mxu0 0.0
    %798 = vmatpush1.msra.mxu0 0.0
    %799 = vmatprep.subr.mxu0 0.0
    %800 = vmatpush1.msra.mxu0 0.0
    %801 = vmatprep.subr.mxu0 0.0
    %802 = vmatpush1.msra.mxu0 0.0
    %803 = vmatprep.subr.mxu0 0.0
    %804 = vmatpush1.msra.mxu0 0.0
    %805 = vmatprep.subr.mxu0 0.0
    %806 = vmatpush1.msra.mxu0 0.0
    %807 = vmatprep.subr.mxu0 0.0
    %808 = vmatpush1.msra.mxu0 0.0
    %809 = vmatprep.subr.mxu0 0.0
    %810 = vmatpush1.msra.mxu0 0.0
    %811 = vmatprep.subr.mxu0 0.0
    %812 = vmatpush1.msra.mxu0 0.0
    %813 = vmatprep.subr.mxu0 0.0
    %814 = vmatpush1.msra.mxu0 0.0
    %815 = vmatprep.subr.mxu0 0.0
    %816 = vmatpush1.msra.mxu0 0.0
    %817 = vmatprep.subr.mxu0 0.0
    %818 = vmatpush1.msra.mxu0 0.0
    %819 = vmatprep.subr.mxu0 0.0
    %820 = vmatpush1.msra.mxu0 0.0
    %821 = vmatprep.subr.mxu0 0.0
    %822 = vmatpush1.msra.mxu0 0.0
    %823 = vmatprep.subr.mxu0 0.0
    %824 = vmatpush1.msra.mxu0 0.0
    %825 = vmatprep.subr.mxu0 0.0
    %826 = vmatpush1.msra.mxu0 0.0
    %827 = vmatprep.subr.mxu0 0.0
    %828 = vmatpush1.msra.mxu0 0.0
    %829 = vmatprep.subr.mxu0 0.0
    %830 = vmatpush1.msra.mxu0 0.0
    %831 = vmatprep.subr.mxu0 0.0
    %832 = vmatpush1.msra.mxu0 0.0
    %833 = vmatprep.subr.mxu0 0.0
    %834 = vmatpush1.msra.mxu0 0.0
    %835 = vmatprep.subr.mxu0 0.0
    %836 = vmatpush1.msra.mxu0 0.0
    %837 = vmatprep.subr.mxu0 0.0
    %838 = vmatpush1.msra.mxu0 0.0
    %839 = vmatprep.subr.mxu0 0.0
    %840 = vmatpush1.msra.mxu0 0.0
    %841 = vmatprep.subr.mxu0 0.0
    %842 = vmatpush1.msra.mxu0 0.0
    %843 = vmatprep.mubr.f32.mxu0 0.0
    %844 = vmatmul.mubr.f32.gmra.mrb[0].mxu0 %v643
    %v845 = vpop.f32.mrb[0].mxu0
    %v846 = vadd.f32 %v605, %v845
    %v847 = vpop.f32.mrb[0].mxu0
    %v848 = vadd.f32 %v605, %v847
    %849 = vmatprep.mubr.f32.mxu0 0.0
    %850 = vmatmul.mubr.f32.gmra.mrb[0].mxu0 %v646
    %v851 = vpop.f32.mrb[0].mxu0
    %v852 = vadd.f32 %v610, %v851
    %v853 = vpop.f32.mrb[0].mxu0
    %v854 = vadd.f32 %v610, %v853
    %855 = vmatprep.mubr.f32.mxu0 0.0
    %856 = vmatmul.mubr.f32.gmra.mrb[0].mxu0 %v649
    %v857 = vpop.f32.mrb[0].mxu0
    %v858 = vadd.f32 %v615, %v857
    %v859 = vpop.f32.mrb[0].mxu0
    %v860 = vadd.f32 %v615, %v859
    %861 = vmatprep.mubr.f32.mxu0 0.0
    %862 = vmatmul.mubr.f32.gmra.mrb[0].mxu0 %v652
    %v863 = vpop.f32.mrb[0].mxu0
    %v864 = vadd.f32 %v620, %v863
    %v865 = vpop.f32.mrb[0].mxu0
    %v866 = vadd.f32 %v620, %v865
    %867 = vmatprep.mubr.f32.mxu0 0.0
    %868 = vmatmul.mubr.f32.gmra.mrb[0].mxu0 %v655
    %v869 = vpop.f32.mrb[0].mxu0
    %v870 = vadd.f32 %v625, %v869
    %v871 = vpop.f32.mrb[0].mxu0
    %v872 = vadd.f32 %v625, %v871
    %873 = vmatprep.mubr.f32.mxu0 0.0
    %874 = vmatmul.mubr.f32.gmra.mrb[0].mxu0 %v658
    %v875 = vpop.f32.mrb[0].mxu0
    %v876 = vadd.f32 %v630, %v875
    %v877 = vpop.f32.mrb[0].mxu0
    %v878 = vadd.f32 %v630, %v877
    %879 = vmatprep.mubr.f32.mxu0 0.0
    %880 = vmatmul.mubr.f32.gmra.mrb[0].mxu0 %v661
    %v881 = vpop.f32.mrb[0].mxu0
    %v882 = vadd.f32 %v635, %v881
    %v883 = vpop.f32.mrb[0].mxu0
    %v884 = vadd.f32 %v635, %v883
    %885 = vmatprep.mubr.f32.mxu0 0.0
    %886 = vmatmul.mubr.f32.gmra.mrb[0].mxu0 %v664
    %v887 = vpop.f32.mrb[0].mxu0
    %v888 = vadd.f32 %v640, %v887
    %v889 = vpop.f32.mrb[0].mxu0
    %v890 = vadd.f32 %v640, %v889
    %891 = vdwg.mxu0
    %v892 = vadd.f32 %v215, %v733
    %v893 = vadd.f32 %v216, %v735
    %v894 = vadd.f32 %v217, %v846
    %v895 = vadd.f32 %v218, %v848
    %v896 = vadd.f32 %v219, %v739
    %v897 = vadd.f32 %v220, %v741
    %v898 = vadd.f32 %v221, %v852
    %v899 = vadd.f32 %v222, %v854
    %v900 = vadd.f32 %v223, %v745
    %v901 = vadd.f32 %v224, %v747
    %v902 = vadd.f32 %v225, %v858
    %v903 = vadd.f32 %v226, %v860
    %v904 = vadd.f32 %v227, %v751
    %v905 = vadd.f32 %v228, %v753
    %v906 = vadd.f32 %v229, %v864
    %v907 = vadd.f32 %v230, %v866
    %v908 = vadd.f32 %v231, %v757
    %v909 = vadd.f32 %v232, %v759
    %v910 = vadd.f32 %v233, %v870
    %v911 = vadd.f32 %v234, %v872
    %v912 = vadd.f32 %v235, %v763
    %v913 = vadd.f32 %v236, %v765
    %v914 = vadd.f32 %v237, %v876
    %v915 = vadd.f32 %v238, %v878
    %v916 = vadd.f32 %v239, %v769
    %v917 = vadd.f32 %v240, %v771
    %v918 = vadd.f32 %v241, %v882
    %v919 = vadd.f32 %v242, %v884
    %v920 = vadd.f32 %v243, %v775
    %v921 = vadd.f32 %v244, %v777
    %v922 = vadd.f32 %v245, %v888
    %v923 = vadd.f32 %v246, %v890
    %v924 = vtanh.pop %v892
    %v925 = vtanh.pop %v893
    %v926 = vtanh.pop %v894
    %v927 = vtanh.pop %v895
    %v928 = vtanh.pop %v896
    %v929 = vtanh.pop %v897
    %v930 = vtanh.pop %v898
    %v931 = vtanh.pop %v899
    %v932 = vtanh.pop %v900
    %v933 = vtanh.pop %v901
    %v934 = vtanh.pop %v902
    %v935 = vtanh.pop %v903
    %v936 = vtanh.pop %v904
    %v937 = vtanh.pop %v905
    %v938 = vtanh.pop %v906
    %v939 = vtanh.pop %v907
    %v940 = vtanh.pop %v908
    %v941 = vtanh.pop %v909
    %v942 = vtanh.pop %v910
    %v943 = vtanh.pop %v911
    %v944 = vtanh.pop %v912
    %v945 = vtanh.pop %v913
    %v946 = vtanh.pop %v914
    %v947 = vtanh.pop %v915
    %v948 = vtanh.pop %v916
    %v949 = vtanh.pop %v917
    %v950 = vtanh.pop %v918
    %v951 = vtanh.pop %v919
    %v952 = vtanh.pop %v920
    %v953 = vtanh.pop %v921
    %v954 = vtanh.pop %v922
    %v955 = vtanh.pop %v923
    %s956 = scalar_lea.vmem %s3, 64
    %v957 = vld [vmem:[%s956] sm:$0xff]
    %v958 = vld [vmem:[%s956 + $0x8] sm:$0xff]
    %v959 = vld [vmem:[%s956 + $0x10] sm:$0xff]
    %v960 = vld [vmem:[%s956 + $0x18] sm:$0xff]
    %v961 = vld [vmem:[%s956 + $0x20] sm:$0xff]
    %v962 = vld [vmem:[%s956 + $0x28] sm:$0xff]
    %v963 = vld [vmem:[%s956 + $0x30] sm:$0xff]
    %v964 = vld [vmem:[%s956 + $0x38] sm:$0xff]
    %s965 = scalar_lea.vmem %s4, 64
    %v966 = vld [vmem:[%s965] sm:$0xff]
    %v967 = vld [vmem:[%s965 + $0x8] sm:$0xff]
    %v968 = vld [vmem:[%s965 + $0x10] sm:$0xff]
    %v969 = vld [vmem:[%s965 + $0x18] sm:$0xff]
    %v970 = vld [vmem:[%s965 + $0x20] sm:$0xff]
    %v971 = vld [vmem:[%s965 + $0x28] sm:$0xff]
    %v972 = vld [vmem:[%s965 + $0x30] sm:$0xff]
    %v973 = vld [vmem:[%s965 + $0x38] sm:$0xff]
    %975 = vset.pattern.permute.xlu0 0
    %976 = vperm.xlu0 %975, %v966
    %v977 = vpop.permute.xlu0 %976
    %980 = vset.pattern.permute.xlu0 0
    %981 = vperm.xlu0 %980, %v967
    %v982 = vpop.permute.xlu0 %981
    %985 = vset.pattern.permute.xlu0 0
    %986 = vperm.xlu0 %985, %v968
    %v987 = vpop.permute.xlu0 %986
    %990 = vset.pattern.permute.xlu0 0
    %991 = vperm.xlu0 %990, %v969
    %v992 = vpop.permute.xlu0 %991
    %995 = vset.pattern.permute.xlu0 0
    %996 = vperm.xlu0 %995, %v970
    %v997 = vpop.permute.xlu0 %996
    %1000 = vset.pattern.permute.xlu0 0
    %1001 = vperm.xlu0 %1000, %v971
    %v1002 = vpop.permute.xlu0 %1001
    %1005 = vset.pattern.permute.xlu0 0
    %1006 = vperm.xlu0 %1005, %v972
    %v1007 = vpop.permute.xlu0 %1006
    %1010 = vset.pattern.permute.xlu0 0
    %1011 = vperm.xlu0 %1010, %v973
    %v1012 = vpop.permute.xlu0 %1011
    %v1015 = vsel %vm303, %v957, 0
    %v1018 = vsel %vm303, %v958, 0
    %v1021 = vsel %vm303, %v959, 0
    %v1024 = vsel %vm303, %v960, 0
    %v1027 = vsel %vm303, %v961, 0
    %v1030 = vsel %vm303, %v962, 0
    %v1033 = vsel %vm303, %v963, 0
    %v1036 = vsel %vm303, %v964, 0
    %1038 = vmatprep.subr.mxu0 %v925
    %1039 = vmatpush1.msra.mxu0 %v924
    %1040 = vmatprep.subr.mxu0 %v929
    %1041 = vmatpush1.msra.mxu0 %v928
    %1042 = vmatprep.subr.mxu0 %v933
    %1043 = vmatpush1.msra.mxu0 %v932
    %1044 = vmatprep.subr.mxu0 %v937
    %1045 = vmatpush1.msra.mxu0 %v936
    %1046 = vmatprep.subr.mxu0 %v941
    %1047 = vmatpush1.msra.mxu0 %v940
    %1048 = vmatprep.subr.mxu0 %v945
    %1049 = vmatpush1.msra.mxu0 %v944
    %1050 = vmatprep.subr.mxu0 %v949
    %1051 = vmatpush1.msra.mxu0 %v948
    %1052 = vmatprep.subr.mxu0 %v953
    %1053 = vmatpush1.msra.mxu0 %v952
    %1054 = vmatprep.subr.mxu0 0.0
    %1055 = vmatpush1.msra.mxu0 0.0
    %1056 = vmatprep.subr.mxu0 0.0
    %1057 = vmatpush1.msra.mxu0 0.0
    %1058 = vmatprep.subr.mxu0 0.0
    %1059 = vmatpush1.msra.mxu0 0.0
    %1060 = vmatprep.subr.mxu0 0.0
    %1061 = vmatpush1.msra.mxu0 0.0
    %1062 = vmatprep.subr.mxu0 0.0
    %1063 = vmatpush1.msra.mxu0 0.0
    %1064 = vmatprep.subr.mxu0 0.0
    %1065 = vmatpush1.msra.mxu0 0.0
    %1066 = vmatprep.subr.mxu0 0.0
    %1067 = vmatpush1.msra.mxu0 0.0
    %1068 = vmatprep.subr.mxu0 0.0
    %1069 = vmatpush1.msra.mxu0 0.0
    %1070 = vmatprep.subr.mxu0 0.0
    %1071 = vmatpush1.msra.mxu0 0.0
    %1072 = vmatprep.subr.mxu0 0.0
    %1073 = vmatpush1.msra.mxu0 0.0
    %1074 = vmatprep.subr.mxu0 0.0
    %1075 = vmatpush1.msra.mxu0 0.0
    %1076 = vmatprep.subr.mxu0 0.0
    %1077 = vmatpush1.msra.mxu0 0.0
    %1078 = vmatprep.subr.mxu0 0.0
    %1079 = vmatpush1.msra.mxu0 0.0
    %1080 = vmatprep.subr.mxu0 0.0
    %1081 = vmatpush1.msra.mxu0 0.0
    %1082 = vmatprep.subr.mxu0 0.0
    %1083 = vmatpush1.msra.mxu0 0.0
    %1084 = vmatprep.subr.mxu0 0.0
    %1085 = vmatpush1.msra.mxu0 0.0
    %1086 = vmatprep.subr.mxu0 0.0
    %1087 = vmatpush1.msra.mxu0 0.0
    %1088 = vmatprep.subr.mxu0 0.0
    %1089 = vmatpush1.msra.mxu0 0.0
    %1090 = vmatprep.subr.mxu0 0.0
    %1091 = vmatpush1.msra.mxu0 0.0
    %1092 = vmatprep.subr.mxu0 0.0
    %1093 = vmatpush1.msra.mxu0 0.0
    %1094 = vmatprep.subr.mxu0 0.0
    %1095 = vmatpush1.msra.mxu0 0.0
    %1096 = vmatprep.subr.mxu0 0.0
    %1097 = vmatpush1.msra.mxu0 0.0
    %1098 = vmatprep.subr.mxu0 0.0
    %1099 = vmatpush1.msra.mxu0 0.0
    %1100 = vmatprep.subr.mxu0 0.0
    %1101 = vmatpush1.msra.mxu0 0.0
    %1102 = vmatprep.mubr.f32.mxu0 0.0
    %1103 = vmatmul.mubr.f32.gmra.mrb[0].mxu0 %v1015
    %v1104 = vpop.f32.mrb[0].mxu0
    %v1105 = vadd.f32 %v977, %v1104
    %v1106 = vpop.f32.mrb[0].mxu0
    %v1107 = vadd.f32 %v977, %v1106
    %1108 = vmatprep.mubr.f32.mxu0 0.0
    %1109 = vmatmul.mubr.f32.gmra.mrb[0].mxu0 %v1018
    %v1110 = vpop.f32.mrb[0].mxu0
    %v1111 = vadd.f32 %v982, %v1110
    %v1112 = vpop.f32.mrb[0].mxu0
    %v1113 = vadd.f32 %v982, %v1112
    %1114 = vmatprep.mubr.f32.mxu0 0.0
    %1115 = vmatmul.mubr.f32.gmra.mrb[0].mxu0 %v1021
    %v1116 = vpop.f32.mrb[0].mxu0
    %v1117 = vadd.f32 %v987, %v1116
    %v1118 = vpop.f32.mrb[0].mxu0
    %v1119 = vadd.f32 %v987, %v1118
    %1120 = vmatprep.mubr.f32.mxu0 0.0
    %1121 = vmatmul.mubr.f32.gmra.mrb[0].mxu0 %v1024
    %v1122 = vpop.f32.mrb[0].mxu0
    %v1123 = vadd.f32 %v992, %v1122
    %v1124 = vpop.f32.mrb[0].mxu0
    %v1125 = vadd.f32 %v992, %v1124
    %1126 = vmatprep.mubr.f32.mxu0 0.0
    %1127 = vmatmul.mubr.f32.gmra.mrb[0].mxu0 %v1027
    %v1128 = vpop.f32.mrb[0].mxu0
    %v1129 = vadd.f32 %v997, %v1128
    %v1130 = vpop.f32.mrb[0].mxu0
    %v1131 = vadd.f32 %v997, %v1130
    %1132 = vmatprep.mubr.f32.mxu0 0.0
    %1133 = vmatmul.mubr.f32.gmra.mrb[0].mxu0 %v1030
    %v1134 = vpop.f32.mrb[0].mxu0
    %v1135 = vadd.f32 %v1002, %v1134
    %v1136 = vpop.f32.mrb[0].mxu0
    %v1137 = vadd.f32 %v1002, %v1136
    %1138 = vmatprep.mubr.f32.mxu0 0.0
    %1139 = vmatmul.mubr.f32.gmra.mrb[0].mxu0 %v1033
    %v1140 = vpop.f32.mrb[0].mxu0
    %v1141 = vadd.f32 %v1007, %v1140
    %v1142 = vpop.f32.mrb[0].mxu0
    %v1143 = vadd.f32 %v1007, %v1142
    %1144 = vmatprep.mubr.f32.mxu0 0.0
    %1145 = vmatmul.mubr.f32.gmra.mrb[0].mxu0 %v1036
    %v1146 = vpop.f32.mrb[0].mxu0
    %v1147 = vadd.f32 %v1012, %v1146
    %v1148 = vpop.f32.mrb[0].mxu0
    %v1149 = vadd.f32 %v1012, %v1148
    %1150 = vdwg.mxu0
    %1151 = vmatprep.subr.mxu0 %v927
    %1152 = vmatpush1.msra.mxu0 %v926
    %1153 = vmatprep.subr.mxu0 %v931
    %1154 = vmatpush1.msra.mxu0 %v930
    %1155 = vmatprep.subr.mxu0 %v935
    %1156 = vmatpush1.msra.mxu0 %v934
    %1157 = vmatprep.subr.mxu0 %v939
    %1158 = vmatpush1.msra.mxu0 %v938
    %1159 = vmatprep.subr.mxu0 %v943
    %1160 = vmatpush1.msra.mxu0 %v942
    %1161 = vmatprep.subr.mxu0 %v947
    %1162 = vmatpush1.msra.mxu0 %v946
    %1163 = vmatprep.subr.mxu0 %v951
    %1164 = vmatpush1.msra.mxu0 %v950
    %1165 = vmatprep.subr.mxu0 %v955
    %1166 = vmatpush1.msra.mxu0 %v954
    %1167 = vmatprep.subr.mxu0 0.0
    %1168 = vmatpush1.msra.mxu0 0.0
    %1169 = vmatprep.subr.mxu0 0.0
    %1170 = vmatpush1.msra.mxu0 0.0
    %1171 = vmatprep.subr.mxu0 0.0
    %1172 = vmatpush1.msra.mxu0 0.0
    %1173 = vmatprep.subr.mxu0 0.0
    %1174 = vmatpush1.msra.mxu0 0.0
    %1175 = vmatprep.subr.mxu0 0.0
    %1176 = vmatpush1.msra.mxu0 0.0
    %1177 = vmatprep.subr.mxu0 0.0
    %1178 = vmatpush1.msra.mxu0 0.0
    %1179 = vmatprep.subr.mxu0 0.0
    %1180 = vmatpush1.msra.mxu0 0.0
    %1181 = vmatprep.subr.mxu0 0.0
    %1182 = vmatpush1.msra.mxu0 0.0
    %1183 = vmatprep.subr.mxu0 0.0
    %1184 = vmatpush1.msra.mxu0 0.0
    %1185 = vmatprep.subr.mxu0 0.0
    %1186 = vmatpush1.msra.mxu0 0.0
    %1187 = vmatprep.subr.mxu0 0.0
    %1188 = vmatpush1.msra.mxu0 0.0
    %1189 = vmatprep.subr.mxu0 0.0
    %1190 = vmatpush1.msra.mxu0 0.0
    %1191 = vmatprep.subr.mxu0 0.0
    %1192 = vmatpush1.msra.mxu0 0.0
    %1193 = vmatprep.subr.mxu0 0.0
    %1194 = vmatpush1.msra.mxu0 0.0
    %1195 = vmatprep.subr.mxu0 0.0
    %1196 = vmatpush1.msra.mxu0 0.0
    %1197 = vmatprep.subr.mxu0 0.0
    %1198 = vmatpush1.msra.mxu0 0.0
    %1199 = vmatprep.subr.mxu0 0.0
    %1200 = vmatpush1.msra.mxu0 0.0
    %1201 = vmatprep.subr.mxu0 0.0
    %1202 = vmatpush1.msra.mxu0 0.0
    %1203 = vmatprep.subr.mxu0 0.0
    %1204 = vmatpush1.msra.mxu0 0.0
    %1205 = vmatprep.subr.mxu0 0.0
    %1206 = vmatpush1.msra.mxu0 0.0
    %1207 = vmatprep.subr.mxu0 0.0
    %1208 = vmatpush1.msra.mxu0 0.0
    %1209 = vmatprep.subr.mxu0 0.0
    %1210 = vmatpush1.msra.mxu0 0.0
    %1211 = vmatprep.subr.mxu0 0.0
    %1212 = vmatpush1.msra.mxu0 0.0
    %1213 = vmatprep.subr.mxu0 0.0
    %1214 = vmatpush1.msra.mxu0 0.0
    %1215 = vmatprep.mubr.f32.mxu0 0.0
    %1216 = vmatmul.mubr.f32.gmra.mrb[0].mxu0 %v1015
    %v1217 = vpop.f32.mrb[0].mxu0
    %v1218 = vadd.f32 %v977, %v1217
    %v1219 = vpop.f32.mrb[0].mxu0
    %v1220 = vadd.f32 %v977, %v1219
    %1221 = vmatprep.mubr.f32.mxu0 0.0
    %1222 = vmatmul.mubr.f32.gmra.mrb[0].mxu0 %v1018
    %v1223 = vpop.f32.mrb[0].mxu0
    %v1224 = vadd.f32 %v982, %v1223
    %v1225 = vpop.f32.mrb[0].mxu0
    %v1226 = vadd.f32 %v982, %v1225
    %1227 = vmatprep.mubr.f32.mxu0 0.0
    %1228 = vmatmul.mubr.f32.gmra.mrb[0].mxu0 %v1021
    %v1229 = vpop.f32.mrb[0].mxu0
    %v1230 = vadd.f32 %v987, %v1229
    %v1231 = vpop.f32.mrb[0].mxu0
    %v1232 = vadd.f32 %v987, %v1231
    %1233 = vmatprep.mubr.f32.mxu0 0.0
    %1234 = vmatmul.mubr.f32.gmra.mrb[0].mxu0 %v1024
    %v1235 = vpop.f32.mrb[0].mxu0
    %v1236 = vadd.f32 %v992, %v1235
    %v1237 = vpop.f32.mrb[0].mxu0
    %v1238 = vadd.f32 %v992, %v1237
    %1239 = vmatprep.mubr.f32.mxu0 0.0
    %1240 = vmatmul.mubr.f32.gmra.mrb[0].mxu0 %v1027
    %v1241 = vpop.f32.mrb[0].mxu0
    %v1242 = vadd.f32 %v997, %v1241
    %v1243 = vpop.f32.mrb[0].mxu0
    %v1244 = vadd.f32 %v997, %v1243
    %1245 = vmatprep.mubr.f32.mxu0 0.0
    %1246 = vmatmul.mubr.f32.gmra.mrb[0].mxu0 %v1030
    %v1247 = vpop.f32.mrb[0].mxu0
    %v1248 = vadd.f32 %v1002, %v1247
    %v1249 = vpop.f32.mrb[0].mxu0
    %v1250 = vadd.f32 %v1002, %v1249
    %1251 = vmatprep.mubr.f32.mxu0 0.0
    %1252 = vmatmul.mubr.f32.gmra.mrb[0].mxu0 %v1033
    %v1253 = vpop.f32.mrb[0].mxu0
    %v1254 = vadd.f32 %v1007, %v1253
    %v1255 = vpop.f32.mrb[0].mxu0
    %v1256 = vadd.f32 %v1007, %v1255
    %1257 = vmatprep.mubr.f32.mxu0 0.0
    %1258 = vmatmul.mubr.f32.gmra.mrb[0].mxu0 %v1036
    %v1259 = vpop.f32.mrb[0].mxu0
    %v1260 = vadd.f32 %v1012, %v1259
    %v1261 = vpop.f32.mrb[0].mxu0
    %v1262 = vadd.f32 %v1012, %v1261
    %1263 = vdwg.mxu0
    %v1264 = vtanh.pop %v1105
    %v1265 = vtanh.pop %v1107
    %v1266 = vtanh.pop %v1218
    %v1267 = vtanh.pop %v1220
    %v1268 = vtanh.pop %v1111
    %v1269 = vtanh.pop %v1113
    %v1270 = vtanh.pop %v1224
    %v1271 = vtanh.pop %v1226
    %v1272 = vtanh.pop %v1117
    %v1273 = vtanh.pop %v1119
    %v1274 = vtanh.pop %v1230
    %v1275 = vtanh.pop %v1232
    %v1276 = vtanh.pop %v1123
    %v1277 = vtanh.pop %v1125
    %v1278 = vtanh.pop %v1236
    %v1279 = vtanh.pop %v1238
    %v1280 = vtanh.pop %v1129
    %v1281 = vtanh.pop %v1131
    %v1282 = vtanh.pop %v1242
    %v1283 = vtanh.pop %v1244
    %v1284 = vtanh.pop %v1135
    %v1285 = vtanh.pop %v1137
    %v1286 = vtanh.pop %v1248
    %v1287 = vtanh.pop %v1250
    %v1288 = vtanh.pop %v1141
    %v1289 = vtanh.pop %v1143
    %v1290 = vtanh.pop %v1254
    %v1291 = vtanh.pop %v1256
    %v1292 = vtanh.pop %v1147
    %v1293 = vtanh.pop %v1149
    %v1294 = vtanh.pop %v1260
    %v1295 = vtanh.pop %v1262
    %s1296 = scalar_lea.vmem %s5, 64
    %v1297 = vld [vmem:[%s1296] sm:$0xff]
    %v1298 = vld [vmem:[%s1296 + $0x8] sm:$0xff]
    %v1299 = vld [vmem:[%s1296 + $0x10] sm:$0xff]
    %v1300 = vld [vmem:[%s1296 + $0x18] sm:$0xff]
    %v1301 = vld [vmem:[%s1296 + $0x20] sm:$0xff]
    %v1302 = vld [vmem:[%s1296 + $0x28] sm:$0xff]
    %v1303 = vld [vmem:[%s1296 + $0x30] sm:$0xff]
    %v1304 = vld [vmem:[%s1296 + $0x38] sm:$0xff]
    %s1305 = scalar_lea.vmem %s6, 64
    %v1306 = vld [vmem:[%s1305] sm:$0xff]
    %v1307 = vld [vmem:[%s1305 + $0x8] sm:$0xff]
    %v1308 = vld [vmem:[%s1305 + $0x10] sm:$0xff]
    %v1309 = vld [vmem:[%s1305 + $0x18] sm:$0xff]
    %v1310 = vld [vmem:[%s1305 + $0x20] sm:$0xff]
    %v1311 = vld [vmem:[%s1305 + $0x28] sm:$0xff]
    %v1312 = vld [vmem:[%s1305 + $0x30] sm:$0xff]
    %v1313 = vld [vmem:[%s1305 + $0x38] sm:$0xff]
    %1315 = vset.pattern.permute.xlu0 0
    %1316 = vperm.xlu0 %1315, %v1306
    %v1317 = vpop.permute.xlu0 %1316
    %1320 = vset.pattern.permute.xlu0 0
    %1321 = vperm.xlu0 %1320, %v1307
    %v1322 = vpop.permute.xlu0 %1321
    %1325 = vset.pattern.permute.xlu0 0
    %1326 = vperm.xlu0 %1325, %v1308
    %v1327 = vpop.permute.xlu0 %1326
    %1330 = vset.pattern.permute.xlu0 0
    %1331 = vperm.xlu0 %1330, %v1309
    %v1332 = vpop.permute.xlu0 %1331
    %1335 = vset.pattern.permute.xlu0 0
    %1336 = vperm.xlu0 %1335, %v1310
    %v1337 = vpop.permute.xlu0 %1336
    %1340 = vset.pattern.permute.xlu0 0
    %1341 = vperm.xlu0 %1340, %v1311
    %v1342 = vpop.permute.xlu0 %1341
    %1345 = vset.pattern.permute.xlu0 0
    %1346 = vperm.xlu0 %1345, %v1312
    %v1347 = vpop.permute.xlu0 %1346
    %1350 = vset.pattern.permute.xlu0 0
    %1351 = vperm.xlu0 %1350, %v1313
    %v1352 = vpop.permute.xlu0 %1351
    %v1355 = vsel %vm303, %v1297, 0
    %v1358 = vsel %vm303, %v1298, 0
    %v1361 = vsel %vm303, %v1299, 0
    %v1364 = vsel %vm303, %v1300, 0
    %v1367 = vsel %vm303, %v1301, 0
    %v1370 = vsel %vm303, %v1302, 0
    %v1373 = vsel %vm303, %v1303, 0
    %v1376 = vsel %vm303, %v1304, 0
    %1378 = vmatprep.subr.mxu0 %v1265
    %1379 = vmatpush1.msra.mxu0 %v1264
    %1380 = vmatprep.subr.mxu0 %v1269
    %1381 = vmatpush1.msra.mxu0 %v1268
    %1382 = vmatprep.subr.mxu0 %v1273
    %1383 = vmatpush1.msra.mxu0 %v1272
    %1384 = vmatprep.subr.mxu0 %v1277
    %1385 = vmatpush1.msra.mxu0 %v1276
    %1386 = vmatprep.subr.mxu0 %v1281
    %1387 = vmatpush1.msra.mxu0 %v1280
    %1388 = vmatprep.subr.mxu0 %v1285
    %1389 = vmatpush1.msra.mxu0 %v1284
    %1390 = vmatprep.subr.mxu0 %v1289
    %1391 = vmatpush1.msra.mxu0 %v1288
    %1392 = vmatprep.subr.mxu0 %v1293
    %1393 = vmatpush1.msra.mxu0 %v1292
    %1394 = vmatprep.subr.mxu0 0.0
    %1395 = vmatpush1.msra.mxu0 0.0
    %1396 = vmatprep.subr.mxu0 0.0
    %1397 = vmatpush1.msra.mxu0 0.0
    %1398 = vmatprep.subr.mxu0 0.0
    %1399 = vmatpush1.msra.mxu0 0.0
    %1400 = vmatprep.subr.mxu0 0.0
    %1401 = vmatpush1.msra.mxu0 0.0
    %1402 = vmatprep.subr.mxu0 0.0
    %1403 = vmatpush1.msra.mxu0 0.0
    %1404 = vmatprep.subr.mxu0 0.0
    %1405 = vmatpush1.msra.mxu0 0.0
    %1406 = vmatprep.subr.mxu0 0.0
    %1407 = vmatpush1.msra.mxu0 0.0
    %1408 = vmatprep.subr.mxu0 0.0
    %1409 = vmatpush1.msra.mxu0 0.0
    %1410 = vmatprep.subr.mxu0 0.0
    %1411 = vmatpush1.msra.mxu0 0.0
    %1412 = vmatprep.subr.mxu0 0.0
    %1413 = vmatpush1.msra.mxu0 0.0
    %1414 = vmatprep.subr.mxu0 0.0
    %1415 = vmatpush1.msra.mxu0 0.0
    %1416 = vmatprep.subr.mxu0 0.0
    %1417 = vmatpush1.msra.mxu0 0.0
    %1418 = vmatprep.subr.mxu0 0.0
    %1419 = vmatpush1.msra.mxu0 0.0
    %1420 = vmatprep.subr.mxu0 0.0
    %1421 = vmatpush1.msra.mxu0 0.0
    %1422 = vmatprep.subr.mxu0 0.0
    %1423 = vmatpush1.msra.mxu0 0.0
    %1424 = vmatprep.subr.mxu0 0.0
    %1425 = vmatpush1.msra.mxu0 0.0
    %1426 = vmatprep.subr.mxu0 0.0
    %1427 = vmatpush1.msra.mxu0 0.0
    %1428 = vmatprep.subr.mxu0 0.0
    %1429 = vmatpush1.msra.mxu0 0.0
    %1430 = vmatprep.subr.mxu0 0.0
    %1431 = vmatpush1.msra.mxu0 0.0
    %1432 = vmatprep.subr.mxu0 0.0
    %1433 = vmatpush1.msra.mxu0 0.0
    %1434 = vmatprep.subr.mxu0 0.0
    %1435 = vmatpush1.msra.mxu0 0.0
    %1436 = vmatprep.subr.mxu0 0.0
    %1437 = vmatpush1.msra.mxu0 0.0
    %1438 = vmatprep.subr.mxu0 0.0
    %1439 = vmatpush1.msra.mxu0 0.0
    %1440 = vmatprep.subr.mxu0 0.0
    %1441 = vmatpush1.msra.mxu0 0.0
    %1442 = vmatprep.mubr.f32.mxu0 0.0
    %1443 = vmatmul.mubr.f32.gmra.mrb[0].mxu0 %v1355
    %v1444 = vpop.f32.mrb[0].mxu0
    %v1445 = vadd.f32 %v1317, %v1444
    %v1446 = vpop.f32.mrb[0].mxu0
    %v1447 = vadd.f32 %v1317, %v1446
    %1448 = vmatprep.mubr.f32.mxu0 0.0
    %1449 = vmatmul.mubr.f32.gmra.mrb[0].mxu0 %v1358
    %v1450 = vpop.f32.mrb[0].mxu0
    %v1451 = vadd.f32 %v1322, %v1450
    %v1452 = vpop.f32.mrb[0].mxu0
    %v1453 = vadd.f32 %v1322, %v1452
    %1454 = vmatprep.mubr.f32.mxu0 0.0
    %1455 = vmatmul.mubr.f32.gmra.mrb[0].mxu0 %v1361
    %v1456 = vpop.f32.mrb[0].mxu0
    %v1457 = vadd.f32 %v1327, %v1456
    %v1458 = vpop.f32.mrb[0].mxu0
    %v1459 = vadd.f32 %v1327, %v1458
    %1460 = vmatprep.mubr.f32.mxu0 0.0
    %1461 = vmatmul.mubr.f32.gmra.mrb[0].mxu0 %v1364
    %v1462 = vpop.f32.mrb[0].mxu0
    %v1463 = vadd.f32 %v1332, %v1462
    %v1464 = vpop.f32.mrb[0].mxu0
    %v1465 = vadd.f32 %v1332, %v1464
    %1466 = vmatprep.mubr.f32.mxu0 0.0
    %1467 = vmatmul.mubr.f32.gmra.mrb[0].mxu0 %v1367
    %v1468 = vpop.f32.mrb[0].mxu0
    %v1469 = vadd.f32 %v1337, %v1468
    %v1470 = vpop.f32.mrb[0].mxu0
    %v1471 = vadd.f32 %v1337, %v1470
    %1472 = vmatprep.mubr.f32.mxu0 0.0
    %1473 = vmatmul.mubr.f32.gmra.mrb[0].mxu0 %v1370
    %v1474 = vpop.f32.mrb[0].mxu0
    %v1475 = vadd.f32 %v1342, %v1474
    %v1476 = vpop.f32.mrb[0].mxu0
    %v1477 = vadd.f32 %v1342, %v1476
    %1478 = vmatprep.mubr.f32.mxu0 0.0
    %1479 = vmatmul.mubr.f32.gmra.mrb[0].mxu0 %v1373
    %v1480 = vpop.f32.mrb[0].mxu0
    %v1481 = vadd.f32 %v1347, %v1480
    %v1482 = vpop.f32.mrb[0].mxu0
    %v1483 = vadd.f32 %v1347, %v1482
    %1484 = vmatprep.mubr.f32.mxu0 0.0
    %1485 = vmatmul.mubr.f32.gmra.mrb[0].mxu0 %v1376
    %v1486 = vpop.f32.mrb[0].mxu0
    %v1487 = vadd.f32 %v1352, %v1486
    %v1488 = vpop.f32.mrb[0].mxu0
    %v1489 = vadd.f32 %v1352, %v1488
    %1490 = vdwg.mxu0
    %1491 = vmatprep.subr.mxu0 %v1267
    %1492 = vmatpush1.msra.mxu0 %v1266
    %1493 = vmatprep.subr.mxu0 %v1271
    %1494 = vmatpush1.msra.mxu0 %v1270
    %1495 = vmatprep.subr.mxu0 %v1275
    %1496 = vmatpush1.msra.mxu0 %v1274
    %1497 = vmatprep.subr.mxu0 %v1279
    %1498 = vmatpush1.msra.mxu0 %v1278
    %1499 = vmatprep.subr.mxu0 %v1283
    %1500 = vmatpush1.msra.mxu0 %v1282
    %1501 = vmatprep.subr.mxu0 %v1287
    %1502 = vmatpush1.msra.mxu0 %v1286
    %1503 = vmatprep.subr.mxu0 %v1291
    %1504 = vmatpush1.msra.mxu0 %v1290
    %1505 = vmatprep.subr.mxu0 %v1295
    %1506 = vmatpush1.msra.mxu0 %v1294
    %1507 = vmatprep.subr.mxu0 0.0
    %1508 = vmatpush1.msra.mxu0 0.0
    %1509 = vmatprep.subr.mxu0 0.0
    %1510 = vmatpush1.msra.mxu0 0.0
    %1511 = vmatprep.subr.mxu0 0.0
    %1512 = vmatpush1.msra.mxu0 0.0
    %1513 = vmatprep.subr.mxu0 0.0
    %1514 = vmatpush1.msra.mxu0 0.0
    %1515 = vmatprep.subr.mxu0 0.0
    %1516 = vmatpush1.msra.mxu0 0.0
    %1517 = vmatprep.subr.mxu0 0.0
    %1518 = vmatpush1.msra.mxu0 0.0
    %1519 = vmatprep.subr.mxu0 0.0
    %1520 = vmatpush1.msra.mxu0 0.0
    %1521 = vmatprep.subr.mxu0 0.0
    %1522 = vmatpush1.msra.mxu0 0.0
    %1523 = vmatprep.subr.mxu0 0.0
    %1524 = vmatpush1.msra.mxu0 0.0
    %1525 = vmatprep.subr.mxu0 0.0
    %1526 = vmatpush1.msra.mxu0 0.0
    %1527 = vmatprep.subr.mxu0 0.0
    %1528 = vmatpush1.msra.mxu0 0.0
    %1529 = vmatprep.subr.mxu0 0.0
    %1530 = vmatpush1.msra.mxu0 0.0
    %1531 = vmatprep.subr.mxu0 0.0
    %1532 = vmatpush1.msra.mxu0 0.0
    %1533 = vmatprep.subr.mxu0 0.0
    %1534 = vmatpush1.msra.mxu0 0.0
    %1535 = vmatprep.subr.mxu0 0.0
    %1536 = vmatpush1.msra.mxu0 0.0
    %1537 = vmatprep.subr.mxu0 0.0
    %1538 = vmatpush1.msra.mxu0 0.0
    %1539 = vmatprep.subr.mxu0 0.0
    %1540 = vmatpush1.msra.mxu0 0.0
    %1541 = vmatprep.subr.mxu0 0.0
    %1542 = vmatpush1.msra.mxu0 0.0
    %1543 = vmatprep.subr.mxu0 0.0
    %1544 = vmatpush1.msra.mxu0 0.0
    %1545 = vmatprep.subr.mxu0 0.0
    %1546 = vmatpush1.msra.mxu0 0.0
    %1547 = vmatprep.subr.mxu0 0.0
    %1548 = vmatpush1.msra.mxu0 0.0
    %1549 = vmatprep.subr.mxu0 0.0
    %1550 = vmatpush1.msra.mxu0 0.0
    %1551 = vmatprep.subr.mxu0 0.0
    %1552 = vmatpush1.msra.mxu0 0.0
    %1553 = vmatprep.subr.mxu0 0.0
    %1554 = vmatpush1.msra.mxu0 0.0
    %1555 = vmatprep.mubr.f32.mxu0 0.0
    %1556 = vmatmul.mubr.f32.gmra.mrb[0].mxu0 %v1355
    %v1557 = vpop.f32.mrb[0].mxu0
    %v1558 = vadd.f32 %v1317, %v1557
    %v1559 = vpop.f32.mrb[0].mxu0
    %v1560 = vadd.f32 %v1317, %v1559
    %1561 = vmatprep.mubr.f32.mxu0 0.0
    %1562 = vmatmul.mubr.f32.gmra.mrb[0].mxu0 %v1358
    %v1563 = vpop.f32.mrb[0].mxu0
    %v1564 = vadd.f32 %v1322, %v1563
    %v1565 = vpop.f32.mrb[0].mxu0
    %v1566 = vadd.f32 %v1322, %v1565
    %1567 = vmatprep.mubr.f32.mxu0 0.0
    %1568 = vmatmul.mubr.f32.gmra.mrb[0].mxu0 %v1361
    %v1569 = vpop.f32.mrb[0].mxu0
    %v1570 = vadd.f32 %v1327, %v1569
    %v1571 = vpop.f32.mrb[0].mxu0
    %v1572 = vadd.f32 %v1327, %v1571
    %1573 = vmatprep.mubr.f32.mxu0 0.0
    %1574 = vmatmul.mubr.f32.gmra.mrb[0].mxu0 %v1364
    %v1575 = vpop.f32.mrb[0].mxu0
    %v1576 = vadd.f32 %v1332, %v1575
    %v1577 = vpop.f32.mrb[0].mxu0
    %v1578 = vadd.f32 %v1332, %v1577
    %1579 = vmatprep.mubr.f32.mxu0 0.0
    %1580 = vmatmul.mubr.f32.gmra.mrb[0].mxu0 %v1367
    %v1581 = vpop.f32.mrb[0].mxu0
    %v1582 = vadd.f32 %v1337, %v1581
    %v1583 = vpop.f32.mrb[0].mxu0
    %v1584 = vadd.f32 %v1337, %v1583
    %1585 = vmatprep.mubr.f32.mxu0 0.0
    %1586 = vmatmul.mubr.f32.gmra.mrb[0].mxu0 %v1370
    %v1587 = vpop.f32.mrb[0].mxu0
    %v1588 = vadd.f32 %v1342, %v1587
    %v1589 = vpop.f32.mrb[0].mxu0
    %v1590 = vadd.f32 %v1342, %v1589
    %1591 = vmatprep.mubr.f32.mxu0 0.0
    %1592 = vmatmul.mubr.f32.gmra.mrb[0].mxu0 %v1373
    %v1593 = vpop.f32.mrb[0].mxu0
    %v1594 = vadd.f32 %v1347, %v1593
    %v1595 = vpop.f32.mrb[0].mxu0
    %v1596 = vadd.f32 %v1347, %v1595
    %1597 = vmatprep.mubr.f32.mxu0 0.0
    %1598 = vmatmul.mubr.f32.gmra.mrb[0].mxu0 %v1376
    %v1599 = vpop.f32.mrb[0].mxu0
    %v1600 = vadd.f32 %v1352, %v1599
    %v1601 = vpop.f32.mrb[0].mxu0
    %v1602 = vadd.f32 %v1352, %v1601
    %1603 = vdwg.mxu0
    %v1604 = vadd.f32 %v924, %v1445
    %v1605 = vadd.f32 %v925, %v1447
    %v1606 = vadd.f32 %v926, %v1558
    %v1607 = vadd.f32 %v927, %v1560
    %v1608 = vadd.f32 %v928, %v1451
    %v1609 = vadd.f32 %v929, %v1453
    %v1610 = vadd.f32 %v930, %v1564
    %v1611 = vadd.f32 %v931, %v1566
    %v1612 = vadd.f32 %v932, %v1457
    %v1613 = vadd.f32 %v933, %v1459
    %v1614 = vadd.f32 %v934, %v1570
    %v1615 = vadd.f32 %v935, %v1572
    %v1616 = vadd.f32 %v936, %v1463
    %v1617 = vadd.f32 %v937, %v1465
    %v1618 = vadd.f32 %v938, %v1576
    %v1619 = vadd.f32 %v939, %v1578
    %v1620 = vadd.f32 %v940, %v1469
    %v1621 = vadd.f32 %v941, %v1471
    %v1622 = vadd.f32 %v942, %v1582
    %v1623 = vadd.f32 %v943, %v1584
    %v1624 = vadd.f32 %v944, %v1475
    %v1625 = vadd.f32 %v945, %v1477
    %v1626 = vadd.f32 %v946, %v1588
    %v1627 = vadd.f32 %v947, %v1590
    %v1628 = vadd.f32 %v948, %v1481
    %v1629 = vadd.f32 %v949, %v1483
    %v1630 = vadd.f32 %v950, %v1594
    %v1631 = vadd.f32 %v951, %v1596
    %v1632 = vadd.f32 %v952, %v1487
    %v1633 = vadd.f32 %v953, %v1489
    %v1634 = vadd.f32 %v954, %v1600
    %v1635 = vadd.f32 %v955, %v1602
    %v1636 = vtanh.pop %v1604
    %v1637 = vtanh.pop %v1605
    %v1638 = vtanh.pop %v1606
    %v1639 = vtanh.pop %v1607
    %v1640 = vtanh.pop %v1608
    %v1641 = vtanh.pop %v1609
    %v1642 = vtanh.pop %v1610
    %v1643 = vtanh.pop %v1611
    %v1644 = vtanh.pop %v1612
    %v1645 = vtanh.pop %v1613
    %v1646 = vtanh.pop %v1614
    %v1647 = vtanh.pop %v1615
    %v1648 = vtanh.pop %v1616
    %v1649 = vtanh.pop %v1617
    %v1650 = vtanh.pop %v1618
    %v1651 = vtanh.pop %v1619
    %v1652 = vtanh.pop %v1620
    %v1653 = vtanh.pop %v1621
    %v1654 = vtanh.pop %v1622
    %v1655 = vtanh.pop %v1623
    %v1656 = vtanh.pop %v1624
    %v1657 = vtanh.pop %v1625
    %v1658 = vtanh.pop %v1626
    %v1659 = vtanh.pop %v1627
    %v1660 = vtanh.pop %v1628
    %v1661 = vtanh.pop %v1629
    %v1662 = vtanh.pop %v1630
    %v1663 = vtanh.pop %v1631
    %v1664 = vtanh.pop %v1632
    %v1665 = vtanh.pop %v1633
    %v1666 = vtanh.pop %v1634
    %v1667 = vtanh.pop %v1635
    %s1668 = scalar_lea.vmem %s3, 128
    %v1669 = vld [vmem:[%s1668] sm:$0xff]
    %v1670 = vld [vmem:[%s1668 + $0x8] sm:$0xff]
    %v1671 = vld [vmem:[%s1668 + $0x10] sm:$0xff]
    %v1672 = vld [vmem:[%s1668 + $0x18] sm:$0xff]
    %v1673 = vld [vmem:[%s1668 + $0x20] sm:$0xff]
    %v1674 = vld [vmem:[%s1668 + $0x28] sm:$0xff]
    %v1675 = vld [vmem:[%s1668 + $0x30] sm:$0xff]
    %v1676 = vld [vmem:[%s1668 + $0x38] sm:$0xff]
    %s1677 = scalar_lea.vmem %s4, 128
    %v1678 = vld [vmem:[%s1677] sm:$0xff]
    %v1679 = vld [vmem:[%s1677 + $0x8] sm:$0xff]
    %v1680 = vld [vmem:[%s1677 + $0x10] sm:$0xff]
    %v1681 = vld [vmem:[%s1677 + $0x18] sm:$0xff]
    %v1682 = vld [vmem:[%s1677 + $0x20] sm:$0xff]
    %v1683 = vld [vmem:[%s1677 + $0x28] sm:$0xff]
    %v1684 = vld [vmem:[%s1677 + $0x30] sm:$0xff]
    %v1685 = vld [vmem:[%s1677 + $0x38] sm:$0xff]
    %1687 = vset.pattern.permute.xlu0 0
    %1688 = vperm.xlu0 %1687, %v1678
    %v1689 = vpop.permute.xlu0 %1688
    %1692 = vset.pattern.permute.xlu0 0
    %1693 = vperm.xlu0 %1692, %v1679
    %v1694 = vpop.permute.xlu0 %1693
    %1697 = vset.pattern.permute.xlu0 0
    %1698 = vperm.xlu0 %1697, %v1680
    %v1699 = vpop.permute.xlu0 %1698
    %1702 = vset.pattern.permute.xlu0 0
    %1703 = vperm.xlu0 %1702, %v1681
    %v1704 = vpop.permute.xlu0 %1703
    %1707 = vset.pattern.permute.xlu0 0
    %1708 = vperm.xlu0 %1707, %v1682
    %v1709 = vpop.permute.xlu0 %1708
    %1712 = vset.pattern.permute.xlu0 0
    %1713 = vperm.xlu0 %1712, %v1683
    %v1714 = vpop.permute.xlu0 %1713
    %1717 = vset.pattern.permute.xlu0 0
    %1718 = vperm.xlu0 %1717, %v1684
    %v1719 = vpop.permute.xlu0 %1718
    %1722 = vset.pattern.permute.xlu0 0
    %1723 = vperm.xlu0 %1722, %v1685
    %v1724 = vpop.permute.xlu0 %1723
    %v1727 = vsel %vm303, %v1669, 0
    %v1730 = vsel %vm303, %v1670, 0
    %v1733 = vsel %vm303, %v1671, 0
    %v1736 = vsel %vm303, %v1672, 0
    %v1739 = vsel %vm303, %v1673, 0
    %v1742 = vsel %vm303, %v1674, 0
    %v1745 = vsel %vm303, %v1675, 0
    %v1748 = vsel %vm303, %v1676, 0
    %1750 = vmatprep.subr.mxu0 %v1637
    %1751 = vmatpush1.msra.mxu0 %v1636
    %1752 = vmatprep.subr.mxu0 %v1641
    %1753 = vmatpush1.msra.mxu0 %v1640
    %1754 = vmatprep.subr.mxu0 %v1645
    %1755 = vmatpush1.msra.mxu0 %v1644
    %1756 = vmatprep.subr.mxu0 %v1649
    %1757 = vmatpush1.msra.mxu0 %v1648
    %1758 = vmatprep.subr.mxu0 %v1653
    %1759 = vmatpush1.msra.mxu0 %v1652
    %1760 = vmatprep.subr.mxu0 %v1657
    %1761 = vmatpush1.msra.mxu0 %v1656
    %1762 = vmatprep.subr.mxu0 %v1661
    %1763 = vmatpush1.msra.mxu0 %v1660
    %1764 = vmatprep.subr.mxu0 %v1665
    %1765 = vmatpush1.msra.mxu0 %v1664
    %1766 = vmatprep.subr.mxu0 0.0
    %1767 = vmatpush1.msra.mxu0 0.0
    %1768 = vmatprep.subr.mxu0 0.0
    %1769 = vmatpush1.msra.mxu0 0.0
    %1770 = vmatprep.subr.mxu0 0.0
    %1771 = vmatpush1.msra.mxu0 0.0
    %1772 = vmatprep.subr.mxu0 0.0
    %1773 = vmatpush1.msra.mxu0 0.0
    %1774 = vmatprep.subr.mxu0 0.0
    %1775 = vmatpush1.msra.mxu0 0.0
    %1776 = vmatprep.subr.mxu0 0.0
    %1777 = vmatpush1.msra.mxu0 0.0
    %1778 = vmatprep.subr.mxu0 0.0
    %1779 = vmatpush1.msra.mxu0 0.0
    %1780 = vmatprep.subr.mxu0 0.0
    %1781 = vmatpush1.msra.mxu0 0.0
    %1782 = vmatprep.subr.mxu0 0.0
    %1783 = vmatpush1.msra.mxu0 0.0
    %1784 = vmatprep.subr.mxu0 0.0
    %1785 = vmatpush1.msra.mxu0 0.0
    %1786 = vmatprep.subr.mxu0 0.0
    %1787 = vmatpush1.msra.mxu0 0.0
    %1788 = vmatprep.subr.mxu0 0.0
    %1789 = vmatpush1.msra.mxu0 0.0
    %1790 = vmatprep.subr.mxu0 0.0
    %1791 = vmatpush1.msra.mxu0 0.0
    %1792 = vmatprep.subr.mxu0 0.0
    %1793 = vmatpush1.msra.mxu0 0.0
    %1794 = vmatprep.subr.mxu0 0.0
    %1795 = vmatpush1.msra.mxu0 0.0
    %1796 = vmatprep.subr.mxu0 0.0
    %1797 = vmatpush1.msra.mxu0 0.0
    %1798 = vmatprep.subr.mxu0 0.0
    %1799 = vmatpush1.msra.mxu0 0.0
    %1800 = vmatprep.subr.mxu0 0.0
    %1801 = vmatpush1.msra.mxu0 0.0
    %1802 = vmatprep.subr.mxu0 0.0
    %1803 = vmatpush1.msra.mxu0 0.0
    %1804 = vmatprep.subr.mxu0 0.0
    %1805 = vmatpush1.msra.mxu0 0.0
    %1806 = vmatprep.subr.mxu0 0.0
    %1807 = vmatpush1.msra.mxu0 0.0
    %1808 = vmatprep.subr.mxu0 0.0
    %1809 = vmatpush1.msra.mxu0 0.0
    %1810 = vmatprep.subr.mxu0 0.0
    %1811 = vmatpush1.msra.mxu0 0.0
    %1812 = vmatprep.subr.mxu0 0.0
    %1813 = vmatpush1.msra.mxu0 0.0
    %1814 = vmatprep.mubr.f32.mxu0 0.0
    %1815 = vmatmul.mubr.f32.gmra.mrb[0].mxu0 %v1727
    %v1816 = vpop.f32.mrb[0].mxu0
    %v1817 = vadd.f32 %v1689, %v1816
    %v1818 = vpop.f32.mrb[0].mxu0
    %v1819 = vadd.f32 %v1689, %v1818
    %1820 = vmatprep.mubr.f32.mxu0 0.0
    %1821 = vmatmul.mubr.f32.gmra.mrb[0].mxu0 %v1730
    %v1822 = vpop.f32.mrb[0].mxu0
    %v1823 = vadd.f32 %v1694, %v1822
    %v1824 = vpop.f32.mrb[0].mxu0
    %v1825 = vadd.f32 %v1694, %v1824
    %1826 = vmatprep.mubr.f32.mxu0 0.0
    %1827 = vmatmul.mubr.f32.gmra.mrb[0].mxu0 %v1733
    %v1828 = vpop.f32.mrb[0].mxu0
    %v1829 = vadd.f32 %v1699, %v1828
    %v1830 = vpop.f32.mrb[0].mxu0
    %v1831 = vadd.f32 %v1699, %v1830
    %1832 = vmatprep.mubr.f32.mxu0 0.0
    %1833 = vmatmul.mubr.f32.gmra.mrb[0].mxu0 %v1736
    %v1834 = vpop.f32.mrb[0].mxu0
    %v1835 = vadd.f32 %v1704, %v1834
    %v1836 = vpop.f32.mrb[0].mxu0
    %v1837 = vadd.f32 %v1704, %v1836
    %1838 = vmatprep.mubr.f32.mxu0 0.0
    %1839 = vmatmul.mubr.f32.gmra.mrb[0].mxu0 %v1739
    %v1840 = vpop.f32.mrb[0].mxu0
    %v1841 = vadd.f32 %v1709, %v1840
    %v1842 = vpop.f32.mrb[0].mxu0
    %v1843 = vadd.f32 %v1709, %v1842
    %1844 = vmatprep.mubr.f32.mxu0 0.0
    %1845 = vmatmul.mubr.f32.gmra.mrb[0].mxu0 %v1742
    %v1846 = vpop.f32.mrb[0].mxu0
    %v1847 = vadd.f32 %v1714, %v1846
    %v1848 = vpop.f32.mrb[0].mxu0
    %v1849 = vadd.f32 %v1714, %v1848
    %1850 = vmatprep.mubr.f32.mxu0 0.0
    %1851 = vmatmul.mubr.f32.gmra.mrb[0].mxu0 %v1745
    %v1852 = vpop.f32.mrb[0].mxu0
    %v1853 = vadd.f32 %v1719, %v1852
    %v1854 = vpop.f32.mrb[0].mxu0
    %v1855 = vadd.f32 %v1719, %v1854
    %1856 = vmatprep.mubr.f32.mxu0 0.0
    %1857 = vmatmul.mubr.f32.gmra.mrb[0].mxu0 %v1748
    %v1858 = vpop.f32.mrb[0].mxu0
    %v1859 = vadd.f32 %v1724, %v1858
    %v1860 = vpop.f32.mrb[0].mxu0
    %v1861 = vadd.f32 %v1724, %v1860
    %1862 = vdwg.mxu0
    %1863 = vmatprep.subr.mxu0 %v1639
    %1864 = vmatpush1.msra.mxu0 %v1638
    %1865 = vmatprep.subr.mxu0 %v1643
    %1866 = vmatpush1.msra.mxu0 %v1642
    %1867 = vmatprep.subr.mxu0 %v1647
    %1868 = vmatpush1.msra.mxu0 %v1646
    %1869 = vmatprep.subr.mxu0 %v1651
    %1870 = vmatpush1.msra.mxu0 %v1650
    %1871 = vmatprep.subr.mxu0 %v1655
    %1872 = vmatpush1.msra.mxu0 %v1654
    %1873 = vmatprep.subr.mxu0 %v1659
    %1874 = vmatpush1.msra.mxu0 %v1658
    %1875 = vmatprep.subr.mxu0 %v1663
    %1876 = vmatpush1.msra.mxu0 %v1662
    %1877 = vmatprep.subr.mxu0 %v1667
    %1878 = vmatpush1.msra.mxu0 %v1666
    %1879 = vmatprep.subr.mxu0 0.0
    %1880 = vmatpush1.msra.mxu0 0.0
    %1881 = vmatprep.subr.mxu0 0.0
    %1882 = vmatpush1.msra.mxu0 0.0
    %1883 = vmatprep.subr.mxu0 0.0
    %1884 = vmatpush1.msra.mxu0 0.0
    %1885 = vmatprep.subr.mxu0 0.0
    %1886 = vmatpush1.msra.mxu0 0.0
    %1887 = vmatprep.subr.mxu0 0.0
    %1888 = vmatpush1.msra.mxu0 0.0
    %1889 = vmatprep.subr.mxu0 0.0
    %1890 = vmatpush1.msra.mxu0 0.0
    %1891 = vmatprep.subr.mxu0 0.0
    %1892 = vmatpush1.msra.mxu0 0.0
    %1893 = vmatprep.subr.mxu0 0.0
    %1894 = vmatpush1.msra.mxu0 0.0
    %1895 = vmatprep.subr.mxu0 0.0
    %1896 = vmatpush1.msra.mxu0 0.0
    %1897 = vmatprep.subr.mxu0 0.0
    %1898 = vmatpush1.msra.mxu0 0.0
    %1899 = vmatprep.subr.mxu0 0.0
    %1900 = vmatpush1.msra.mxu0 0.0
    %1901 = vmatprep.subr.mxu0 0.0
    %1902 = vmatpush1.msra.mxu0 0.0
    %1903 = vmatprep.subr.mxu0 0.0
    %1904 = vmatpush1.msra.mxu0 0.0
    %1905 = vmatprep.subr.mxu0 0.0
    %1906 = vmatpush1.msra.mxu0 0.0
    %1907 = vmatprep.subr.mxu0 0.0
    %1908 = vmatpush1.msra.mxu0 0.0
    %1909 = vmatprep.subr.mxu0 0.0
    %1910 = vmatpush1.msra.mxu0 0.0
    %1911 = vmatprep.subr.mxu0 0.0
    %1912 = vmatpush1.msra.mxu0 0.0
    %1913 = vmatprep.subr.mxu0 0.0
    %1914 = vmatpush1.msra.mxu0 0.0
    %1915 = vmatprep.subr.mxu0 0.0
    %1916 = vmatpush1.msra.mxu0 0.0
    %1917 = vmatprep.subr.mxu0 0.0
    %1918 = vmatpush1.msra.mxu0 0.0
    %1919 = vmatprep.subr.mxu0 0.0
    %1920 = vmatpush1.msra.mxu0 0.0
    %1921 = vmatprep.subr.mxu0 0.0
    %1922 = vmatpush1.msra.mxu0 0.0
    %1923 = vmatprep.subr.mxu0 0.0
    %1924 = vmatpush1.msra.mxu0 0.0
    %1925 = vmatprep.subr.mxu0 0.0
    %1926 = vmatpush1.msra.mxu0 0.0
    %1927 = vmatprep.mubr.f32.mxu0 0.0
    %1928 = vmatmul.mubr.f32.gmra.mrb[0].mxu0 %v1727
    %v1929 = vpop.f32.mrb[0].mxu0
    %v1930 = vadd.f32 %v1689, %v1929
    %v1931 = vpop.f32.mrb[0].mxu0
    %v1932 = vadd.f32 %v1689, %v1931
    %1933 = vmatprep.mubr.f32.mxu0 0.0
    %1934 = vmatmul.mubr.f32.gmra.mrb[0].mxu0 %v1730
    %v1935 = vpop.f32.mrb[0].mxu0
    %v1936 = vadd.f32 %v1694, %v1935
    %v1937 = vpop.f32.mrb[0].mxu0
    %v1938 = vadd.f32 %v1694, %v1937
    %1939 = vmatprep.mubr.f32.mxu0 0.0
    %1940 = vmatmul.mubr.f32.gmra.mrb[0].mxu0 %v1733
    %v1941 = vpop.f32.mrb[0].mxu0
    %v1942 = vadd.f32 %v1699, %v1941
    %v1943 = vpop.f32.mrb[0].mxu0
    %v1944 = vadd.f32 %v1699, %v1943
    %1945 = vmatprep.mubr.f32.mxu0 0.0
    %1946 = vmatmul.mubr.f32.gmra.mrb[0].mxu0 %v1736
    %v1947 = vpop.f32.mrb[0].mxu0
    %v1948 = vadd.f32 %v1704, %v1947
    %v1949 = vpop.f32.mrb[0].mxu0
    %v1950 = vadd.f32 %v1704, %v1949
    %1951 = vmatprep.mubr.f32.mxu0 0.0
    %1952 = vmatmul.mubr.f32.gmra.mrb[0].mxu0 %v1739
    %v1953 = vpop.f32.mrb[0].mxu0
    %v1954 = vadd.f32 %v1709, %v1953
    %v1955 = vpop.f32.mrb[0].mxu0
    %v1956 = vadd.f32 %v1709, %v1955
    %1957 = vmatprep.mubr.f32.mxu0 0.0
    %1958 = vmatmul.mubr.f32.gmra.mrb[0].mxu0 %v1742
    %v1959 = vpop.f32.mrb[0].mxu0
    %v1960 = vadd.f32 %v1714, %v1959
    %v1961 = vpop.f32.mrb[0].mxu0
    %v1962 = vadd.f32 %v1714, %v1961
    %1963 = vmatprep.mubr.f32.mxu0 0.0
    %1964 = vmatmul.mubr.f32.gmra.mrb[0].mxu0 %v1745
    %v1965 = vpop.f32.mrb[0].mxu0
    %v1966 = vadd.f32 %v1719, %v1965
    %v1967 = vpop.f32.mrb[0].mxu0
    %v1968 = vadd.f32 %v1719, %v1967
    %1969 = vmatprep.mubr.f32.mxu0 0.0
    %1970 = vmatmul.mubr.f32.gmra.mrb[0].mxu0 %v1748
    %v1971 = vpop.f32.mrb[0].mxu0
    %v1972 = vadd.f32 %v1724, %v1971
    %v1973 = vpop.f32.mrb[0].mxu0
    %v1974 = vadd.f32 %v1724, %v1973
    %1975 = vdwg.mxu0
    %v1976 = vtanh.pop %v1817
    %v1977 = vtanh.pop %v1819
    %v1978 = vtanh.pop %v1930
    %v1979 = vtanh.pop %v1932
    %v1980 = vtanh.pop %v1823
    %v1981 = vtanh.pop %v1825
    %v1982 = vtanh.pop %v1936
    %v1983 = vtanh.pop %v1938
    %v1984 = vtanh.pop %v1829
    %v1985 = vtanh.pop %v1831
    %v1986 = vtanh.pop %v1942
    %v1987 = vtanh.pop %v1944
    %v1988 = vtanh.pop %v1835
    %v1989 = vtanh.pop %v1837
    %v1990 = vtanh.pop %v1948
    %v1991 = vtanh.pop %v1950
    %v1992 = vtanh.pop %v1841
    %v1993 = vtanh.pop %v1843
    %v1994 = vtanh.pop %v1954
    %v1995 = vtanh.pop %v1956
    %v1996 = vtanh.pop %v1847
    %v1997 = vtanh.pop %v1849
    %v1998 = vtanh.pop %v1960
    %v1999 = vtanh.pop %v1962
    %v2000 = vtanh.pop %v1853
    %v2001 = vtanh.pop %v1855
    %v2002 = vtanh.pop %v1966
    %v2003 = vtanh.pop %v1968
    %v2004 = vtanh.pop %v1859
    %v2005 = vtanh.pop %v1861
    %v2006 = vtanh.pop %v1972
    %v2007 = vtanh.pop %v1974
    %s2008 = scalar_lea.vmem %s5, 128
    %v2009 = vld [vmem:[%s2008] sm:$0xff]
    %v2010 = vld [vmem:[%s2008 + $0x8] sm:$0xff]
    %v2011 = vld [vmem:[%s2008 + $0x10] sm:$0xff]
    %v2012 = vld [vmem:[%s2008 + $0x18] sm:$0xff]
    %v2013 = vld [vmem:[%s2008 + $0x20] sm:$0xff]
    %v2014 = vld [vmem:[%s2008 + $0x28] sm:$0xff]
    %v2015 = vld [vmem:[%s2008 + $0x30] sm:$0xff]
    %v2016 = vld [vmem:[%s2008 + $0x38] sm:$0xff]
    %s2017 = scalar_lea.vmem %s6, 128
    %v2018 = vld [vmem:[%s2017] sm:$0xff]
    %v2019 = vld [vmem:[%s2017 + $0x8] sm:$0xff]
    %v2020 = vld [vmem:[%s2017 + $0x10] sm:$0xff]
    %v2021 = vld [vmem:[%s2017 + $0x18] sm:$0xff]
    %v2022 = vld [vmem:[%s2017 + $0x20] sm:$0xff]
    %v2023 = vld [vmem:[%s2017 + $0x28] sm:$0xff]
    %v2024 = vld [vmem:[%s2017 + $0x30] sm:$0xff]
    %v2025 = vld [vmem:[%s2017 + $0x38] sm:$0xff]
    %2027 = vset.pattern.permute.xlu0 0
    %2028 = vperm.xlu0 %2027, %v2018
    %v2029 = vpop.permute.xlu0 %2028
    %2032 = vset.pattern.permute.xlu0 0
    %2033 = vperm.xlu0 %2032, %v2019
    %v2034 = vpop.permute.xlu0 %2033
    %2037 = vset.pattern.permute.xlu0 0
    %2038 = vperm.xlu0 %2037, %v2020
    %v2039 = vpop.permute.xlu0 %2038
    %2042 = vset.pattern.permute.xlu0 0
    %2043 = vperm.xlu0 %2042, %v2021
    %v2044 = vpop.permute.xlu0 %2043
    %2047 = vset.pattern.permute.xlu0 0
    %2048 = vperm.xlu0 %2047, %v2022
    %v2049 = vpop.permute.xlu0 %2048
    %2052 = vset.pattern.permute.xlu0 0
    %2053 = vperm.xlu0 %2052, %v2023
    %v2054 = vpop.permute.xlu0 %2053
    %2057 = vset.pattern.permute.xlu0 0
    %2058 = vperm.xlu0 %2057, %v2024
    %v2059 = vpop.permute.xlu0 %2058
    %2062 = vset.pattern.permute.xlu0 0
    %2063 = vperm.xlu0 %2062, %v2025
    %v2064 = vpop.permute.xlu0 %2063
    %v2067 = vsel %vm303, %v2009, 0
    %v2070 = vsel %vm303, %v2010, 0
    %v2073 = vsel %vm303, %v2011, 0
    %v2076 = vsel %vm303, %v2012, 0
    %v2079 = vsel %vm303, %v2013, 0
    %v2082 = vsel %vm303, %v2014, 0
    %v2085 = vsel %vm303, %v2015, 0
    %v2088 = vsel %vm303, %v2016, 0
    %2090 = vmatprep.subr.mxu0 %v1977
    %2091 = vmatpush1.msra.mxu0 %v1976
    %2092 = vmatprep.subr.mxu0 %v1981
    %2093 = vmatpush1.msra.mxu0 %v1980
    %2094 = vmatprep.subr.mxu0 %v1985
    %2095 = vmatpush1.msra.mxu0 %v1984
    %2096 = vmatprep.subr.mxu0 %v1989
    %2097 = vmatpush1.msra.mxu0 %v1988
    %2098 = vmatprep.subr.mxu0 %v1993
    %2099 = vmatpush1.msra.mxu0 %v1992
    %2100 = vmatprep.subr.mxu0 %v1997
    %2101 = vmatpush1.msra.mxu0 %v1996
    %2102 = vmatprep.subr.mxu0 %v2001
    %2103 = vmatpush1.msra.mxu0 %v2000
    %2104 = vmatprep.subr.mxu0 %v2005
    %2105 = vmatpush1.msra.mxu0 %v2004
    %2106 = vmatprep.subr.mxu0 0.0
    %2107 = vmatpush1.msra.mxu0 0.0
    %2108 = vmatprep.subr.mxu0 0.0
    %2109 = vmatpush1.msra.mxu0 0.0
    %2110 = vmatprep.subr.mxu0 0.0
    %2111 = vmatpush1.msra.mxu0 0.0
    %2112 = vmatprep.subr.mxu0 0.0
    %2113 = vmatpush1.msra.mxu0 0.0
    %2114 = vmatprep.subr.mxu0 0.0
    %2115 = vmatpush1.msra.mxu0 0.0
    %2116 = vmatprep.subr.mxu0 0.0
    %2117 = vmatpush1.msra.mxu0 0.0
    %2118 = vmatprep.subr.mxu0 0.0
    %2119 = vmatpush1.msra.mxu0 0.0
    %2120 = vmatprep.subr.mxu0 0.0
    %2121 = vmatpush1.msra.mxu0 0.0
    %2122 = vmatprep.subr.mxu0 0.0
    %2123 = vmatpush1.msra.mxu0 0.0
    %2124 = vmatprep.subr.mxu0 0.0
    %2125 = vmatpush1.msra.mxu0 0.0
    %2126 = vmatprep.subr.mxu0 0.0
    %2127 = vmatpush1.msra.mxu0 0.0
    %2128 = vmatprep.subr.mxu0 0.0
    %2129 = vmatpush1.msra.mxu0 0.0
    %2130 = vmatprep.subr.mxu0 0.0
    %2131 = vmatpush1.msra.mxu0 0.0
    %2132 = vmatprep.subr.mxu0 0.0
    %2133 = vmatpush1.msra.mxu0 0.0
    %2134 = vmatprep.subr.mxu0 0.0
    %2135 = vmatpush1.msra.mxu0 0.0
    %2136 = vmatprep.subr.mxu0 0.0
    %2137 = vmatpush1.msra.mxu0 0.0
    %2138 = vmatprep.subr.mxu0 0.0
    %2139 = vmatpush1.msra.mxu0 0.0
    %2140 = vmatprep.subr.mxu0 0.0
    %2141 = vmatpush1.msra.mxu0 0.0
    %2142 = vmatprep.subr.mxu0 0.0
    %2143 = vmatpush1.msra.mxu0 0.0
    %2144 = vmatprep.subr.mxu0 0.0
    %2145 = vmatpush1.msra.mxu0 0.0
    %2146 = vmatprep.subr.mxu0 0.0
    %2147 = vmatpush1.msra.mxu0 0.0
    %2148 = vmatprep.subr.mxu0 0.0
    %2149 = vmatpush1.msra.mxu0 0.0
    %2150 = vmatprep.subr.mxu0 0.0
    %2151 = vmatpush1.msra.mxu0 0.0
    %2152 = vmatprep.subr.mxu0 0.0
    %2153 = vmatpush1.msra.mxu0 0.0
    %2154 = vmatprep.mubr.f32.mxu0 0.0
    %2155 = vmatmul.mubr.f32.gmra.mrb[0].mxu0 %v2067
    %v2156 = vpop.f32.mrb[0].mxu0
    %v2157 = vadd.f32 %v2029, %v2156
    %v2158 = vpop.f32.mrb[0].mxu0
    %v2159 = vadd.f32 %v2029, %v2158
    %2160 = vmatprep.mubr.f32.mxu0 0.0
    %2161 = vmatmul.mubr.f32.gmra.mrb[0].mxu0 %v2070
    %v2162 = vpop.f32.mrb[0].mxu0
    %v2163 = vadd.f32 %v2034, %v2162
    %v2164 = vpop.f32.mrb[0].mxu0
    %v2165 = vadd.f32 %v2034, %v2164
    %2166 = vmatprep.mubr.f32.mxu0 0.0
    %2167 = vmatmul.mubr.f32.gmra.mrb[0].mxu0 %v2073
    %v2168 = vpop.f32.mrb[0].mxu0
    %v2169 = vadd.f32 %v2039, %v2168
    %v2170 = vpop.f32.mrb[0].mxu0
    %v2171 = vadd.f32 %v2039, %v2170
    %2172 = vmatprep.mubr.f32.mxu0 0.0
    %2173 = vmatmul.mubr.f32.gmra.mrb[0].mxu0 %v2076
    %v2174 = vpop.f32.mrb[0].mxu0
    %v2175 = vadd.f32 %v2044, %v2174
    %v2176 = vpop.f32.mrb[0].mxu0
    %v2177 = vadd.f32 %v2044, %v2176
    %2178 = vmatprep.mubr.f32.mxu0 0.0
    %2179 = vmatmul.mubr.f32.gmra.mrb[0].mxu0 %v2079
    %v2180 = vpop.f32.mrb[0].mxu0
    %v2181 = vadd.f32 %v2049, %v2180
    %v2182 = vpop.f32.mrb[0].mxu0
    %v2183 = vadd.f32 %v2049, %v2182
    %2184 = vmatprep.mubr.f32.mxu0 0.0
    %2185 = vmatmul.mubr.f32.gmra.mrb[0].mxu0 %v2082
    %v2186 = vpop.f32.mrb[0].mxu0
    %v2187 = vadd.f32 %v2054, %v2186
    %v2188 = vpop.f32.mrb[0].mxu0
    %v2189 = vadd.f32 %v2054, %v2188
    %2190 = vmatprep.mubr.f32.mxu0 0.0
    %2191 = vmatmul.mubr.f32.gmra.mrb[0].mxu0 %v2085
    %v2192 = vpop.f32.mrb[0].mxu0
    %v2193 = vadd.f32 %v2059, %v2192
    %v2194 = vpop.f32.mrb[0].mxu0
    %v2195 = vadd.f32 %v2059, %v2194
    %2196 = vmatprep.mubr.f32.mxu0 0.0
    %2197 = vmatmul.mubr.f32.gmra.mrb[0].mxu0 %v2088
    %v2198 = vpop.f32.mrb[0].mxu0
    %v2199 = vadd.f32 %v2064, %v2198
    %v2200 = vpop.f32.mrb[0].mxu0
    %v2201 = vadd.f32 %v2064, %v2200
    %2202 = vdwg.mxu0
    %2203 = vmatprep.subr.mxu0 %v1979
    %2204 = vmatpush1.msra.mxu0 %v1978
    %2205 = vmatprep.subr.mxu0 %v1983
    %2206 = vmatpush1.msra.mxu0 %v1982
    %2207 = vmatprep.subr.mxu0 %v1987
    %2208 = vmatpush1.msra.mxu0 %v1986
    %2209 = vmatprep.subr.mxu0 %v1991
    %2210 = vmatpush1.msra.mxu0 %v1990
    %2211 = vmatprep.subr.mxu0 %v1995
    %2212 = vmatpush1.msra.mxu0 %v1994
    %2213 = vmatprep.subr.mxu0 %v1999
    %2214 = vmatpush1.msra.mxu0 %v1998
    %2215 = vmatprep.subr.mxu0 %v2003
    %2216 = vmatpush1.msra.mxu0 %v2002
    %2217 = vmatprep.subr.mxu0 %v2007
    %2218 = vmatpush1.msra.mxu0 %v2006
    %2219 = vmatprep.subr.mxu0 0.0
    %2220 = vmatpush1.msra.mxu0 0.0
    %2221 = vmatprep.subr.mxu0 0.0
    %2222 = vmatpush1.msra.mxu0 0.0
    %2223 = vmatprep.subr.mxu0 0.0
    %2224 = vmatpush1.msra.mxu0 0.0
    %2225 = vmatprep.subr.mxu0 0.0
    %2226 = vmatpush1.msra.mxu0 0.0
    %2227 = vmatprep.subr.mxu0 0.0
    %2228 = vmatpush1.msra.mxu0 0.0
    %2229 = vmatprep.subr.mxu0 0.0
    %2230 = vmatpush1.msra.mxu0 0.0
    %2231 = vmatprep.subr.mxu0 0.0
    %2232 = vmatpush1.msra.mxu0 0.0
    %2233 = vmatprep.subr.mxu0 0.0
    %2234 = vmatpush1.msra.mxu0 0.0
    %2235 = vmatprep.subr.mxu0 0.0
    %2236 = vmatpush1.msra.mxu0 0.0
    %2237 = vmatprep.subr.mxu0 0.0
    %2238 = vmatpush1.msra.mxu0 0.0
    %2239 = vmatprep.subr.mxu0 0.0
    %2240 = vmatpush1.msra.mxu0 0.0
    %2241 = vmatprep.subr.mxu0 0.0
    %2242 = vmatpush1.msra.mxu0 0.0
    %2243 = vmatprep.subr.mxu0 0.0
    %2244 = vmatpush1.msra.mxu0 0.0
    %2245 = vmatprep.subr.mxu0 0.0
    %2246 = vmatpush1.msra.mxu0 0.0
    %2247 = vmatprep.subr.mxu0 0.0
    %2248 = vmatpush1.msra.mxu0 0.0
    %2249 = vmatprep.subr.mxu0 0.0
    %2250 = vmatpush1.msra.mxu0 0.0
    %2251 = vmatprep.subr.mxu0 0.0
    %2252 = vmatpush1.msra.mxu0 0.0
    %2253 = vmatprep.subr.mxu0 0.0
    %2254 = vmatpush1.msra.mxu0 0.0
    %2255 = vmatprep.subr.mxu0 0.0
    %2256 = vmatpush1.msra.mxu0 0.0
    %2257 = vmatprep.subr.mxu0 0.0
    %2258 = vmatpush1.msra.mxu0 0.0
    %2259 = vmatprep.subr.mxu0 0.0
    %2260 = vmatpush1.msra.mxu0 0.0
    %2261 = vmatprep.subr.mxu0 0.0
    %2262 = vmatpush1.msra.mxu0 0.0
    %2263 = vmatprep.subr.mxu0 0.0
    %2264 = vmatpush1.msra.mxu0 0.0
    %2265 = vmatprep.subr.mxu0 0.0
    %2266 = vmatpush1.msra.mxu0 0.0
    %2267 = vmatprep.mubr.f32.mxu0 0.0
    %2268 = vmatmul.mubr.f32.gmra.mrb[0].mxu0 %v2067
    %v2269 = vpop.f32.mrb[0].mxu0
    %v2270 = vadd.f32 %v2029, %v2269
    %v2271 = vpop.f32.mrb[0].mxu0
    %v2272 = vadd.f32 %v2029, %v2271
    %2273 = vmatprep.mubr.f32.mxu0 0.0
    %2274 = vmatmul.mubr.f32.gmra.mrb[0].mxu0 %v2070
    %v2275 = vpop.f32.mrb[0].mxu0
    %v2276 = vadd.f32 %v2034, %v2275
    %v2277 = vpop.f32.mrb[0].mxu0
    %v2278 = vadd.f32 %v2034, %v2277
    %2279 = vmatprep.mubr.f32.mxu0 0.0
    %2280 = vmatmul.mubr.f32.gmra.mrb[0].mxu0 %v2073
    %v2281 = vpop.f32.mrb[0].mxu0
    %v2282 = vadd.f32 %v2039, %v2281
    %v2283 = vpop.f32.mrb[0].mxu0
    %v2284 = vadd.f32 %v2039, %v2283
    %2285 = vmatprep.mubr.f32.mxu0 0.0
    %2286 = vmatmul.mubr.f32.gmra.mrb[0].mxu0 %v2076
    %v2287 = vpop.f32.mrb[0].mxu0
    %v2288 = vadd.f32 %v2044, %v2287
    %v2289 = vpop.f32.mrb[0].mxu0
    %v2290 = vadd.f32 %v2044, %v2289
    %2291 = vmatprep.mubr.f32.mxu0 0.0
    %2292 = vmatmul.mubr.f32.gmra.mrb[0].mxu0 %v2079
    %v2293 = vpop.f32.mrb[0].mxu0
    %v2294 = vadd.f32 %v2049, %v2293
    %v2295 = vpop.f32.mrb[0].mxu0
    %v2296 = vadd.f32 %v2049, %v2295
    %2297 = vmatprep.mubr.f32.mxu0 0.0
    %2298 = vmatmul.mubr.f32.gmra.mrb[0].mxu0 %v2082
    %v2299 = vpop.f32.mrb[0].mxu0
    %v2300 = vadd.f32 %v2054, %v2299
    %v2301 = vpop.f32.mrb[0].mxu0
    %v2302 = vadd.f32 %v2054, %v2301
    %2303 = vmatprep.mubr.f32.mxu0 0.0
    %2304 = vmatmul.mubr.f32.gmra.mrb[0].mxu0 %v2085
    %v2305 = vpop.f32.mrb[0].mxu0
    %v2306 = vadd.f32 %v2059, %v2305
    %v2307 = vpop.f32.mrb[0].mxu0
    %v2308 = vadd.f32 %v2059, %v2307
    %2309 = vmatprep.mubr.f32.mxu0 0.0
    %2310 = vmatmul.mubr.f32.gmra.mrb[0].mxu0 %v2088
    %v2311 = vpop.f32.mrb[0].mxu0
    %v2312 = vadd.f32 %v2064, %v2311
    %v2313 = vpop.f32.mrb[0].mxu0
    %v2314 = vadd.f32 %v2064, %v2313
    %2315 = vdwg.mxu0
    %v2316 = vadd.f32 %v1636, %v2157
    %v2317 = vadd.f32 %v1637, %v2159
    %v2318 = vadd.f32 %v1638, %v2270
    %v2319 = vadd.f32 %v1639, %v2272
    %v2320 = vadd.f32 %v1640, %v2163
    %v2321 = vadd.f32 %v1641, %v2165
    %v2322 = vadd.f32 %v1642, %v2276
    %v2323 = vadd.f32 %v1643, %v2278
    %v2324 = vadd.f32 %v1644, %v2169
    %v2325 = vadd.f32 %v1645, %v2171
    %v2326 = vadd.f32 %v1646, %v2282
    %v2327 = vadd.f32 %v1647, %v2284
    %v2328 = vadd.f32 %v1648, %v2175
    %v2329 = vadd.f32 %v1649, %v2177
    %v2330 = vadd.f32 %v1650, %v2288
    %v2331 = vadd.f32 %v1651, %v2290
    %v2332 = vadd.f32 %v1652, %v2181
    %v2333 = vadd.f32 %v1653, %v2183
    %v2334 = vadd.f32 %v1654, %v2294
    %v2335 = vadd.f32 %v1655, %v2296
    %v2336 = vadd.f32 %v1656, %v2187
    %v2337 = vadd.f32 %v1657, %v2189
    %v2338 = vadd.f32 %v1658, %v2300
    %v2339 = vadd.f32 %v1659, %v2302
    %v2340 = vadd.f32 %v1660, %v2193
    %v2341 = vadd.f32 %v1661, %v2195
    %v2342 = vadd.f32 %v1662, %v2306
    %v2343 = vadd.f32 %v1663, %v2308
    %v2344 = vadd.f32 %v1664, %v2199
    %v2345 = vadd.f32 %v1665, %v2201
    %v2346 = vadd.f32 %v1666, %v2312
    %v2347 = vadd.f32 %v1667, %v2314
    %v2348 = vtanh.pop %v2316
    %v2349 = vtanh.pop %v2317
    %v2350 = vtanh.pop %v2318
    %v2351 = vtanh.pop %v2319
    %v2352 = vtanh.pop %v2320
    %v2353 = vtanh.pop %v2321
    %v2354 = vtanh.pop %v2322
    %v2355 = vtanh.pop %v2323
    %v2356 = vtanh.pop %v2324
    %v2357 = vtanh.pop %v2325
    %v2358 = vtanh.pop %v2326
    %v2359 = vtanh.pop %v2327
    %v2360 = vtanh.pop %v2328
    %v2361 = vtanh.pop %v2329
    %v2362 = vtanh.pop %v2330
    %v2363 = vtanh.pop %v2331
    %v2364 = vtanh.pop %v2332
    %v2365 = vtanh.pop %v2333
    %v2366 = vtanh.pop %v2334
    %v2367 = vtanh.pop %v2335
    %v2368 = vtanh.pop %v2336
    %v2369 = vtanh.pop %v2337
    %v2370 = vtanh.pop %v2338
    %v2371 = vtanh.pop %v2339
    %v2372 = vtanh.pop %v2340
    %v2373 = vtanh.pop %v2341
    %v2374 = vtanh.pop %v2342
    %v2375 = vtanh.pop %v2343
    %v2376 = vtanh.pop %v2344
    %v2377 = vtanh.pop %v2345
    %v2378 = vtanh.pop %v2346
    %v2379 = vtanh.pop %v2347
    %s2380 = scalar_lea.vmem %s3, 192
    %v2381 = vld [vmem:[%s2380] sm:$0xff]
    %v2382 = vld [vmem:[%s2380 + $0x8] sm:$0xff]
    %v2383 = vld [vmem:[%s2380 + $0x10] sm:$0xff]
    %v2384 = vld [vmem:[%s2380 + $0x18] sm:$0xff]
    %v2385 = vld [vmem:[%s2380 + $0x20] sm:$0xff]
    %v2386 = vld [vmem:[%s2380 + $0x28] sm:$0xff]
    %v2387 = vld [vmem:[%s2380 + $0x30] sm:$0xff]
    %v2388 = vld [vmem:[%s2380 + $0x38] sm:$0xff]
    %s2389 = scalar_lea.vmem %s4, 192
    %v2390 = vld [vmem:[%s2389] sm:$0xff]
    %v2391 = vld [vmem:[%s2389 + $0x8] sm:$0xff]
    %v2392 = vld [vmem:[%s2389 + $0x10] sm:$0xff]
    %v2393 = vld [vmem:[%s2389 + $0x18] sm:$0xff]
    %v2394 = vld [vmem:[%s2389 + $0x20] sm:$0xff]
    %v2395 = vld [vmem:[%s2389 + $0x28] sm:$0xff]
    %v2396 = vld [vmem:[%s2389 + $0x30] sm:$0xff]
    %v2397 = vld [vmem:[%s2389 + $0x38] sm:$0xff]
    %2399 = vset.pattern.permute.xlu0 0
    %2400 = vperm.xlu0 %2399, %v2390
    %v2401 = vpop.permute.xlu0 %2400
    %2404 = vset.pattern.permute.xlu0 0
    %2405 = vperm.xlu0 %2404, %v2391
    %v2406 = vpop.permute.xlu0 %2405
    %2409 = vset.pattern.permute.xlu0 0
    %2410 = vperm.xlu0 %2409, %v2392
    %v2411 = vpop.permute.xlu0 %2410
    %2414 = vset.pattern.permute.xlu0 0
    %2415 = vperm.xlu0 %2414, %v2393
    %v2416 = vpop.permute.xlu0 %2415
    %2419 = vset.pattern.permute.xlu0 0
    %2420 = vperm.xlu0 %2419, %v2394
    %v2421 = vpop.permute.xlu0 %2420
    %2424 = vset.pattern.permute.xlu0 0
    %2425 = vperm.xlu0 %2424, %v2395
    %v2426 = vpop.permute.xlu0 %2425
    %2429 = vset.pattern.permute.xlu0 0
    %2430 = vperm.xlu0 %2429, %v2396
    %v2431 = vpop.permute.xlu0 %2430
    %2434 = vset.pattern.permute.xlu0 0
    %2435 = vperm.xlu0 %2434, %v2397
    %v2436 = vpop.permute.xlu0 %2435
    %v2439 = vsel %vm303, %v2381, 0
    %v2442 = vsel %vm303, %v2382, 0
    %v2445 = vsel %vm303, %v2383, 0
    %v2448 = vsel %vm303, %v2384, 0
    %v2451 = vsel %vm303, %v2385, 0
    %v2454 = vsel %vm303, %v2386, 0
    %v2457 = vsel %vm303, %v2387, 0
    %v2460 = vsel %vm303, %v2388, 0
    %2462 = vmatprep.subr.mxu0 %v2349
    %2463 = vmatpush1.msra.mxu0 %v2348
    %2464 = vmatprep.subr.mxu0 %v2353
    %2465 = vmatpush1.msra.mxu0 %v2352
    %2466 = vmatprep.subr.mxu0 %v2357
    %2467 = vmatpush1.msra.mxu0 %v2356
    %2468 = vmatprep.subr.mxu0 %v2361
    %2469 = vmatpush1.msra.mxu0 %v2360
    %2470 = vmatprep.subr.mxu0 %v2365
    %2471 = vmatpush1.msra.mxu0 %v2364
    %2472 = vmatprep.subr.mxu0 %v2369
    %2473 = vmatpush1.msra.mxu0 %v2368
    %2474 = vmatprep.subr.mxu0 %v2373
    %2475 = vmatpush1.msra.mxu0 %v2372
    %2476 = vmatprep.subr.mxu0 %v2377
    %2477 = vmatpush1.msra.mxu0 %v2376
    %2478 = vmatprep.subr.mxu0 0.0
    %2479 = vmatpush1.msra.mxu0 0.0
    %2480 = vmatprep.subr.mxu0 0.0
    %2481 = vmatpush1.msra.mxu0 0.0
    %2482 = vmatprep.subr.mxu0 0.0
    %2483 = vmatpush1.msra.mxu0 0.0
    %2484 = vmatprep.subr.mxu0 0.0
    %2485 = vmatpush1.msra.mxu0 0.0
    %2486 = vmatprep.subr.mxu0 0.0
    %2487 = vmatpush1.msra.mxu0 0.0
    %2488 = vmatprep.subr.mxu0 0.0
    %2489 = vmatpush1.msra.mxu0 0.0
    %2490 = vmatprep.subr.mxu0 0.0
    %2491 = vmatpush1.msra.mxu0 0.0
    %2492 = vmatprep.subr.mxu0 0.0
    %2493 = vmatpush1.msra.mxu0 0.0
    %2494 = vmatprep.subr.mxu0 0.0
    %2495 = vmatpush1.msra.mxu0 0.0
    %2496 = vmatprep.subr.mxu0 0.0
    %2497 = vmatpush1.msra.mxu0 0.0
    %2498 = vmatprep.subr.mxu0 0.0
    %2499 = vmatpush1.msra.mxu0 0.0
    %2500 = vmatprep.subr.mxu0 0.0
    %2501 = vmatpush1.msra.mxu0 0.0
    %2502 = vmatprep.subr.mxu0 0.0
    %2503 = vmatpush1.msra.mxu0 0.0
    %2504 = vmatprep.subr.mxu0 0.0
    %2505 = vmatpush1.msra.mxu0 0.0
    %2506 = vmatprep.subr.mxu0 0.0
    %2507 = vmatpush1.msra.mxu0 0.0
    %2508 = vmatprep.subr.mxu0 0.0
    %2509 = vmatpush1.msra.mxu0 0.0
    %2510 = vmatprep.subr.mxu0 0.0
    %2511 = vmatpush1.msra.mxu0 0.0
    %2512 = vmatprep.subr.mxu0 0.0
    %2513 = vmatpush1.msra.mxu0 0.0
    %2514 = vmatprep.subr.mxu0 0.0
    %2515 = vmatpush1.msra.mxu0 0.0
    %2516 = vmatprep.subr.mxu0 0.0
    %2517 = vmatpush1.msra.mxu0 0.0
    %2518 = vmatprep.subr.mxu0 0.0
    %2519 = vmatpush1.msra.mxu0 0.0
    %2520 = vmatprep.subr.mxu0 0.0
    %2521 = vmatpush1.msra.mxu0 0.0
    %2522 = vmatprep.subr.mxu0 0.0
    %2523 = vmatpush1.msra.mxu0 0.0
    %2524 = vmatprep.subr.mxu0 0.0
    %2525 = vmatpush1.msra.mxu0 0.0
    %2526 = vmatprep.mubr.f32.mxu0 0.0
    %2527 = vmatmul.mubr.f32.gmra.mrb[0].mxu0 %v2439
    %v2528 = vpop.f32.mrb[0].mxu0
    %v2529 = vadd.f32 %v2401, %v2528
    %v2530 = vpop.f32.mrb[0].mxu0
    %v2531 = vadd.f32 %v2401, %v2530
    %2532 = vmatprep.mubr.f32.mxu0 0.0
    %2533 = vmatmul.mubr.f32.gmra.mrb[0].mxu0 %v2442
    %v2534 = vpop.f32.mrb[0].mxu0
    %v2535 = vadd.f32 %v2406, %v2534
    %v2536 = vpop.f32.mrb[0].mxu0
    %v2537 = vadd.f32 %v2406, %v2536
    %2538 = vmatprep.mubr.f32.mxu0 0.0
    %2539 = vmatmul.mubr.f32.gmra.mrb[0].mxu0 %v2445
    %v2540 = vpop.f32.mrb[0].mxu0
    %v2541 = vadd.f32 %v2411, %v2540
    %v2542 = vpop.f32.mrb[0].mxu0
    %v2543 = vadd.f32 %v2411, %v2542
    %2544 = vmatprep.mubr.f32.mxu0 0.0
    %2545 = vmatmul.mubr.f32.gmra.mrb[0].mxu0 %v2448
    %v2546 = vpop.f32.mrb[0].mxu0
    %v2547 = vadd.f32 %v2416, %v2546
    %v2548 = vpop.f32.mrb[0].mxu0
    %v2549 = vadd.f32 %v2416, %v2548
    %2550 = vmatprep.mubr.f32.mxu0 0.0
    %2551 = vmatmul.mubr.f32.gmra.mrb[0].mxu0 %v2451
    %v2552 = vpop.f32.mrb[0].mxu0
    %v2553 = vadd.f32 %v2421, %v2552
    %v2554 = vpop.f32.mrb[0].mxu0
    %v2555 = vadd.f32 %v2421, %v2554
    %2556 = vmatprep.mubr.f32.mxu0 0.0
    %2557 = vmatmul.mubr.f32.gmra.mrb[0].mxu0 %v2454
    %v2558 = vpop.f32.mrb[0].mxu0
    %v2559 = vadd.f32 %v2426, %v2558
    %v2560 = vpop.f32.mrb[0].mxu0
    %v2561 = vadd.f32 %v2426, %v2560
    %2562 = vmatprep.mubr.f32.mxu0 0.0
    %2563 = vmatmul.mubr.f32.gmra.mrb[0].mxu0 %v2457
    %v2564 = vpop.f32.mrb[0].mxu0
    %v2565 = vadd.f32 %v2431, %v2564
    %v2566 = vpop.f32.mrb[0].mxu0
    %v2567 = vadd.f32 %v2431, %v2566
    %2568 = vmatprep.mubr.f32.mxu0 0.0
    %2569 = vmatmul.mubr.f32.gmra.mrb[0].mxu0 %v2460
    %v2570 = vpop.f32.mrb[0].mxu0
    %v2571 = vadd.f32 %v2436, %v2570
    %v2572 = vpop.f32.mrb[0].mxu0
    %v2573 = vadd.f32 %v2436, %v2572
    %2574 = vdwg.mxu0
    %2575 = vmatprep.subr.mxu0 %v2351
    %2576 = vmatpush1.msra.mxu0 %v2350
    %2577 = vmatprep.subr.mxu0 %v2355
    %2578 = vmatpush1.msra.mxu0 %v2354
    %2579 = vmatprep.subr.mxu0 %v2359
    %2580 = vmatpush1.msra.mxu0 %v2358
    %2581 = vmatprep.subr.mxu0 %v2363
    %2582 = vmatpush1.msra.mxu0 %v2362
    %2583 = vmatprep.subr.mxu0 %v2367
    %2584 = vmatpush1.msra.mxu0 %v2366
    %2585 = vmatprep.subr.mxu0 %v2371
    %2586 = vmatpush1.msra.mxu0 %v2370
    %2587 = vmatprep.subr.mxu0 %v2375
    %2588 = vmatpush1.msra.mxu0 %v2374
    %2589 = vmatprep.subr.mxu0 %v2379
    %2590 = vmatpush1.msra.mxu0 %v2378
    %2591 = vmatprep.subr.mxu0 0.0
    %2592 = vmatpush1.msra.mxu0 0.0
    %2593 = vmatprep.subr.mxu0 0.0
    %2594 = vmatpush1.msra.mxu0 0.0
    %2595 = vmatprep.subr.mxu0 0.0
    %2596 = vmatpush1.msra.mxu0 0.0
    %2597 = vmatprep.subr.mxu0 0.0
    %2598 = vmatpush1.msra.mxu0 0.0
    %2599 = vmatprep.subr.mxu0 0.0
    %2600 = vmatpush1.msra.mxu0 0.0
    %2601 = vmatprep.subr.mxu0 0.0
    %2602 = vmatpush1.msra.mxu0 0.0
    %2603 = vmatprep.subr.mxu0 0.0
    %2604 = vmatpush1.msra.mxu0 0.0
    %2605 = vmatprep.subr.mxu0 0.0
    %2606 = vmatpush1.msra.mxu0 0.0
    %2607 = vmatprep.subr.mxu0 0.0
    %2608 = vmatpush1.msra.mxu0 0.0
    %2609 = vmatprep.subr.mxu0 0.0
    %2610 = vmatpush1.msra.mxu0 0.0
    %2611 = vmatprep.subr.mxu0 0.0
    %2612 = vmatpush1.msra.mxu0 0.0
    %2613 = vmatprep.subr.mxu0 0.0
    %2614 = vmatpush1.msra.mxu0 0.0
    %2615 = vmatprep.subr.mxu0 0.0
    %2616 = vmatpush1.msra.mxu0 0.0
    %2617 = vmatprep.subr.mxu0 0.0
    %2618 = vmatpush1.msra.mxu0 0.0
    %2619 = vmatprep.subr.mxu0 0.0
    %2620 = vmatpush1.msra.mxu0 0.0
    %2621 = vmatprep.subr.mxu0 0.0
    %2622 = vmatpush1.msra.mxu0 0.0
    %2623 = vmatprep.subr.mxu0 0.0
    %2624 = vmatpush1.msra.mxu0 0.0
    %2625 = vmatprep.subr.mxu0 0.0
    %2626 = vmatpush1.msra.mxu0 0.0
    %2627 = vmatprep.subr.mxu0 0.0
    %2628 = vmatpush1.msra.mxu0 0.0
    %2629 = vmatprep.subr.mxu0 0.0
    %2630 = vmatpush1.msra.mxu0 0.0
    %2631 = vmatprep.subr.mxu0 0.0
    %2632 = vmatpush1.msra.mxu0 0.0
    %2633 = vmatprep.subr.mxu0 0.0
    %2634 = vmatpush1.msra.mxu0 0.0
    %2635 = vmatprep.subr.mxu0 0.0
    %2636 = vmatpush1.msra.mxu0 0.0
    %2637 = vmatprep.subr.mxu0 0.0
    %2638 = vmatpush1.msra.mxu0 0.0
    %2639 = vmatprep.mubr.f32.mxu0 0.0
    %2640 = vmatmul.mubr.f32.gmra.mrb[0].mxu0 %v2439
    %v2641 = vpop.f32.mrb[0].mxu0
    %v2642 = vadd.f32 %v2401, %v2641
    %v2643 = vpop.f32.mrb[0].mxu0
    %v2644 = vadd.f32 %v2401, %v2643
    %2645 = vmatprep.mubr.f32.mxu0 0.0
    %2646 = vmatmul.mubr.f32.gmra.mrb[0].mxu0 %v2442
    %v2647 = vpop.f32.mrb[0].mxu0
    %v2648 = vadd.f32 %v2406, %v2647
    %v2649 = vpop.f32.mrb[0].mxu0
    %v2650 = vadd.f32 %v2406, %v2649
    %2651 = vmatprep.mubr.f32.mxu0 0.0
    %2652 = vmatmul.mubr.f32.gmra.mrb[0].mxu0 %v2445
    %v2653 = vpop.f32.mrb[0].mxu0
    %v2654 = vadd.f32 %v2411, %v2653
    %v2655 = vpop.f32.mrb[0].mxu0
    %v2656 = vadd.f32 %v2411, %v2655
    %2657 = vmatprep.mubr.f32.mxu0 0.0
    %2658 = vmatmul.mubr.f32.gmra.mrb[0].mxu0 %v2448
    %v2659 = vpop.f32.mrb[0].mxu0
    %v2660 = vadd.f32 %v2416, %v2659
    %v2661 = vpop.f32.mrb[0].mxu0
    %v2662 = vadd.f32 %v2416, %v2661
    %2663 = vmatprep.mubr.f32.mxu0 0.0
    %2664 = vmatmul.mubr.f32.gmra.mrb[0].mxu0 %v2451
    %v2665 = vpop.f32.mrb[0].mxu0
    %v2666 = vadd.f32 %v2421, %v2665
    %v2667 = vpop.f32.mrb[0].mxu0
    %v2668 = vadd.f32 %v2421, %v2667
    %2669 = vmatprep.mubr.f32.mxu0 0.0
    %2670 = vmatmul.mubr.f32.gmra.mrb[0].mxu0 %v2454
    %v2671 = vpop.f32.mrb[0].mxu0
    %v2672 = vadd.f32 %v2426, %v2671
    %v2673 = vpop.f32.mrb[0].mxu0
    %v2674 = vadd.f32 %v2426, %v2673
    %2675 = vmatprep.mubr.f32.mxu0 0.0
    %2676 = vmatmul.mubr.f32.gmra.mrb[0].mxu0 %v2457
    %v2677 = vpop.f32.mrb[0].mxu0
    %v2678 = vadd.f32 %v2431, %v2677
    %v2679 = vpop.f32.mrb[0].mxu0
    %v2680 = vadd.f32 %v2431, %v2679
    %2681 = vmatprep.mubr.f32.mxu0 0.0
    %2682 = vmatmul.mubr.f32.gmra.mrb[0].mxu0 %v2460
    %v2683 = vpop.f32.mrb[0].mxu0
    %v2684 = vadd.f32 %v2436, %v2683
    %v2685 = vpop.f32.mrb[0].mxu0
    %v2686 = vadd.f32 %v2436, %v2685
    %2687 = vdwg.mxu0
    %v2688 = vtanh.pop %v2529
    %v2689 = vtanh.pop %v2531
    %v2690 = vtanh.pop %v2642
    %v2691 = vtanh.pop %v2644
    %v2692 = vtanh.pop %v2535
    %v2693 = vtanh.pop %v2537
    %v2694 = vtanh.pop %v2648
    %v2695 = vtanh.pop %v2650
    %v2696 = vtanh.pop %v2541
    %v2697 = vtanh.pop %v2543
    %v2698 = vtanh.pop %v2654
    %v2699 = vtanh.pop %v2656
    %v2700 = vtanh.pop %v2547
    %v2701 = vtanh.pop %v2549
    %v2702 = vtanh.pop %v2660
    %v2703 = vtanh.pop %v2662
    %v2704 = vtanh.pop %v2553
    %v2705 = vtanh.pop %v2555
    %v2706 = vtanh.pop %v2666
    %v2707 = vtanh.pop %v2668
    %v2708 = vtanh.pop %v2559
    %v2709 = vtanh.pop %v2561
    %v2710 = vtanh.pop %v2672
    %v2711 = vtanh.pop %v2674
    %v2712 = vtanh.pop %v2565
    %v2713 = vtanh.pop %v2567
    %v2714 = vtanh.pop %v2678
    %v2715 = vtanh.pop %v2680
    %v2716 = vtanh.pop %v2571
    %v2717 = vtanh.pop %v2573
    %v2718 = vtanh.pop %v2684
    %v2719 = vtanh.pop %v2686
    %s2720 = scalar_lea.vmem %s5, 192
    %v2721 = vld [vmem:[%s2720] sm:$0xff]
    %v2722 = vld [vmem:[%s2720 + $0x8] sm:$0xff]
    %v2723 = vld [vmem:[%s2720 + $0x10] sm:$0xff]
    %v2724 = vld [vmem:[%s2720 + $0x18] sm:$0xff]
    %v2725 = vld [vmem:[%s2720 + $0x20] sm:$0xff]
    %v2726 = vld [vmem:[%s2720 + $0x28] sm:$0xff]
    %v2727 = vld [vmem:[%s2720 + $0x30] sm:$0xff]
    %v2728 = vld [vmem:[%s2720 + $0x38] sm:$0xff]
    %s2729 = scalar_lea.vmem %s6, 192
    %v2730 = vld [vmem:[%s2729] sm:$0xff]
    %v2731 = vld [vmem:[%s2729 + $0x8] sm:$0xff]
    %v2732 = vld [vmem:[%s2729 + $0x10] sm:$0xff]
    %v2733 = vld [vmem:[%s2729 + $0x18] sm:$0xff]
    %v2734 = vld [vmem:[%s2729 + $0x20] sm:$0xff]
    %v2735 = vld [vmem:[%s2729 + $0x28] sm:$0xff]
    %v2736 = vld [vmem:[%s2729 + $0x30] sm:$0xff]
    %v2737 = vld [vmem:[%s2729 + $0x38] sm:$0xff]
    %2739 = vset.pattern.permute.xlu0 0
    %2740 = vperm.xlu0 %2739, %v2730
    %v2741 = vpop.permute.xlu0 %2740
    %2744 = vset.pattern.permute.xlu0 0
    %2745 = vperm.xlu0 %2744, %v2731
    %v2746 = vpop.permute.xlu0 %2745
    %2749 = vset.pattern.permute.xlu0 0
    %2750 = vperm.xlu0 %2749, %v2732
    %v2751 = vpop.permute.xlu0 %2750
    %2754 = vset.pattern.permute.xlu0 0
    %2755 = vperm.xlu0 %2754, %v2733
    %v2756 = vpop.permute.xlu0 %2755
    %2759 = vset.pattern.permute.xlu0 0
    %2760 = vperm.xlu0 %2759, %v2734
    %v2761 = vpop.permute.xlu0 %2760
    %2764 = vset.pattern.permute.xlu0 0
    %2765 = vperm.xlu0 %2764, %v2735
    %v2766 = vpop.permute.xlu0 %2765
    %2769 = vset.pattern.permute.xlu0 0
    %2770 = vperm.xlu0 %2769, %v2736
    %v2771 = vpop.permute.xlu0 %2770
    %2774 = vset.pattern.permute.xlu0 0
    %2775 = vperm.xlu0 %2774, %v2737
    %v2776 = vpop.permute.xlu0 %2775
    %v2779 = vsel %vm303, %v2721, 0
    %v2782 = vsel %vm303, %v2722, 0
    %v2785 = vsel %vm303, %v2723, 0
    %v2788 = vsel %vm303, %v2724, 0
    %v2791 = vsel %vm303, %v2725, 0
    %v2794 = vsel %vm303, %v2726, 0
    %v2797 = vsel %vm303, %v2727, 0
    %v2800 = vsel %vm303, %v2728, 0
    %2802 = vmatprep.subr.mxu0 %v2689
    %2803 = vmatpush1.msra.mxu0 %v2688
    %2804 = vmatprep.subr.mxu0 %v2693
    %2805 = vmatpush1.msra.mxu0 %v2692
    %2806 = vmatprep.subr.mxu0 %v2697
    %2807 = vmatpush1.msra.mxu0 %v2696
    %2808 = vmatprep.subr.mxu0 %v2701
    %2809 = vmatpush1.msra.mxu0 %v2700
    %2810 = vmatprep.subr.mxu0 %v2705
    %2811 = vmatpush1.msra.mxu0 %v2704
    %2812 = vmatprep.subr.mxu0 %v2709
    %2813 = vmatpush1.msra.mxu0 %v2708
    %2814 = vmatprep.subr.mxu0 %v2713
    %2815 = vmatpush1.msra.mxu0 %v2712
    %2816 = vmatprep.subr.mxu0 %v2717
    %2817 = vmatpush1.msra.mxu0 %v2716
    %2818 = vmatprep.subr.mxu0 0.0
    %2819 = vmatpush1.msra.mxu0 0.0
    %2820 = vmatprep.subr.mxu0 0.0
    %2821 = vmatpush1.msra.mxu0 0.0
    %2822 = vmatprep.subr.mxu0 0.0
    %2823 = vmatpush1.msra.mxu0 0.0
    %2824 = vmatprep.subr.mxu0 0.0
    %2825 = vmatpush1.msra.mxu0 0.0
    %2826 = vmatprep.subr.mxu0 0.0
    %2827 = vmatpush1.msra.mxu0 0.0
    %2828 = vmatprep.subr.mxu0 0.0
    %2829 = vmatpush1.msra.mxu0 0.0
    %2830 = vmatprep.subr.mxu0 0.0
    %2831 = vmatpush1.msra.mxu0 0.0
    %2832 = vmatprep.subr.mxu0 0.0
    %2833 = vmatpush1.msra.mxu0 0.0
    %2834 = vmatprep.subr.mxu0 0.0
    %2835 = vmatpush1.msra.mxu0 0.0
    %2836 = vmatprep.subr.mxu0 0.0
    %2837 = vmatpush1.msra.mxu0 0.0
    %2838 = vmatprep.subr.mxu0 0.0
    %2839 = vmatpush1.msra.mxu0 0.0
    %2840 = vmatprep.subr.mxu0 0.0
    %2841 = vmatpush1.msra.mxu0 0.0
    %2842 = vmatprep.subr.mxu0 0.0
    %2843 = vmatpush1.msra.mxu0 0.0
    %2844 = vmatprep.subr.mxu0 0.0
    %2845 = vmatpush1.msra.mxu0 0.0
    %2846 = vmatprep.subr.mxu0 0.0
    %2847 = vmatpush1.msra.mxu0 0.0
    %2848 = vmatprep.subr.mxu0 0.0
    %2849 = vmatpush1.msra.mxu0 0.0
    %2850 = vmatprep.subr.mxu0 0.0
    %2851 = vmatpush1.msra.mxu0 0.0
    %2852 = vmatprep.subr.mxu0 0.0
    %2853 = vmatpush1.msra.mxu0 0.0
    %2854 = vmatprep.subr.mxu0 0.0
    %2855 = vmatpush1.msra.mxu0 0.0
    %2856 = vmatprep.subr.mxu0 0.0
    %2857 = vmatpush1.msra.mxu0 0.0
    %2858 = vmatprep.subr.mxu0 0.0
    %2859 = vmatpush1.msra.mxu0 0.0
    %2860 = vmatprep.subr.mxu0 0.0
    %2861 = vmatpush1.msra.mxu0 0.0
    %2862 = vmatprep.subr.mxu0 0.0
    %2863 = vmatpush1.msra.mxu0 0.0
    %2864 = vmatprep.subr.mxu0 0.0
    %2865 = vmatpush1.msra.mxu0 0.0
    %2866 = vmatprep.mubr.f32.mxu0 0.0
    %2867 = vmatmul.mubr.f32.gmra.mrb[0].mxu0 %v2779
    %v2868 = vpop.f32.mrb[0].mxu0
    %v2869 = vadd.f32 %v2741, %v2868
    %v2870 = vpop.f32.mrb[0].mxu0
    %v2871 = vadd.f32 %v2741, %v2870
    %2872 = vmatprep.mubr.f32.mxu0 0.0
    %2873 = vmatmul.mubr.f32.gmra.mrb[0].mxu0 %v2782
    %v2874 = vpop.f32.mrb[0].mxu0
    %v2875 = vadd.f32 %v2746, %v2874
    %v2876 = vpop.f32.mrb[0].mxu0
    %v2877 = vadd.f32 %v2746, %v2876
    %2878 = vmatprep.mubr.f32.mxu0 0.0
    %2879 = vmatmul.mubr.f32.gmra.mrb[0].mxu0 %v2785
    %v2880 = vpop.f32.mrb[0].mxu0
    %v2881 = vadd.f32 %v2751, %v2880
    %v2882 = vpop.f32.mrb[0].mxu0
    %v2883 = vadd.f32 %v2751, %v2882
    %2884 = vmatprep.mubr.f32.mxu0 0.0
    %2885 = vmatmul.mubr.f32.gmra.mrb[0].mxu0 %v2788
    %v2886 = vpop.f32.mrb[0].mxu0
    %v2887 = vadd.f32 %v2756, %v2886
    %v2888 = vpop.f32.mrb[0].mxu0
    %v2889 = vadd.f32 %v2756, %v2888
    %2890 = vmatprep.mubr.f32.mxu0 0.0
    %2891 = vmatmul.mubr.f32.gmra.mrb[0].mxu0 %v2791
    %v2892 = vpop.f32.mrb[0].mxu0
    %v2893 = vadd.f32 %v2761, %v2892
    %v2894 = vpop.f32.mrb[0].mxu0
    %v2895 = vadd.f32 %v2761, %v2894
    %2896 = vmatprep.mubr.f32.mxu0 0.0
    %2897 = vmatmul.mubr.f32.gmra.mrb[0].mxu0 %v2794
    %v2898 = vpop.f32.mrb[0].mxu0
    %v2899 = vadd.f32 %v2766, %v2898
    %v2900 = vpop.f32.mrb[0].mxu0
    %v2901 = vadd.f32 %v2766, %v2900
    %2902 = vmatprep.mubr.f32.mxu0 0.0
    %2903 = vmatmul.mubr.f32.gmra.mrb[0].mxu0 %v2797
    %v2904 = vpop.f32.mrb[0].mxu0
    %v2905 = vadd.f32 %v2771, %v2904
    %v2906 = vpop.f32.mrb[0].mxu0
    %v2907 = vadd.f32 %v2771, %v2906
    %2908 = vmatprep.mubr.f32.mxu0 0.0
    %2909 = vmatmul.mubr.f32.gmra.mrb[0].mxu0 %v2800
    %v2910 = vpop.f32.mrb[0].mxu0
    %v2911 = vadd.f32 %v2776, %v2910
    %v2912 = vpop.f32.mrb[0].mxu0
    %v2913 = vadd.f32 %v2776, %v2912
    %2914 = vdwg.mxu0
    %2915 = vmatprep.subr.mxu0 %v2691
    %2916 = vmatpush1.msra.mxu0 %v2690
    %2917 = vmatprep.subr.mxu0 %v2695
    %2918 = vmatpush1.msra.mxu0 %v2694
    %2919 = vmatprep.subr.mxu0 %v2699
    %2920 = vmatpush1.msra.mxu0 %v2698
    %2921 = vmatprep.subr.mxu0 %v2703
    %2922 = vmatpush1.msra.mxu0 %v2702
    %2923 = vmatprep.subr.mxu0 %v2707
    %2924 = vmatpush1.msra.mxu0 %v2706
    %2925 = vmatprep.subr.mxu0 %v2711
    %2926 = vmatpush1.msra.mxu0 %v2710
    %2927 = vmatprep.subr.mxu0 %v2715
    %2928 = vmatpush1.msra.mxu0 %v2714
    %2929 = vmatprep.subr.mxu0 %v2719
    %2930 = vmatpush1.msra.mxu0 %v2718
    %2931 = vmatprep.subr.mxu0 0.0
    %2932 = vmatpush1.msra.mxu0 0.0
    %2933 = vmatprep.subr.mxu0 0.0
    %2934 = vmatpush1.msra.mxu0 0.0
    %2935 = vmatprep.subr.mxu0 0.0
    %2936 = vmatpush1.msra.mxu0 0.0
    %2937 = vmatprep.subr.mxu0 0.0
    %2938 = vmatpush1.msra.mxu0 0.0
    %2939 = vmatprep.subr.mxu0 0.0
    %2940 = vmatpush1.msra.mxu0 0.0
    %2941 = vmatprep.subr.mxu0 0.0
    %2942 = vmatpush1.msra.mxu0 0.0
    %2943 = vmatprep.subr.mxu0 0.0
    %2944 = vmatpush1.msra.mxu0 0.0
    %2945 = vmatprep.subr.mxu0 0.0
    %2946 = vmatpush1.msra.mxu0 0.0
    %2947 = vmatprep.subr.mxu0 0.0
    %2948 = vmatpush1.msra.mxu0 0.0
    %2949 = vmatprep.subr.mxu0 0.0
    %2950 = vmatpush1.msra.mxu0 0.0
    %2951 = vmatprep.subr.mxu0 0.0
    %2952 = vmatpush1.msra.mxu0 0.0
    %2953 = vmatprep.subr.mxu0 0.0
    %2954 = vmatpush1.msra.mxu0 0.0
    %2955 = vmatprep.subr.mxu0 0.0
    %2956 = vmatpush1.msra.mxu0 0.0
    %2957 = vmatprep.subr.mxu0 0.0
    %2958 = vmatpush1.msra.mxu0 0.0
    %2959 = vmatprep.subr.mxu0 0.0
    %2960 = vmatpush1.msra.mxu0 0.0
    %2961 = vmatprep.subr.mxu0 0.0
    %2962 = vmatpush1.msra.mxu0 0.0
    %2963 = vmatprep.subr.mxu0 0.0
    %2964 = vmatpush1.msra.mxu0 0.0
    %2965 = vmatprep.subr.mxu0 0.0
    %2966 = vmatpush1.msra.mxu0 0.0
    %2967 = vmatprep.subr.mxu0 0.0
    %2968 = vmatpush1.msra.mxu0 0.0
    %2969 = vmatprep.subr.mxu0 0.0
    %2970 = vmatpush1.msra.mxu0 0.0
    %2971 = vmatprep.subr.mxu0 0.0
    %2972 = vmatpush1.msra.mxu0 0.0
    %2973 = vmatprep.subr.mxu0 0.0
    %2974 = vmatpush1.msra.mxu0 0.0
    %2975 = vmatprep.subr.mxu0 0.0
    %2976 = vmatpush1.msra.mxu0 0.0
    %2977 = vmatprep.subr.mxu0 0.0
    %2978 = vmatpush1.msra.mxu0 0.0
    %2979 = vmatprep.mubr.f32.mxu0 0.0
    %2980 = vmatmul.mubr.f32.gmra.mrb[0].mxu0 %v2779
    %v2981 = vpop.f32.mrb[0].mxu0
    %v2982 = vadd.f32 %v2741, %v2981
    %v2983 = vpop.f32.mrb[0].mxu0
    %v2984 = vadd.f32 %v2741, %v2983
    %2985 = vmatprep.mubr.f32.mxu0 0.0
    %2986 = vmatmul.mubr.f32.gmra.mrb[0].mxu0 %v2782
    %v2987 = vpop.f32.mrb[0].mxu0
    %v2988 = vadd.f32 %v2746, %v2987
    %v2989 = vpop.f32.mrb[0].mxu0
    %v2990 = vadd.f32 %v2746, %v2989
    %2991 = vmatprep.mubr.f32.mxu0 0.0
    %2992 = vmatmul.mubr.f32.gmra.mrb[0].mxu0 %v2785
    %v2993 = vpop.f32.mrb[0].mxu0
    %v2994 = vadd.f32 %v2751, %v2993
    %v2995 = vpop.f32.mrb[0].mxu0
    %v2996 = vadd.f32 %v2751, %v2995
    %2997 = vmatprep.mubr.f32.mxu0 0.0
    %2998 = vmatmul.mubr.f32.gmra.mrb[0].mxu0 %v2788
    %v2999 = vpop.f32.mrb[0].mxu0
    %v3000 = vadd.f32 %v2756, %v2999
    %v3001 = vpop.f32.mrb[0].mxu0
    %v3002 = vadd.f32 %v2756, %v3001
    %3003 = vmatprep.mubr.f32.mxu0 0.0
    %3004 = vmatmul.mubr.f32.gmra.mrb[0].mxu0 %v2791
    %v3005 = vpop.f32.mrb[0].mxu0
    %v3006 = vadd.f32 %v2761, %v3005
    %v3007 = vpop.f32.mrb[0].mxu0
    %v3008 = vadd.f32 %v2761, %v3007
    %3009 = vmatprep.mubr.f32.mxu0 0.0
    %3010 = vmatmul.mubr.f32.gmra.mrb[0].mxu0 %v2794
    %v3011 = vpop.f32.mrb[0].mxu0
    %v3012 = vadd.f32 %v2766, %v3011
    %v3013 = vpop.f32.mrb[0].mxu0
    %v3014 = vadd.f32 %v2766, %v3013
    %3015 = vmatprep.mubr.f32.mxu0 0.0
    %3016 = vmatmul.mubr.f32.gmra.mrb[0].mxu0 %v2797
    %v3017 = vpop.f32.mrb[0].mxu0
    %v3018 = vadd.f32 %v2771, %v3017
    %v3019 = vpop.f32.mrb[0].mxu0
    %v3020 = vadd.f32 %v2771, %v3019
    %3021 = vmatprep.mubr.f32.mxu0 0.0
    %3022 = vmatmul.mubr.f32.gmra.mrb[0].mxu0 %v2800
    %v3023 = vpop.f32.mrb[0].mxu0
    %v3024 = vadd.f32 %v2776, %v3023
    %v3025 = vpop.f32.mrb[0].mxu0
    %v3026 = vadd.f32 %v2776, %v3025
    %3027 = vdwg.mxu0
    %v3028 = vadd.f32 %v2348, %v2869
    %v3029 = vadd.f32 %v2349, %v2871
    %v3030 = vadd.f32 %v2350, %v2982
    %v3031 = vadd.f32 %v2351, %v2984
    %v3032 = vadd.f32 %v2352, %v2875
    %v3033 = vadd.f32 %v2353, %v2877
    %v3034 = vadd.f32 %v2354, %v2988
    %v3035 = vadd.f32 %v2355, %v2990
    %v3036 = vadd.f32 %v2356, %v2881
    %v3037 = vadd.f32 %v2357, %v2883
    %v3038 = vadd.f32 %v2358, %v2994
    %v3039 = vadd.f32 %v2359, %v2996
    %v3040 = vadd.f32 %v2360, %v2887
    %v3041 = vadd.f32 %v2361, %v2889
    %v3042 = vadd.f32 %v2362, %v3000
    %v3043 = vadd.f32 %v2363, %v3002
    %v3044 = vadd.f32 %v2364, %v2893
    %v3045 = vadd.f32 %v2365, %v2895
    %v3046 = vadd.f32 %v2366, %v3006
    %v3047 = vadd.f32 %v2367, %v3008
    %v3048 = vadd.f32 %v2368, %v2899
    %v3049 = vadd.f32 %v2369, %v2901
    %v3050 = vadd.f32 %v2370, %v3012
    %v3051 = vadd.f32 %v2371, %v3014
    %v3052 = vadd.f32 %v2372, %v2905
    %v3053 = vadd.f32 %v2373, %v2907
    %v3054 = vadd.f32 %v2374, %v3018
    %v3055 = vadd.f32 %v2375, %v3020
    %v3056 = vadd.f32 %v2376, %v2911
    %v3057 = vadd.f32 %v2377, %v2913
    %v3058 = vadd.f32 %v2378, %v3024
    %v3059 = vadd.f32 %v2379, %v3026
    %v3060 = vtanh.pop %v3028
    %v3061 = vtanh.pop %v3029
    %v3062 = vtanh.pop %v3030
    %v3063 = vtanh.pop %v3031
    %v3064 = vtanh.pop %v3032
    %v3065 = vtanh.pop %v3033
    %v3066 = vtanh.pop %v3034
    %v3067 = vtanh.pop %v3035
    %v3068 = vtanh.pop %v3036
    %v3069 = vtanh.pop %v3037
    %v3070 = vtanh.pop %v3038
    %v3071 = vtanh.pop %v3039
    %v3072 = vtanh.pop %v3040
    %v3073 = vtanh.pop %v3041
    %v3074 = vtanh.pop %v3042
    %v3075 = vtanh.pop %v3043
    %v3076 = vtanh.pop %v3044
    %v3077 = vtanh.pop %v3045
    %v3078 = vtanh.pop %v3046
    %v3079 = vtanh.pop %v3047
    %v3080 = vtanh.pop %v3048
    %v3081 = vtanh.pop %v3049
    %v3082 = vtanh.pop %v3050
    %v3083 = vtanh.pop %v3051
    %v3084 = vtanh.pop %v3052
    %v3085 = vtanh.pop %v3053
    %v3086 = vtanh.pop %v3054
    %v3087 = vtanh.pop %v3055
    %v3088 = vtanh.pop %v3056
    %v3089 = vtanh.pop %v3057
    %v3090 = vtanh.pop %v3058
    %v3091 = vtanh.pop %v3059
    %v3092 = vld [vmem:[%s7] sm:$0xff]
    %v3093 = vld [vmem:[%s7 + $0x8] sm:$0xff]
    %v3094 = vld [vmem:[%s8] sm:$0xff]
    %v3095 = vld [vmem:[%s8 + $0x8] sm:$0xff]
    %3097 = vset.pattern.permute.xlu0 0
    %3098 = vperm.xlu0 %3097, %v3094
    %v3099 = vpop.permute.xlu0 %3098
    %3102 = vset.pattern.permute.xlu0 0
    %3103 = vperm.xlu0 %3102, %v3095
    %v3104 = vpop.permute.xlu0 %3103
    %v3107 = vsel %vm303, %v3092, 0
    %v3110 = vsel %vm303, %v3093, 0
    %3112 = vmatprep.subr.mxu0 %v3061
    %3113 = vmatpush1.msra.mxu0 %v3060
    %3114 = vmatprep.subr.mxu0 %v3065
    %3115 = vmatpush1.msra.mxu0 %v3064
    %3116 = vmatprep.subr.mxu0 %v3069
    %3117 = vmatpush1.msra.mxu0 %v3068
    %3118 = vmatprep.subr.mxu0 %v3073
    %3119 = vmatpush1.msra.mxu0 %v3072
    %3120 = vmatprep.subr.mxu0 %v3077
    %3121 = vmatpush1.msra.mxu0 %v3076
    %3122 = vmatprep.subr.mxu0 %v3081
    %3123 = vmatpush1.msra.mxu0 %v3080
    %3124 = vmatprep.subr.mxu0 %v3085
    %3125 = vmatpush1.msra.mxu0 %v3084
    %3126 = vmatprep.subr.mxu0 %v3089
    %3127 = vmatpush1.msra.mxu0 %v3088
    %3128 = vmatprep.subr.mxu0 0.0
    %3129 = vmatpush1.msra.mxu0 0.0
    %3130 = vmatprep.subr.mxu0 0.0
    %3131 = vmatpush1.msra.mxu0 0.0
    %3132 = vmatprep.subr.mxu0 0.0
    %3133 = vmatpush1.msra.mxu0 0.0
    %3134 = vmatprep.subr.mxu0 0.0
    %3135 = vmatpush1.msra.mxu0 0.0
    %3136 = vmatprep.subr.mxu0 0.0
    %3137 = vmatpush1.msra.mxu0 0.0
    %3138 = vmatprep.subr.mxu0 0.0
    %3139 = vmatpush1.msra.mxu0 0.0
    %3140 = vmatprep.subr.mxu0 0.0
    %3141 = vmatpush1.msra.mxu0 0.0
    %3142 = vmatprep.subr.mxu0 0.0
    %3143 = vmatpush1.msra.mxu0 0.0
    %3144 = vmatprep.subr.mxu0 0.0
    %3145 = vmatpush1.msra.mxu0 0.0
    %3146 = vmatprep.subr.mxu0 0.0
    %3147 = vmatpush1.msra.mxu0 0.0
    %3148 = vmatprep.subr.mxu0 0.0
    %3149 = vmatpush1.msra.mxu0 0.0
    %3150 = vmatprep.subr.mxu0 0.0
    %3151 = vmatpush1.msra.mxu0 0.0
    %3152 = vmatprep.subr.mxu0 0.0
    %3153 = vmatpush1.msra.mxu0 0.0
    %3154 = vmatprep.subr.mxu0 0.0
    %3155 = vmatpush1.msra.mxu0 0.0
    %3156 = vmatprep.subr.mxu0 0.0
    %3157 = vmatpush1.msra.mxu0 0.0
    %3158 = vmatprep.subr.mxu0 0.0
    %3159 = vmatpush1.msra.mxu0 0.0
    %3160 = vmatprep.subr.mxu0 0.0
    %3161 = vmatpush1.msra.mxu0 0.0
    %3162 = vmatprep.subr.mxu0 0.0
    %3163 = vmatpush1.msra.mxu0 0.0
    %3164 = vmatprep.subr.mxu0 0.0
    %3165 = vmatpush1.msra.mxu0 0.0
    %3166 = vmatprep.subr.mxu0 0.0
    %3167 = vmatpush1.msra.mxu0 0.0
    %3168 = vmatprep.subr.mxu0 0.0
    %3169 = vmatpush1.msra.mxu0 0.0
    %3170 = vmatprep.subr.mxu0 0.0
    %3171 = vmatpush1.msra.mxu0 0.0
    %3172 = vmatprep.subr.mxu0 0.0
    %3173 = vmatpush1.msra.mxu0 0.0
    %3174 = vmatprep.subr.mxu0 0.0
    %3175 = vmatpush1.msra.mxu0 0.0
    %3176 = vmatprep.mubr.f32.mxu0 0.0
    %3177 = vmatmul.mubr.f32.gmra.mrb[0].mxu0 %v3107
    %v3178 = vpop.f32.mrb[0].mxu0
    %v3179 = vadd.f32 %v3099, %v3178
    %v3180 = vpop.f32.mrb[0].mxu0
    %v3181 = vadd.f32 %v3099, %v3180
    %3182 = vmatprep.mubr.f32.mxu0 0.0
    %3183 = vmatmul.mubr.f32.gmra.mrb[0].mxu0 %v3110
    %v3184 = vpop.f32.mrb[0].mxu0
    %v3185 = vadd.f32 %v3104, %v3184
    %v3186 = vpop.f32.mrb[0].mxu0
    %v3187 = vadd.f32 %v3104, %v3186
    %3188 = vdwg.mxu0
    %3189 = vmatprep.subr.mxu0 %v3063
    %3190 = vmatpush1.msra.mxu0 %v3062
    %3191 = vmatprep.subr.mxu0 %v3067
    %3192 = vmatpush1.msra.mxu0 %v3066
    %3193 = vmatprep.subr.mxu0 %v3071
    %3194 = vmatpush1.msra.mxu0 %v3070
    %3195 = vmatprep.subr.mxu0 %v3075
    %3196 = vmatpush1.msra.mxu0 %v3074
    %3197 = vmatprep.subr.mxu0 %v3079
    %3198 = vmatpush1.msra.mxu0 %v3078
    %3199 = vmatprep.subr.mxu0 %v3083
    %3200 = vmatpush1.msra.mxu0 %v3082
    %3201 = vmatprep.subr.mxu0 %v3087
    %3202 = vmatpush1.msra.mxu0 %v3086
    %3203 = vmatprep.subr.mxu0 %v3091
    %3204 = vmatpush1.msra.mxu0 %v3090
    %3205 = vmatprep.subr.mxu0 0.0
    %3206 = vmatpush1.msra.mxu0 0.0
    %3207 = vmatprep.subr.mxu0 0.0
    %3208 = vmatpush1.msra.mxu0 0.0
    %3209 = vmatprep.subr.mxu0 0.0
    %3210 = vmatpush1.msra.mxu0 0.0
    %3211 = vmatprep.subr.mxu0 0.0
    %3212 = vmatpush1.msra.mxu0 0.0
    %3213 = vmatprep.subr.mxu0 0.0
    %3214 = vmatpush1.msra.mxu0 0.0
    %3215 = vmatprep.subr.mxu0 0.0
    %3216 = vmatpush1.msra.mxu0 0.0
    %3217 = vmatprep.subr.mxu0 0.0
    %3218 = vmatpush1.msra.mxu0 0.0
    %3219 = vmatprep.subr.mxu0 0.0
    %3220 = vmatpush1.msra.mxu0 0.0
    %3221 = vmatprep.subr.mxu0 0.0
    %3222 = vmatpush1.msra.mxu0 0.0
    %3223 = vmatprep.subr.mxu0 0.0
    %3224 = vmatpush1.msra.mxu0 0.0
    %3225 = vmatprep.subr.mxu0 0.0
    %3226 = vmatpush1.msra.mxu0 0.0
    %3227 = vmatprep.subr.mxu0 0.0
    %3228 = vmatpush1.msra.mxu0 0.0
    %3229 = vmatprep.subr.mxu0 0.0
    %3230 = vmatpush1.msra.mxu0 0.0
    %3231 = vmatprep.subr.mxu0 0.0
    %3232 = vmatpush1.msra.mxu0 0.0
    %3233 = vmatprep.subr.mxu0 0.0
    %3234 = vmatpush1.msra.mxu0 0.0
    %3235 = vmatprep.subr.mxu0 0.0
    %3236 = vmatpush1.msra.mxu0 0.0
    %3237 = vmatprep.subr.mxu0 0.0
    %3238 = vmatpush1.msra.mxu0 0.0
    %3239 = vmatprep.subr.mxu0 0.0
    %3240 = vmatpush1.msra.mxu0 0.0
    %3241 = vmatprep.subr.mxu0 0.0
    %3242 = vmatpush1.msra.mxu0 0.0
    %3243 = vmatprep.subr.mxu0 0.0
    %3244 = vmatpush1.msra.mxu0 0.0
    %3245 = vmatprep.subr.mxu0 0.0
    %3246 = vmatpush1.msra.mxu0 0.0
    %3247 = vmatprep.subr.mxu0 0.0
    %3248 = vmatpush1.msra.mxu0 0.0
    %3249 = vmatprep.subr.mxu0 0.0
    %3250 = vmatpush1.msra.mxu0 0.0
    %3251 = vmatprep.subr.mxu0 0.0
    %3252 = vmatpush1.msra.mxu0 0.0
    %3253 = vmatprep.mubr.f32.mxu0 0.0
    %3254 = vmatmul.mubr.f32.gmra.mrb[0].mxu0 %v3107
    %v3255 = vpop.f32.mrb[0].mxu0
    %v3256 = vadd.f32 %v3099, %v3255
    %v3257 = vpop.f32.mrb[0].mxu0
    %v3258 = vadd.f32 %v3099, %v3257
    %3259 = vmatprep.mubr.f32.mxu0 0.0
    %3260 = vmatmul.mubr.f32.gmra.mrb[0].mxu0 %v3110
    %v3261 = vpop.f32.mrb[0].mxu0
    %v3262 = vadd.f32 %v3104, %v3261
    %v3263 = vpop.f32.mrb[0].mxu0
    %v3264 = vadd.f32 %v3104, %v3263
    %3265 = vdwg.mxu0
    %3266 = vst [vmem:[#allocation2] sm:$0xff] %v3179
    %3267 = vst [vmem:[#allocation2 + $0x8] sm:$0xff] %v3181
    %3268 = vst [vmem:[#allocation2 + $0x10] sm:$0xff] %v3256
    %3269 = vst [vmem:[#allocation2 + $0x18] sm:$0xff] %v3258
    %3270 = vst [vmem:[#allocation2 + $0x20] sm:$0xff] %v3185
    %3271 = vst [vmem:[#allocation2 + $0x28] sm:$0xff] %v3187
    %3272 = vst [vmem:[#allocation2 + $0x30] sm:$0xff] %v3262
    %3273 = vst [vmem:[#allocation2 + $0x38] sm:$0xff] %v3264
    // Predicated region
    $region38: #{tpu_custom_call.1} parent=1 // pred_check
      _
    $region39: #{tpu_custom_call.1} parent=1 // pred_check_branch
      %3275 = sbr.rel (0) target = $region41
    $region40: #{tpu_custom_call.1} parent=1 // pred_region
      %s3277 = ssub.s32 1024, 1024
      %3278 = vsyncadd [#allocation3], %s3277
      %s3279 = sshll.u32 [#allocation2], 4
      %s3280 = int_to_ptr.vmem [resolvable:$true] %s3279
      %3285 = dma.vmem_to_hbm [thread:$0]  %s3280, 1024, %s9, [#allocation3], 512, 512, 32
    $region41: #{tpu_custom_call.1} parent=1 // pred_fallthru
      _
    // Predicated region
    $region42: #{tpu_custom_call.1} parent=1 // pred_check
      _
    $region43: #{tpu_custom_call.1} parent=1 // pred_check_branch
      %3287 = sbr.rel (0) target = $region45
    $region44: #{tpu_custom_call.1} parent=1 // pred_region
      %3288 = dma.done [#allocation3], 1024
    $region45: #{tpu_custom_call.1} parent=1 // pred_fallthru
      _
    %3289 = vsyncpa [#allocation3], 1

</llo_original>
